<compile_context>
chip_gen: v5e
topology: v5e:2x2
jax: 0.10.0
libtpu: 0.0.40
codegen_flags: <defaults>
</compile_context>

<pallas_src>
import functools

import jax
import jax.numpy as jnp
from jax.experimental import pallas as pl
from jax.experimental.pallas import tpu as pltpu


HW = 49       # 7*7 spatial positions
HWP = 56      # padded to a sublane multiple (8); pad rows of wf are zero
C_MID = 1024  # channels after the 1x1 conv
C_EMB = 512   # channels after the grouped convolutions


# ------------------------------ Pallas kernel ------------------------------ #

def _fused_tail_kernel(x_ref, w1_ref, bias_ref, wf_ref, wfc_ref, bfc_ref, o_ref,
                       *, tb, hwp, cig, groups, m_per_g):
    """Processes TB samples per grid step.

    x_ref  : (TB*HWP, Cin)     bf16  activations (NHWC, spatial padded to 56)
    w1_ref : (Cin, 1024)       bf16  1x1-conv weight, BN scale folded, columns
                                     permuted to c' = i_local*128 + g
    bias_ref: (1, 1024)        f32   folded BN bias (same permutation)
    wf_ref : (4, HWP, 1024)    f32   grouped-7x7 conv weight with the groups=512
                                     1x1 conv folded in; wf[m, s, i*128+g]
                                     (rows s >= 49 are zero)
    wfc_ref: (512, P)          f32   FC weight, rows permuted to q = m*128 + g
    bfc_ref: (1, P)            f32   FC bias
    o_ref  : (1, TB, P)        f32
    """
    # ---- Step 1: 1x1 conv (BN scale folded) + BN bias + ReLU6, all TB at once
    h1 = jnp.dot(x_ref[...], w1_ref[...], preferred_element_type=jnp.float32)
    h1 = jnp.clip(h1 + bias_ref[...], 0.0, 6.0)            # (TB*HWP, 1024) f32

    # ---- Steps 2+3: grouped 7x7 conv with the groups=512 1x1 conv folded in
    # h3[b, m*128+g] = sum_{s,i} h1[b*HWP+s, i*128+g] * wf[m, s, i*128+g]
    rows = []
    for b in range(tb):
        hb = h1[b * hwp:(b + 1) * hwp, :]                  # aligned static slice
        cols = []
        for m in range(m_per_g):
            prod = hb * wf_ref[m]                          # (HWP, 1024)  VPU
            # lane-fold over i first: pairwise tree of 128-wide lane slices
            parts = [prod[:, i * groups:(i + 1) * groups] for i in range(cig)]
            while len(parts) > 1:
                nxt = [parts[j] + parts[j + 1]
                       for j in range(0, len(parts) - 1, 2)]
                if len(parts) % 2:
                    nxt.append(parts[-1])
                parts = nxt                                # -> (HWP, 128)
            # then ONE cross-sublane (XLU) reduce over the spatial rows
            cols.append(jnp.sum(parts[0], axis=0, keepdims=True))   # (1, 128)
        rows.append(jnp.concatenate(cols, axis=1))         # (1, 512) q = m*128+g
    h3 = jnp.concatenate(rows, axis=0)                     # (TB, 512) f32

    # ---- Step 4: final Linear (kept in f32 for embedding accuracy) ----------
    emb = jnp.dot(h3, wfc_ref[...],
                  preferred_element_type=jnp.float32) + bfc_ref[...]
    o_ref[0] = emb


# --------------------- One-time weight folding (hoisted) -------------------- #

def prepare_tail_params(params, eps=1e-5):
    """Fold BN / the groups=512 conv / permutations into the kernel's weights.

    Call once; the result is reused for every forward call.
    """
    w1, gamma, beta, mean, var, w2, w3, wfc, bfc = params
    P = wfc.shape[0]
    CIG = w2.shape[1]                  # in-channels per 7x7 group (= S = 8)
    G = C_MID // CIG                   # number of 7x7 groups (= 128)
    M = C_EMB // G                     # 512-conv outputs per 7x7 group (= 4)
    assert G == 128 and M * G == C_EMB and CIG * G == C_MID

    # BN folded into the 1x1 conv; channels permuted to c' = i*128 + g
    inv_std = 1.0 / jnp.sqrt(var + eps)
    scale = gamma * inv_std
    bias = beta - mean * scale
    cnew = jnp.arange(C_MID)
    perm = (cnew % G) * CIG + cnew // G                    # old channel 8g + i
    w1p = (w1.T * scale[None, :])[:, perm].astype(jnp.bfloat16)    # (Cin, 1024)
    biasp = bias[perm].reshape(1, C_MID).astype(jnp.float32)

    # groups=512 1x1 conv (w3) folded into the grouped 7x7 weights
    # folded[g, m, i, s] = sum_t w2[8g + 2m + t, i, s] * w3[4g + m, t]
    w2g = w2.reshape(G, M, 2, CIG, HW)
    w3g = w3.reshape(G, M, 2)
    folded = jnp.einsum("gmtis,gmt->gmis", w2g, w3g)               # (128,4,8,49)
    wf = jnp.transpose(folded, (1, 3, 2, 0)).reshape(M, HW, C_MID)  # [m,s,i*128+g]
    wf = jnp.pad(wf, ((0, 0), (0, HWP - HW), (0, 0)))               # zero pad rows
    wf = wf.astype(jnp.float32)

    # FC weight permuted to the kernel's q = m*128 + g channel order
    q = jnp.arange(C_EMB)
    permq = (q % G) * M + q // G                                    # -> 4g + m
    wfcp = wfc.T[permq, :].astype(jnp.float32)                      # (512, P)
    bfc2 = bfc.reshape(1, P).astype(jnp.float32)
    return (w1p, biasp, wf, wfcp, bfc2)


# --------------------------------- Wrapper --------------------------------- #

def tail_embedding_forward(x, folded):
    """x: (B, Cin, 7, 7) NCHW float32.  Returns (B, plances) float32."""
    w1p, biasp, wf, wfcp, bfc2 = folded
    B, Cin, H, W = x.shape
    assert H == 7 and W == 7, "7x7 conv with padding=0 requires 7x7 spatial input"
    P = wfcp.shape[1]
    M = wf.shape[0]
    CIG = C_MID // (C_EMB // M) if M else 8
    G = C_MID // CIG

    # TB samples per grid step: fill the MXU rows (TB*49) while keeping the
    # grid length >= 2 so the "parallel" axis can shard across 2 TCs on v7x.
    TB = max(1, min(8, -(-B // 2)))
    nsteps = -(-B // TB)
    Bp = nsteps * TB

    # activations: NCHW -> (Bp, HWP, Cin) -> flat (Bp*HWP, Cin) bf16
    x3 = jnp.transpose(x, (0, 2, 3, 1)).reshape(B, HW, Cin)
    x3 = jnp.pad(x3, ((0, Bp - B), (0, HWP - HW), (0, 0)))
    x_flat = x3.reshape(Bp * HWP, Cin).astype(jnp.bfloat16)

    kernel = functools.partial(_fused_tail_kernel, tb=TB, hwp=HWP,
                               cig=CIG, groups=G, m_per_g=M)

    flops = int(2 * Bp * (HWP * Cin * C_MID + M * HWP * C_MID + C_EMB * P))
    bytes_accessed = int(Bp * HWP * Cin * 2 + Cin * C_MID * 2 + C_MID * 4
                         + M * HWP * C_MID * 4 + C_EMB * P * 4 + P * 4
                         + Bp * P * 4)

    out = pl.pallas_call(
        kernel,
        out_shape=jax.ShapeDtypeStruct((nsteps, TB, P), jnp.float32),
        grid=(nsteps,),
        in_specs=[
            pl.BlockSpec((TB * HWP, Cin), lambda b: (b, 0)),    # per-step acts
            pl.BlockSpec((Cin, C_MID), lambda b: (0, 0)),       # resident weights
            pl.BlockSpec((1, C_MID), lambda b: (0, 0)),
            pl.BlockSpec((M, HWP, C_MID), lambda b: (0, 0, 0)),
            pl.BlockSpec((C_EMB, P), lambda b: (0, 0)),
            pl.BlockSpec((1, P), lambda b: (0, 0)),
        ],
        out_specs=pl.BlockSpec((1, TB, P), lambda b: (b, 0, 0)),
        compiler_params=pltpu.CompilerParams(
            dimension_semantics=("parallel",)),
        cost_estimate=pl.CostEstimate(flops=flops, transcendentals=0,
                                      bytes_accessed=bytes_accessed),
    )(x_flat, w1p, biasp, wf, wfcp, bfc2)
    return out.reshape(Bp, P)[:B]


# -------------------------------- Reference --------------------------------- #

def reference_forward(x, params):
    w1, gamma, beta, mean, var, w2, w3, wfc, bfc = params
    eps = 1e-5
    B = x.shape[0]
    h = jnp.einsum("bchw,oc->bohw", x, w1)
    h = (
        gamma[None, :, None, None]
        * (h - mean[None, :, None, None])
        / jnp.sqrt(var + eps)[None, :, None, None]
        + beta[None, :, None, None]
    )
    h = jnp.clip(h, 0.0, 6.0)
    hg = h.reshape(B, 128, 8, 7, 7)
    w2g = w2.reshape(128, 8, 8, 7, 7)
    g = jnp.einsum("bgihw,goihw->bgo", hg, w2g).reshape(B, 1024)
    h3 = jnp.einsum("bci,ci->bc", g.reshape(B, 512, 2), w3)
    return h3 @ wfc.T + bfc


# ----------------------------------- Main ------------------------------------ #

if __name__ == "__main__":
    B, Cin, H, W = 8, 64, 7, 7        # in_plances = 64 (small); spatial must be 7x7
    plances, S = 512, 8               # module defaults
    groups7 = 1024 // S               # 128
    cig = 1024 // groups7             # 8 in-channels per 7x7 group

    key = jax.random.PRNGKey(0)
    ks = jax.random.split(key, 10)
    x = jax.random.normal(ks[0], (B, Cin, H, W), jnp.float32)
    w1 = 0.05 * jax.random.normal(ks[1], (1024, Cin), jnp.float32)        # 1x1 conv
    gamma = 1.0 + 0.1 * jax.random.normal(ks[2], (1024,), jnp.float32)     # BN weight
    beta = 0.1 * jax.random.normal(ks[3], (1024,), jnp.float32)            # BN bias
    mean = 0.1 * jax.random.normal(ks[4], (1024,), jnp.float32)            # BN running_mean
    var = jax.random.uniform(ks[5], (1024,), jnp.float32, 0.5, 1.5)        # BN running_var
    w2 = 0.05 * jax.random.normal(ks[6], (1024, cig, 7, 7), jnp.float32)   # grouped 7x7 conv
    w3 = 0.5 * jax.random.normal(ks[7], (512, 1024 // 512), jnp.float32)   # groups=512 1x1 conv
    wfc = 0.05 * jax.random.normal(ks[8], (plances, 512), jnp.float32)     # Linear weight
    bfc = 0.05 * jax.random.normal(ks[9], (plances,), jnp.float32)         # Linear bias
    params = (w1, gamma, beta, mean, var, w2, w3, wfc, bfc)

    # One-time weight folding (hoisted out of the per-call forward path).
    folded = jax.tree_util.tree_map(jax.block_until_ready,
                                    prepare_tail_params(params))

    fwd = jax.jit(tail_embedding_forward)
    out = jax.block_until_ready(fwd(x, folded))
    assert out.shape == (B, plances)

    ref = reference_forward(x, params)
    if not bool(jnp.allclose(out, ref, atol=5e-2, rtol=5e-2)):
        raise SystemExit(
            "mismatch: max abs diff = %e" % float(jnp.max(jnp.abs(out - ref)))
        )
    print("KERNEL_OK")
</pallas_src>

<mosaic_0001>
module attributes {stable_mosaic.version = 11 : i64} {
  func.func @_fused_tail_kernel(%arg0: i32, %arg1: memref<224x64xbf16, #tpu.memory_space<vmem>>, %arg2: memref<64x1024xbf16, #tpu.memory_space<vmem>>, %arg3: memref<1x1024xf32, #tpu.memory_space<vmem>>, %arg4: memref<4x56x1024xf32, #tpu.memory_space<vmem>>, %arg5: memref<512x512xf32, #tpu.memory_space<vmem>>, %arg6: memref<1x512xf32, #tpu.memory_space<vmem>>, %arg7: memref<1x4x512xf32, #tpu.memory_space<vmem>>) attributes {dimension_semantics = [#tpu.dimension_semantics<parallel>], iteration_bounds = array<i64: 2>, scalar_prefetch = 0 : i64, scratch_operands = 0 : i64, tpu.core_type = #tpu.core_type<tc>, window_params = [{transform_indices = @transform_0, window_bounds = array<i64: 224, 64>}, {pipeline_mode = #tpu.pipeline_mode<synchronous>, transform_indices = @transform_1, window_bounds = array<i64: 64, 1024>}, {pipeline_mode = #tpu.pipeline_mode<synchronous>, transform_indices = @transform_2, window_bounds = array<i64: 1, 1024>}, {pipeline_mode = #tpu.pipeline_mode<synchronous>, transform_indices = @transform_3, window_bounds = array<i64: 4, 56, 1024>}, {pipeline_mode = #tpu.pipeline_mode<synchronous>, transform_indices = @transform_4, window_bounds = array<i64: 512, 512>}, {pipeline_mode = #tpu.pipeline_mode<synchronous>, transform_indices = @transform_5, window_bounds = array<i64: 1, 512>}, {transform_indices = @transform_6, window_bounds = array<i64: 1, 4, 512>}]} {
    %c0 = arith.constant 0 : index
    %c0_0 = arith.constant 0 : index
    %0 = vector.load %arg1[%c0, %c0_0] : memref<224x64xbf16, #tpu.memory_space<vmem>>, vector<224x64xbf16>
    %c0_1 = arith.constant 0 : index
    %c0_2 = arith.constant 0 : index
    %1 = vector.load %arg2[%c0_1, %c0_2] : memref<64x1024xbf16, #tpu.memory_space<vmem>>, vector<64x1024xbf16>
    %cst = arith.constant dense<0.000000e+00> : vector<224x1024xf32>
    %2 = tpu.matmul %0, %1, %cst {dimension_numbers = #tpu.dot_dimension_numbers<[1], [0], [0], [1], [0, 0, 1, 1], [], []>} : vector<224x64xbf16>, vector<64x1024xbf16>, vector<224x1024xf32> -> vector<224x1024xf32>
    %c0_3 = arith.constant 0 : index
    %c0_4 = arith.constant 0 : index
    %3 = vector.load %arg3[%c0_3, %c0_4] : memref<1x1024xf32, #tpu.memory_space<vmem>>, vector<1x1024xf32>
    %4 = vector.broadcast %3 : vector<1x1024xf32> to vector<224x1024xf32>
    %5 = arith.addf %2, %4 : vector<224x1024xf32>
    %cst_5 = arith.constant 0.000000e+00 : f32
    %cst_6 = arith.constant 6.000000e+00 : f32
    %6 = vector.broadcast %cst_5 : f32 to vector<224x1024xf32>
    %7 = arith.maximumf %6, %5 : vector<224x1024xf32>
    %8 = vector.broadcast %cst_6 : f32 to vector<224x1024xf32>
    %9 = arith.minimumf %8, %7 : vector<224x1024xf32>
    %10 = vector.extract_strided_slice %9 {offsets = [0, 0], sizes = [56, 1024], strides = [1, 1]} : vector<224x1024xf32> to vector<56x1024xf32>
    %c0_7 = arith.constant 0 : index
    %c0_8 = arith.constant 0 : index
    %c0_9 = arith.constant 0 : index
    %11 = vector.load %arg4[%c0_7, %c0_8, %c0_9] : memref<4x56x1024xf32, #tpu.memory_space<vmem>>, vector<1x56x1024xf32>
    %12 = vector.shape_cast %11 : vector<1x56x1024xf32> to vector<56x1024xf32>
    %13 = arith.mulf %10, %12 : vector<56x1024xf32>
    %14 = vector.extract_strided_slice %13 {offsets = [0, 0], sizes = [56, 128], strides = [1, 1]} : vector<56x1024xf32> to vector<56x128xf32>
    %15 = vector.extract_strided_slice %13 {offsets = [0, 128], sizes = [56, 128], strides = [1, 1]} : vector<56x1024xf32> to vector<56x128xf32>
    %16 = vector.extract_strided_slice %13 {offsets = [0, 256], sizes = [56, 128], strides = [1, 1]} : vector<56x1024xf32> to vector<56x128xf32>
    %17 = vector.extract_strided_slice %13 {offsets = [0, 384], sizes = [56, 128], strides = [1, 1]} : vector<56x1024xf32> to vector<56x128xf32>
    %18 = vector.extract_strided_slice %13 {offsets = [0, 512], sizes = [56, 128], strides = [1, 1]} : vector<56x1024xf32> to vector<56x128xf32>
    %19 = vector.extract_strided_slice %13 {offsets = [0, 640], sizes = [56, 128], strides = [1, 1]} : vector<56x1024xf32> to vector<56x128xf32>
    %20 = vector.extract_strided_slice %13 {offsets = [0, 768], sizes = [56, 128], strides = [1, 1]} : vector<56x1024xf32> to vector<56x128xf32>
    %21 = vector.extract_strided_slice %13 {offsets = [0, 896], sizes = [56, 128], strides = [1, 1]} : vector<56x1024xf32> to vector<56x128xf32>
    %22 = arith.addf %14, %15 : vector<56x128xf32>
    %23 = arith.addf %16, %17 : vector<56x128xf32>
    %24 = arith.addf %18, %19 : vector<56x128xf32>
    %25 = arith.addf %20, %21 : vector<56x128xf32>
    %26 = arith.addf %22, %23 : vector<56x128xf32>
    %27 = arith.addf %24, %25 : vector<56x128xf32>
    %28 = arith.addf %26, %27 : vector<56x128xf32>
    %cst_10 = arith.constant dense<0.000000e+00> : vector<128xf32>
    %29 = vector.multi_reduction <add>, %28, %cst_10 [0] : vector<56x128xf32> to vector<128xf32>
    %30 = vector.shape_cast %29 : vector<128xf32> to vector<1x128xf32>
    %c1 = arith.constant 1 : index
    %c0_11 = arith.constant 0 : index
    %c0_12 = arith.constant 0 : index
    %31 = vector.load %arg4[%c1, %c0_11, %c0_12] : memref<4x56x1024xf32, #tpu.memory_space<vmem>>, vector<1x56x1024xf32>
    %32 = vector.shape_cast %31 : vector<1x56x1024xf32> to vector<56x1024xf32>
    %33 = arith.mulf %10, %32 : vector<56x1024xf32>
    %34 = vector.extract_strided_slice %33 {offsets = [0, 0], sizes = [56, 128], strides = [1, 1]} : vector<56x1024xf32> to vector<56x128xf32>
    %35 = vector.extract_strided_slice %33 {offsets = [0, 128], sizes = [56, 128], strides = [1, 1]} : vector<56x1024xf32> to vector<56x128xf32>
    %36 = vector.extract_strided_slice %33 {offsets = [0, 256], sizes = [56, 128], strides = [1, 1]} : vector<56x1024xf32> to vector<56x128xf32>
    %37 = vector.extract_strided_slice %33 {offsets = [0, 384], sizes = [56, 128], strides = [1, 1]} : vector<56x1024xf32> to vector<56x128xf32>
    %38 = vector.extract_strided_slice %33 {offsets = [0, 512], sizes = [56, 128], strides = [1, 1]} : vector<56x1024xf32> to vector<56x128xf32>
    %39 = vector.extract_strided_slice %33 {offsets = [0, 640], sizes = [56, 128], strides = [1, 1]} : vector<56x1024xf32> to vector<56x128xf32>
    %40 = vector.extract_strided_slice %33 {offsets = [0, 768], sizes = [56, 128], strides = [1, 1]} : vector<56x1024xf32> to vector<56x128xf32>
    %41 = vector.extract_strided_slice %33 {offsets = [0, 896], sizes = [56, 128], strides = [1, 1]} : vector<56x1024xf32> to vector<56x128xf32>
    %42 = arith.addf %34, %35 : vector<56x128xf32>
    %43 = arith.addf %36, %37 : vector<56x128xf32>
    %44 = arith.addf %38, %39 : vector<56x128xf32>
    %45 = arith.addf %40, %41 : vector<56x128xf32>
    %46 = arith.addf %42, %43 : vector<56x128xf32>
    %47 = arith.addf %44, %45 : vector<56x128xf32>
    %48 = arith.addf %46, %47 : vector<56x128xf32>
    %cst_13 = arith.constant dense<0.000000e+00> : vector<128xf32>
    %49 = vector.multi_reduction <add>, %48, %cst_13 [0] : vector<56x128xf32> to vector<128xf32>
    %50 = vector.shape_cast %49 : vector<128xf32> to vector<1x128xf32>
    %c2 = arith.constant 2 : index
    %c0_14 = arith.constant 0 : index
    %c0_15 = arith.constant 0 : index
    %51 = vector.load %arg4[%c2, %c0_14, %c0_15] : memref<4x56x1024xf32, #tpu.memory_space<vmem>>, vector<1x56x1024xf32>
    %52 = vector.shape_cast %51 : vector<1x56x1024xf32> to vector<56x1024xf32>
    %53 = arith.mulf %10, %52 : vector<56x1024xf32>
    %54 = vector.extract_strided_slice %53 {offsets = [0, 0], sizes = [56, 128], strides = [1, 1]} : vector<56x1024xf32> to vector<56x128xf32>
    %55 = vector.extract_strided_slice %53 {offsets = [0, 128], sizes = [56, 128], strides = [1, 1]} : vector<56x1024xf32> to vector<56x128xf32>
    %56 = vector.extract_strided_slice %53 {offsets = [0, 256], sizes = [56, 128], strides = [1, 1]} : vector<56x1024xf32> to vector<56x128xf32>
    %57 = vector.extract_strided_slice %53 {offsets = [0, 384], sizes = [56, 128], strides = [1, 1]} : vector<56x1024xf32> to vector<56x128xf32>
    %58 = vector.extract_strided_slice %53 {offsets = [0, 512], sizes = [56, 128], strides = [1, 1]} : vector<56x1024xf32> to vector<56x128xf32>
    %59 = vector.extract_strided_slice %53 {offsets = [0, 640], sizes = [56, 128], strides = [1, 1]} : vector<56x1024xf32> to vector<56x128xf32>
    %60 = vector.extract_strided_slice %53 {offsets = [0, 768], sizes = [56, 128], strides = [1, 1]} : vector<56x1024xf32> to vector<56x128xf32>
    %61 = vector.extract_strided_slice %53 {offsets = [0, 896], sizes = [56, 128], strides = [1, 1]} : vector<56x1024xf32> to vector<56x128xf32>
    %62 = arith.addf %54, %55 : vector<56x128xf32>
    %63 = arith.addf %56, %57 : vector<56x128xf32>
    %64 = arith.addf %58, %59 : vector<56x128xf32>
    %65 = arith.addf %60, %61 : vector<56x128xf32>
    %66 = arith.addf %62, %63 : vector<56x128xf32>
    %67 = arith.addf %64, %65 : vector<56x128xf32>
    %68 = arith.addf %66, %67 : vector<56x128xf32>
    %cst_16 = arith.constant dense<0.000000e+00> : vector<128xf32>
    %69 = vector.multi_reduction <add>, %68, %cst_16 [0] : vector<56x128xf32> to vector<128xf32>
    %70 = vector.shape_cast %69 : vector<128xf32> to vector<1x128xf32>
    %c3 = arith.constant 3 : index
    %c0_17 = arith.constant 0 : index
    %c0_18 = arith.constant 0 : index
    %71 = vector.load %arg4[%c3, %c0_17, %c0_18] : memref<4x56x1024xf32, #tpu.memory_space<vmem>>, vector<1x56x1024xf32>
    %72 = vector.shape_cast %71 : vector<1x56x1024xf32> to vector<56x1024xf32>
    %73 = arith.mulf %10, %72 : vector<56x1024xf32>
    %74 = vector.extract_strided_slice %73 {offsets = [0, 0], sizes = [56, 128], strides = [1, 1]} : vector<56x1024xf32> to vector<56x128xf32>
    %75 = vector.extract_strided_slice %73 {offsets = [0, 128], sizes = [56, 128], strides = [1, 1]} : vector<56x1024xf32> to vector<56x128xf32>
    %76 = vector.extract_strided_slice %73 {offsets = [0, 256], sizes = [56, 128], strides = [1, 1]} : vector<56x1024xf32> to vector<56x128xf32>
    %77 = vector.extract_strided_slice %73 {offsets = [0, 384], sizes = [56, 128], strides = [1, 1]} : vector<56x1024xf32> to vector<56x128xf32>
    %78 = vector.extract_strided_slice %73 {offsets = [0, 512], sizes = [56, 128], strides = [1, 1]} : vector<56x1024xf32> to vector<56x128xf32>
    %79 = vector.extract_strided_slice %73 {offsets = [0, 640], sizes = [56, 128], strides = [1, 1]} : vector<56x1024xf32> to vector<56x128xf32>
    %80 = vector.extract_strided_slice %73 {offsets = [0, 768], sizes = [56, 128], strides = [1, 1]} : vector<56x1024xf32> to vector<56x128xf32>
    %81 = vector.extract_strided_slice %73 {offsets = [0, 896], sizes = [56, 128], strides = [1, 1]} : vector<56x1024xf32> to vector<56x128xf32>
    %82 = arith.addf %74, %75 : vector<56x128xf32>
    %83 = arith.addf %76, %77 : vector<56x128xf32>
    %84 = arith.addf %78, %79 : vector<56x128xf32>
    %85 = arith.addf %80, %81 : vector<56x128xf32>
    %86 = arith.addf %82, %83 : vector<56x128xf32>
    %87 = arith.addf %84, %85 : vector<56x128xf32>
    %88 = arith.addf %86, %87 : vector<56x128xf32>
    %cst_19 = arith.constant dense<0.000000e+00> : vector<128xf32>
    %89 = vector.multi_reduction <add>, %88, %cst_19 [0] : vector<56x128xf32> to vector<128xf32>
    %90 = vector.shape_cast %89 : vector<128xf32> to vector<1x128xf32>
    %91 = tpu.concatenate %30, %50, %70, %90 in 1 : vector<1x128xf32>, vector<1x128xf32>, vector<1x128xf32>, vector<1x128xf32> -> vector<1x512xf32>
    %92 = vector.extract_strided_slice %9 {offsets = [56, 0], sizes = [56, 1024], strides = [1, 1]} : vector<224x1024xf32> to vector<56x1024xf32>
    %c0_20 = arith.constant 0 : index
    %c0_21 = arith.constant 0 : index
    %c0_22 = arith.constant 0 : index
    %93 = vector.load %arg4[%c0_20, %c0_21, %c0_22] : memref<4x56x1024xf32, #tpu.memory_space<vmem>>, vector<1x56x1024xf32>
    %94 = vector.shape_cast %93 : vector<1x56x1024xf32> to vector<56x1024xf32>
    %95 = arith.mulf %92, %94 : vector<56x1024xf32>
    %96 = vector.extract_strided_slice %95 {offsets = [0, 0], sizes = [56, 128], strides = [1, 1]} : vector<56x1024xf32> to vector<56x128xf32>
    %97 = vector.extract_strided_slice %95 {offsets = [0, 128], sizes = [56, 128], strides = [1, 1]} : vector<56x1024xf32> to vector<56x128xf32>
    %98 = vector.extract_strided_slice %95 {offsets = [0, 256], sizes = [56, 128], strides = [1, 1]} : vector<56x1024xf32> to vector<56x128xf32>
    %99 = vector.extract_strided_slice %95 {offsets = [0, 384], sizes = [56, 128], strides = [1, 1]} : vector<56x1024xf32> to vector<56x128xf32>
    %100 = vector.extract_strided_slice %95 {offsets = [0, 512], sizes = [56, 128], strides = [1, 1]} : vector<56x1024xf32> to vector<56x128xf32>
    %101 = vector.extract_strided_slice %95 {offsets = [0, 640], sizes = [56, 128], strides = [1, 1]} : vector<56x1024xf32> to vector<56x128xf32>
    %102 = vector.extract_strided_slice %95 {offsets = [0, 768], sizes = [56, 128], strides = [1, 1]} : vector<56x1024xf32> to vector<56x128xf32>
    %103 = vector.extract_strided_slice %95 {offsets = [0, 896], sizes = [56, 128], strides = [1, 1]} : vector<56x1024xf32> to vector<56x128xf32>
    %104 = arith.addf %96, %97 : vector<56x128xf32>
    %105 = arith.addf %98, %99 : vector<56x128xf32>
    %106 = arith.addf %100, %101 : vector<56x128xf32>
    %107 = arith.addf %102, %103 : vector<56x128xf32>
    %108 = arith.addf %104, %105 : vector<56x128xf32>
    %109 = arith.addf %106, %107 : vector<56x128xf32>
    %110 = arith.addf %108, %109 : vector<56x128xf32>
    %cst_23 = arith.constant dense<0.000000e+00> : vector<128xf32>
    %111 = vector.multi_reduction <add>, %110, %cst_23 [0] : vector<56x128xf32> to vector<128xf32>
    %112 = vector.shape_cast %111 : vector<128xf32> to vector<1x128xf32>
    %c1_24 = arith.constant 1 : index
    %c0_25 = arith.constant 0 : index
    %c0_26 = arith.constant 0 : index
    %113 = vector.load %arg4[%c1_24, %c0_25, %c0_26] : memref<4x56x1024xf32, #tpu.memory_space<vmem>>, vector<1x56x1024xf32>
    %114 = vector.shape_cast %113 : vector<1x56x1024xf32> to vector<56x1024xf32>
    %115 = arith.mulf %92, %114 : vector<56x1024xf32>
    %116 = vector.extract_strided_slice %115 {offsets = [0, 0], sizes = [56, 128], strides = [1, 1]} : vector<56x1024xf32> to vector<56x128xf32>
    %117 = vector.extract_strided_slice %115 {offsets = [0, 128], sizes = [56, 128], strides = [1, 1]} : vector<56x1024xf32> to vector<56x128xf32>
    %118 = vector.extract_strided_slice %115 {offsets = [0, 256], sizes = [56, 128], strides = [1, 1]} : vector<56x1024xf32> to vector<56x128xf32>
    %119 = vector.extract_strided_slice %115 {offsets = [0, 384], sizes = [56, 128], strides = [1, 1]} : vector<56x1024xf32> to vector<56x128xf32>
    %120 = vector.extract_strided_slice %115 {offsets = [0, 512], sizes = [56, 128], strides = [1, 1]} : vector<56x1024xf32> to vector<56x128xf32>
    %121 = vector.extract_strided_slice %115 {offsets = [0, 640], sizes = [56, 128], strides = [1, 1]} : vector<56x1024xf32> to vector<56x128xf32>
    %122 = vector.extract_strided_slice %115 {offsets = [0, 768], sizes = [56, 128], strides = [1, 1]} : vector<56x1024xf32> to vector<56x128xf32>
    %123 = vector.extract_strided_slice %115 {offsets = [0, 896], sizes = [56, 128], strides = [1, 1]} : vector<56x1024xf32> to vector<56x128xf32>
    %124 = arith.addf %116, %117 : vector<56x128xf32>
    %125 = arith.addf %118, %119 : vector<56x128xf32>
    %126 = arith.addf %120, %121 : vector<56x128xf32>
    %127 = arith.addf %122, %123 : vector<56x128xf32>
    %128 = arith.addf %124, %125 : vector<56x128xf32>
    %129 = arith.addf %126, %127 : vector<56x128xf32>
    %130 = arith.addf %128, %129 : vector<56x128xf32>
    %cst_27 = arith.constant dense<0.000000e+00> : vector<128xf32>
    %131 = vector.multi_reduction <add>, %130, %cst_27 [0] : vector<56x128xf32> to vector<128xf32>
    %132 = vector.shape_cast %131 : vector<128xf32> to vector<1x128xf32>
    %c2_28 = arith.constant 2 : index
    %c0_29 = arith.constant 0 : index
    %c0_30 = arith.constant 0 : index
    %133 = vector.load %arg4[%c2_28, %c0_29, %c0_30] : memref<4x56x1024xf32, #tpu.memory_space<vmem>>, vector<1x56x1024xf32>
    %134 = vector.shape_cast %133 : vector<1x56x1024xf32> to vector<56x1024xf32>
    %135 = arith.mulf %92, %134 : vector<56x1024xf32>
    %136 = vector.extract_strided_slice %135 {offsets = [0, 0], sizes = [56, 128], strides = [1, 1]} : vector<56x1024xf32> to vector<56x128xf32>
    %137 = vector.extract_strided_slice %135 {offsets = [0, 128], sizes = [56, 128], strides = [1, 1]} : vector<56x1024xf32> to vector<56x128xf32>
    %138 = vector.extract_strided_slice %135 {offsets = [0, 256], sizes = [56, 128], strides = [1, 1]} : vector<56x1024xf32> to vector<56x128xf32>
    %139 = vector.extract_strided_slice %135 {offsets = [0, 384], sizes = [56, 128], strides = [1, 1]} : vector<56x1024xf32> to vector<56x128xf32>
    %140 = vector.extract_strided_slice %135 {offsets = [0, 512], sizes = [56, 128], strides = [1, 1]} : vector<56x1024xf32> to vector<56x128xf32>
    %141 = vector.extract_strided_slice %135 {offsets = [0, 640], sizes = [56, 128], strides = [1, 1]} : vector<56x1024xf32> to vector<56x128xf32>
    %142 = vector.extract_strided_slice %135 {offsets = [0, 768], sizes = [56, 128], strides = [1, 1]} : vector<56x1024xf32> to vector<56x128xf32>
    %143 = vector.extract_strided_slice %135 {offsets = [0, 896], sizes = [56, 128], strides = [1, 1]} : vector<56x1024xf32> to vector<56x128xf32>
    %144 = arith.addf %136, %137 : vector<56x128xf32>
    %145 = arith.addf %138, %139 : vector<56x128xf32>
    %146 = arith.addf %140, %141 : vector<56x128xf32>
    %147 = arith.addf %142, %143 : vector<56x128xf32>
    %148 = arith.addf %144, %145 : vector<56x128xf32>
    %149 = arith.addf %146, %147 : vector<56x128xf32>
    %150 = arith.addf %148, %149 : vector<56x128xf32>
    %cst_31 = arith.constant dense<0.000000e+00> : vector<128xf32>
    %151 = vector.multi_reduction <add>, %150, %cst_31 [0] : vector<56x128xf32> to vector<128xf32>
    %152 = vector.shape_cast %151 : vector<128xf32> to vector<1x128xf32>
    %c3_32 = arith.constant 3 : index
    %c0_33 = arith.constant 0 : index
    %c0_34 = arith.constant 0 : index
    %153 = vector.load %arg4[%c3_32, %c0_33, %c0_34] : memref<4x56x1024xf32, #tpu.memory_space<vmem>>, vector<1x56x1024xf32>
    %154 = vector.shape_cast %153 : vector<1x56x1024xf32> to vector<56x1024xf32>
    %155 = arith.mulf %92, %154 : vector<56x1024xf32>
    %156 = vector.extract_strided_slice %155 {offsets = [0, 0], sizes = [56, 128], strides = [1, 1]} : vector<56x1024xf32> to vector<56x128xf32>
    %157 = vector.extract_strided_slice %155 {offsets = [0, 128], sizes = [56, 128], strides = [1, 1]} : vector<56x1024xf32> to vector<56x128xf32>
    %158 = vector.extract_strided_slice %155 {offsets = [0, 256], sizes = [56, 128], strides = [1, 1]} : vector<56x1024xf32> to vector<56x128xf32>
    %159 = vector.extract_strided_slice %155 {offsets = [0, 384], sizes = [56, 128], strides = [1, 1]} : vector<56x1024xf32> to vector<56x128xf32>
    %160 = vector.extract_strided_slice %155 {offsets = [0, 512], sizes = [56, 128], strides = [1, 1]} : vector<56x1024xf32> to vector<56x128xf32>
    %161 = vector.extract_strided_slice %155 {offsets = [0, 640], sizes = [56, 128], strides = [1, 1]} : vector<56x1024xf32> to vector<56x128xf32>
    %162 = vector.extract_strided_slice %155 {offsets = [0, 768], sizes = [56, 128], strides = [1, 1]} : vector<56x1024xf32> to vector<56x128xf32>
    %163 = vector.extract_strided_slice %155 {offsets = [0, 896], sizes = [56, 128], strides = [1, 1]} : vector<56x1024xf32> to vector<56x128xf32>
    %164 = arith.addf %156, %157 : vector<56x128xf32>
    %165 = arith.addf %158, %159 : vector<56x128xf32>
    %166 = arith.addf %160, %161 : vector<56x128xf32>
    %167 = arith.addf %162, %163 : vector<56x128xf32>
    %168 = arith.addf %164, %165 : vector<56x128xf32>
    %169 = arith.addf %166, %167 : vector<56x128xf32>
    %170 = arith.addf %168, %169 : vector<56x128xf32>
    %cst_35 = arith.constant dense<0.000000e+00> : vector<128xf32>
    %171 = vector.multi_reduction <add>, %170, %cst_35 [0] : vector<56x128xf32> to vector<128xf32>
    %172 = vector.shape_cast %171 : vector<128xf32> to vector<1x128xf32>
    %173 = tpu.concatenate %112, %132, %152, %172 in 1 : vector<1x128xf32>, vector<1x128xf32>, vector<1x128xf32>, vector<1x128xf32> -> vector<1x512xf32>
    %174 = vector.extract_strided_slice %9 {offsets = [112, 0], sizes = [56, 1024], strides = [1, 1]} : vector<224x1024xf32> to vector<56x1024xf32>
    %c0_36 = arith.constant 0 : index
    %c0_37 = arith.constant 0 : index
    %c0_38 = arith.constant 0 : index
    %175 = vector.load %arg4[%c0_36, %c0_37, %c0_38] : memref<4x56x1024xf32, #tpu.memory_space<vmem>>, vector<1x56x1024xf32>
    %176 = vector.shape_cast %175 : vector<1x56x1024xf32> to vector<56x1024xf32>
    %177 = arith.mulf %174, %176 : vector<56x1024xf32>
    %178 = vector.extract_strided_slice %177 {offsets = [0, 0], sizes = [56, 128], strides = [1, 1]} : vector<56x1024xf32> to vector<56x128xf32>
    %179 = vector.extract_strided_slice %177 {offsets = [0, 128], sizes = [56, 128], strides = [1, 1]} : vector<56x1024xf32> to vector<56x128xf32>
    %180 = vector.extract_strided_slice %177 {offsets = [0, 256], sizes = [56, 128], strides = [1, 1]} : vector<56x1024xf32> to vector<56x128xf32>
    %181 = vector.extract_strided_slice %177 {offsets = [0, 384], sizes = [56, 128], strides = [1, 1]} : vector<56x1024xf32> to vector<56x128xf32>
    %182 = vector.extract_strided_slice %177 {offsets = [0, 512], sizes = [56, 128], strides = [1, 1]} : vector<56x1024xf32> to vector<56x128xf32>
    %183 = vector.extract_strided_slice %177 {offsets = [0, 640], sizes = [56, 128], strides = [1, 1]} : vector<56x1024xf32> to vector<56x128xf32>
    %184 = vector.extract_strided_slice %177 {offsets = [0, 768], sizes = [56, 128], strides = [1, 1]} : vector<56x1024xf32> to vector<56x128xf32>
    %185 = vector.extract_strided_slice %177 {offsets = [0, 896], sizes = [56, 128], strides = [1, 1]} : vector<56x1024xf32> to vector<56x128xf32>
    %186 = arith.addf %178, %179 : vector<56x128xf32>
    %187 = arith.addf %180, %181 : vector<56x128xf32>
    %188 = arith.addf %182, %183 : vector<56x128xf32>
    %189 = arith.addf %184, %185 : vector<56x128xf32>
    %190 = arith.addf %186, %187 : vector<56x128xf32>
    %191 = arith.addf %188, %189 : vector<56x128xf32>
    %192 = arith.addf %190, %191 : vector<56x128xf32>
    %cst_39 = arith.constant dense<0.000000e+00> : vector<128xf32>
    %193 = vector.multi_reduction <add>, %192, %cst_39 [0] : vector<56x128xf32> to vector<128xf32>
    %194 = vector.shape_cast %193 : vector<128xf32> to vector<1x128xf32>
    %c1_40 = arith.constant 1 : index
    %c0_41 = arith.constant 0 : index
    %c0_42 = arith.constant 0 : index
    %195 = vector.load %arg4[%c1_40, %c0_41, %c0_42] : memref<4x56x1024xf32, #tpu.memory_space<vmem>>, vector<1x56x1024xf32>
    %196 = vector.shape_cast %195 : vector<1x56x1024xf32> to vector<56x1024xf32>
    %197 = arith.mulf %174, %196 : vector<56x1024xf32>
    %198 = vector.extract_strided_slice %197 {offsets = [0, 0], sizes = [56, 128], strides = [1, 1]} : vector<56x1024xf32> to vector<56x128xf32>
    %199 = vector.extract_strided_slice %197 {offsets = [0, 128], sizes = [56, 128], strides = [1, 1]} : vector<56x1024xf32> to vector<56x128xf32>
    %200 = vector.extract_strided_slice %197 {offsets = [0, 256], sizes = [56, 128], strides = [1, 1]} : vector<56x1024xf32> to vector<56x128xf32>
    %201 = vector.extract_strided_slice %197 {offsets = [0, 384], sizes = [56, 128], strides = [1, 1]} : vector<56x1024xf32> to vector<56x128xf32>
    %202 = vector.extract_strided_slice %197 {offsets = [0, 512], sizes = [56, 128], strides = [1, 1]} : vector<56x1024xf32> to vector<56x128xf32>
    %203 = vector.extract_strided_slice %197 {offsets = [0, 640], sizes = [56, 128], strides = [1, 1]} : vector<56x1024xf32> to vector<56x128xf32>
    %204 = vector.extract_strided_slice %197 {offsets = [0, 768], sizes = [56, 128], strides = [1, 1]} : vector<56x1024xf32> to vector<56x128xf32>
    %205 = vector.extract_strided_slice %197 {offsets = [0, 896], sizes = [56, 128], strides = [1, 1]} : vector<56x1024xf32> to vector<56x128xf32>
    %206 = arith.addf %198, %199 : vector<56x128xf32>
    %207 = arith.addf %200, %201 : vector<56x128xf32>
    %208 = arith.addf %202, %203 : vector<56x128xf32>
    %209 = arith.addf %204, %205 : vector<56x128xf32>
    %210 = arith.addf %206, %207 : vector<56x128xf32>
    %211 = arith.addf %208, %209 : vector<56x128xf32>
    %212 = arith.addf %210, %211 : vector<56x128xf32>
    %cst_43 = arith.constant dense<0.000000e+00> : vector<128xf32>
    %213 = vector.multi_reduction <add>, %212, %cst_43 [0] : vector<56x128xf32> to vector<128xf32>
    %214 = vector.shape_cast %213 : vector<128xf32> to vector<1x128xf32>
    %c2_44 = arith.constant 2 : index
    %c0_45 = arith.constant 0 : index
    %c0_46 = arith.constant 0 : index
    %215 = vector.load %arg4[%c2_44, %c0_45, %c0_46] : memref<4x56x1024xf32, #tpu.memory_space<vmem>>, vector<1x56x1024xf32>
    %216 = vector.shape_cast %215 : vector<1x56x1024xf32> to vector<56x1024xf32>
    %217 = arith.mulf %174, %216 : vector<56x1024xf32>
    %218 = vector.extract_strided_slice %217 {offsets = [0, 0], sizes = [56, 128], strides = [1, 1]} : vector<56x1024xf32> to vector<56x128xf32>
    %219 = vector.extract_strided_slice %217 {offsets = [0, 128], sizes = [56, 128], strides = [1, 1]} : vector<56x1024xf32> to vector<56x128xf32>
    %220 = vector.extract_strided_slice %217 {offsets = [0, 256], sizes = [56, 128], strides = [1, 1]} : vector<56x1024xf32> to vector<56x128xf32>
    %221 = vector.extract_strided_slice %217 {offsets = [0, 384], sizes = [56, 128], strides = [1, 1]} : vector<56x1024xf32> to vector<56x128xf32>
    %222 = vector.extract_strided_slice %217 {offsets = [0, 512], sizes = [56, 128], strides = [1, 1]} : vector<56x1024xf32> to vector<56x128xf32>
    %223 = vector.extract_strided_slice %217 {offsets = [0, 640], sizes = [56, 128], strides = [1, 1]} : vector<56x1024xf32> to vector<56x128xf32>
    %224 = vector.extract_strided_slice %217 {offsets = [0, 768], sizes = [56, 128], strides = [1, 1]} : vector<56x1024xf32> to vector<56x128xf32>
    %225 = vector.extract_strided_slice %217 {offsets = [0, 896], sizes = [56, 128], strides = [1, 1]} : vector<56x1024xf32> to vector<56x128xf32>
    %226 = arith.addf %218, %219 : vector<56x128xf32>
    %227 = arith.addf %220, %221 : vector<56x128xf32>
    %228 = arith.addf %222, %223 : vector<56x128xf32>
    %229 = arith.addf %224, %225 : vector<56x128xf32>
    %230 = arith.addf %226, %227 : vector<56x128xf32>
    %231 = arith.addf %228, %229 : vector<56x128xf32>
    %232 = arith.addf %230, %231 : vector<56x128xf32>
    %cst_47 = arith.constant dense<0.000000e+00> : vector<128xf32>
    %233 = vector.multi_reduction <add>, %232, %cst_47 [0] : vector<56x128xf32> to vector<128xf32>
    %234 = vector.shape_cast %233 : vector<128xf32> to vector<1x128xf32>
    %c3_48 = arith.constant 3 : index
    %c0_49 = arith.constant 0 : index
    %c0_50 = arith.constant 0 : index
    %235 = vector.load %arg4[%c3_48, %c0_49, %c0_50] : memref<4x56x1024xf32, #tpu.memory_space<vmem>>, vector<1x56x1024xf32>
    %236 = vector.shape_cast %235 : vector<1x56x1024xf32> to vector<56x1024xf32>
    %237 = arith.mulf %174, %236 : vector<56x1024xf32>
    %238 = vector.extract_strided_slice %237 {offsets = [0, 0], sizes = [56, 128], strides = [1, 1]} : vector<56x1024xf32> to vector<56x128xf32>
    %239 = vector.extract_strided_slice %237 {offsets = [0, 128], sizes = [56, 128], strides = [1, 1]} : vector<56x1024xf32> to vector<56x128xf32>
    %240 = vector.extract_strided_slice %237 {offsets = [0, 256], sizes = [56, 128], strides = [1, 1]} : vector<56x1024xf32> to vector<56x128xf32>
    %241 = vector.extract_strided_slice %237 {offsets = [0, 384], sizes = [56, 128], strides = [1, 1]} : vector<56x1024xf32> to vector<56x128xf32>
    %242 = vector.extract_strided_slice %237 {offsets = [0, 512], sizes = [56, 128], strides = [1, 1]} : vector<56x1024xf32> to vector<56x128xf32>
    %243 = vector.extract_strided_slice %237 {offsets = [0, 640], sizes = [56, 128], strides = [1, 1]} : vector<56x1024xf32> to vector<56x128xf32>
    %244 = vector.extract_strided_slice %237 {offsets = [0, 768], sizes = [56, 128], strides = [1, 1]} : vector<56x1024xf32> to vector<56x128xf32>
    %245 = vector.extract_strided_slice %237 {offsets = [0, 896], sizes = [56, 128], strides = [1, 1]} : vector<56x1024xf32> to vector<56x128xf32>
    %246 = arith.addf %238, %239 : vector<56x128xf32>
    %247 = arith.addf %240, %241 : vector<56x128xf32>
    %248 = arith.addf %242, %243 : vector<56x128xf32>
    %249 = arith.addf %244, %245 : vector<56x128xf32>
    %250 = arith.addf %246, %247 : vector<56x128xf32>
    %251 = arith.addf %248, %249 : vector<56x128xf32>
    %252 = arith.addf %250, %251 : vector<56x128xf32>
    %cst_51 = arith.constant dense<0.000000e+00> : vector<128xf32>
    %253 = vector.multi_reduction <add>, %252, %cst_51 [0] : vector<56x128xf32> to vector<128xf32>
    %254 = vector.shape_cast %253 : vector<128xf32> to vector<1x128xf32>
    %255 = tpu.concatenate %194, %214, %234, %254 in 1 : vector<1x128xf32>, vector<1x128xf32>, vector<1x128xf32>, vector<1x128xf32> -> vector<1x512xf32>
    %256 = vector.extract_strided_slice %9 {offsets = [168, 0], sizes = [56, 1024], strides = [1, 1]} : vector<224x1024xf32> to vector<56x1024xf32>
    %c0_52 = arith.constant 0 : index
    %c0_53 = arith.constant 0 : index
    %c0_54 = arith.constant 0 : index
    %257 = vector.load %arg4[%c0_52, %c0_53, %c0_54] : memref<4x56x1024xf32, #tpu.memory_space<vmem>>, vector<1x56x1024xf32>
    %258 = vector.shape_cast %257 : vector<1x56x1024xf32> to vector<56x1024xf32>
    %259 = arith.mulf %256, %258 : vector<56x1024xf32>
    %260 = vector.extract_strided_slice %259 {offsets = [0, 0], sizes = [56, 128], strides = [1, 1]} : vector<56x1024xf32> to vector<56x128xf32>
    %261 = vector.extract_strided_slice %259 {offsets = [0, 128], sizes = [56, 128], strides = [1, 1]} : vector<56x1024xf32> to vector<56x128xf32>
    %262 = vector.extract_strided_slice %259 {offsets = [0, 256], sizes = [56, 128], strides = [1, 1]} : vector<56x1024xf32> to vector<56x128xf32>
    %263 = vector.extract_strided_slice %259 {offsets = [0, 384], sizes = [56, 128], strides = [1, 1]} : vector<56x1024xf32> to vector<56x128xf32>
    %264 = vector.extract_strided_slice %259 {offsets = [0, 512], sizes = [56, 128], strides = [1, 1]} : vector<56x1024xf32> to vector<56x128xf32>
    %265 = vector.extract_strided_slice %259 {offsets = [0, 640], sizes = [56, 128], strides = [1, 1]} : vector<56x1024xf32> to vector<56x128xf32>
    %266 = vector.extract_strided_slice %259 {offsets = [0, 768], sizes = [56, 128], strides = [1, 1]} : vector<56x1024xf32> to vector<56x128xf32>
    %267 = vector.extract_strided_slice %259 {offsets = [0, 896], sizes = [56, 128], strides = [1, 1]} : vector<56x1024xf32> to vector<56x128xf32>
    %268 = arith.addf %260, %261 : vector<56x128xf32>
    %269 = arith.addf %262, %263 : vector<56x128xf32>
    %270 = arith.addf %264, %265 : vector<56x128xf32>
    %271 = arith.addf %266, %267 : vector<56x128xf32>
    %272 = arith.addf %268, %269 : vector<56x128xf32>
    %273 = arith.addf %270, %271 : vector<56x128xf32>
    %274 = arith.addf %272, %273 : vector<56x128xf32>
    %cst_55 = arith.constant dense<0.000000e+00> : vector<128xf32>
    %275 = vector.multi_reduction <add>, %274, %cst_55 [0] : vector<56x128xf32> to vector<128xf32>
    %276 = vector.shape_cast %275 : vector<128xf32> to vector<1x128xf32>
    %c1_56 = arith.constant 1 : index
    %c0_57 = arith.constant 0 : index
    %c0_58 = arith.constant 0 : index
    %277 = vector.load %arg4[%c1_56, %c0_57, %c0_58] : memref<4x56x1024xf32, #tpu.memory_space<vmem>>, vector<1x56x1024xf32>
    %278 = vector.shape_cast %277 : vector<1x56x1024xf32> to vector<56x1024xf32>
    %279 = arith.mulf %256, %278 : vector<56x1024xf32>
    %280 = vector.extract_strided_slice %279 {offsets = [0, 0], sizes = [56, 128], strides = [1, 1]} : vector<56x1024xf32> to vector<56x128xf32>
    %281 = vector.extract_strided_slice %279 {offsets = [0, 128], sizes = [56, 128], strides = [1, 1]} : vector<56x1024xf32> to vector<56x128xf32>
    %282 = vector.extract_strided_slice %279 {offsets = [0, 256], sizes = [56, 128], strides = [1, 1]} : vector<56x1024xf32> to vector<56x128xf32>
    %283 = vector.extract_strided_slice %279 {offsets = [0, 384], sizes = [56, 128], strides = [1, 1]} : vector<56x1024xf32> to vector<56x128xf32>
    %284 = vector.extract_strided_slice %279 {offsets = [0, 512], sizes = [56, 128], strides = [1, 1]} : vector<56x1024xf32> to vector<56x128xf32>
    %285 = vector.extract_strided_slice %279 {offsets = [0, 640], sizes = [56, 128], strides = [1, 1]} : vector<56x1024xf32> to vector<56x128xf32>
    %286 = vector.extract_strided_slice %279 {offsets = [0, 768], sizes = [56, 128], strides = [1, 1]} : vector<56x1024xf32> to vector<56x128xf32>
    %287 = vector.extract_strided_slice %279 {offsets = [0, 896], sizes = [56, 128], strides = [1, 1]} : vector<56x1024xf32> to vector<56x128xf32>
    %288 = arith.addf %280, %281 : vector<56x128xf32>
    %289 = arith.addf %282, %283 : vector<56x128xf32>
    %290 = arith.addf %284, %285 : vector<56x128xf32>
    %291 = arith.addf %286, %287 : vector<56x128xf32>
    %292 = arith.addf %288, %289 : vector<56x128xf32>
    %293 = arith.addf %290, %291 : vector<56x128xf32>
    %294 = arith.addf %292, %293 : vector<56x128xf32>
    %cst_59 = arith.constant dense<0.000000e+00> : vector<128xf32>
    %295 = vector.multi_reduction <add>, %294, %cst_59 [0] : vector<56x128xf32> to vector<128xf32>
    %296 = vector.shape_cast %295 : vector<128xf32> to vector<1x128xf32>
    %c2_60 = arith.constant 2 : index
    %c0_61 = arith.constant 0 : index
    %c0_62 = arith.constant 0 : index
    %297 = vector.load %arg4[%c2_60, %c0_61, %c0_62] : memref<4x56x1024xf32, #tpu.memory_space<vmem>>, vector<1x56x1024xf32>
    %298 = vector.shape_cast %297 : vector<1x56x1024xf32> to vector<56x1024xf32>
    %299 = arith.mulf %256, %298 : vector<56x1024xf32>
    %300 = vector.extract_strided_slice %299 {offsets = [0, 0], sizes = [56, 128], strides = [1, 1]} : vector<56x1024xf32> to vector<56x128xf32>
    %301 = vector.extract_strided_slice %299 {offsets = [0, 128], sizes = [56, 128], strides = [1, 1]} : vector<56x1024xf32> to vector<56x128xf32>
    %302 = vector.extract_strided_slice %299 {offsets = [0, 256], sizes = [56, 128], strides = [1, 1]} : vector<56x1024xf32> to vector<56x128xf32>
    %303 = vector.extract_strided_slice %299 {offsets = [0, 384], sizes = [56, 128], strides = [1, 1]} : vector<56x1024xf32> to vector<56x128xf32>
    %304 = vector.extract_strided_slice %299 {offsets = [0, 512], sizes = [56, 128], strides = [1, 1]} : vector<56x1024xf32> to vector<56x128xf32>
    %305 = vector.extract_strided_slice %299 {offsets = [0, 640], sizes = [56, 128], strides = [1, 1]} : vector<56x1024xf32> to vector<56x128xf32>
    %306 = vector.extract_strided_slice %299 {offsets = [0, 768], sizes = [56, 128], strides = [1, 1]} : vector<56x1024xf32> to vector<56x128xf32>
    %307 = vector.extract_strided_slice %299 {offsets = [0, 896], sizes = [56, 128], strides = [1, 1]} : vector<56x1024xf32> to vector<56x128xf32>
    %308 = arith.addf %300, %301 : vector<56x128xf32>
    %309 = arith.addf %302, %303 : vector<56x128xf32>
    %310 = arith.addf %304, %305 : vector<56x128xf32>
    %311 = arith.addf %306, %307 : vector<56x128xf32>
    %312 = arith.addf %308, %309 : vector<56x128xf32>
    %313 = arith.addf %310, %311 : vector<56x128xf32>
    %314 = arith.addf %312, %313 : vector<56x128xf32>
    %cst_63 = arith.constant dense<0.000000e+00> : vector<128xf32>
    %315 = vector.multi_reduction <add>, %314, %cst_63 [0] : vector<56x128xf32> to vector<128xf32>
    %316 = vector.shape_cast %315 : vector<128xf32> to vector<1x128xf32>
    %c3_64 = arith.constant 3 : index
    %c0_65 = arith.constant 0 : index
    %c0_66 = arith.constant 0 : index
    %317 = vector.load %arg4[%c3_64, %c0_65, %c0_66] : memref<4x56x1024xf32, #tpu.memory_space<vmem>>, vector<1x56x1024xf32>
    %318 = vector.shape_cast %317 : vector<1x56x1024xf32> to vector<56x1024xf32>
    %319 = arith.mulf %256, %318 : vector<56x1024xf32>
    %320 = vector.extract_strided_slice %319 {offsets = [0, 0], sizes = [56, 128], strides = [1, 1]} : vector<56x1024xf32> to vector<56x128xf32>
    %321 = vector.extract_strided_slice %319 {offsets = [0, 128], sizes = [56, 128], strides = [1, 1]} : vector<56x1024xf32> to vector<56x128xf32>
    %322 = vector.extract_strided_slice %319 {offsets = [0, 256], sizes = [56, 128], strides = [1, 1]} : vector<56x1024xf32> to vector<56x128xf32>
    %323 = vector.extract_strided_slice %319 {offsets = [0, 384], sizes = [56, 128], strides = [1, 1]} : vector<56x1024xf32> to vector<56x128xf32>
    %324 = vector.extract_strided_slice %319 {offsets = [0, 512], sizes = [56, 128], strides = [1, 1]} : vector<56x1024xf32> to vector<56x128xf32>
    %325 = vector.extract_strided_slice %319 {offsets = [0, 640], sizes = [56, 128], strides = [1, 1]} : vector<56x1024xf32> to vector<56x128xf32>
    %326 = vector.extract_strided_slice %319 {offsets = [0, 768], sizes = [56, 128], strides = [1, 1]} : vector<56x1024xf32> to vector<56x128xf32>
    %327 = vector.extract_strided_slice %319 {offsets = [0, 896], sizes = [56, 128], strides = [1, 1]} : vector<56x1024xf32> to vector<56x128xf32>
    %328 = arith.addf %320, %321 : vector<56x128xf32>
    %329 = arith.addf %322, %323 : vector<56x128xf32>
    %330 = arith.addf %324, %325 : vector<56x128xf32>
    %331 = arith.addf %326, %327 : vector<56x128xf32>
    %332 = arith.addf %328, %329 : vector<56x128xf32>
    %333 = arith.addf %330, %331 : vector<56x128xf32>
    %334 = arith.addf %332, %333 : vector<56x128xf32>
    %cst_67 = arith.constant dense<0.000000e+00> : vector<128xf32>
    %335 = vector.multi_reduction <add>, %334, %cst_67 [0] : vector<56x128xf32> to vector<128xf32>
    %336 = vector.shape_cast %335 : vector<128xf32> to vector<1x128xf32>
    %337 = tpu.concatenate %276, %296, %316, %336 in 1 : vector<1x128xf32>, vector<1x128xf32>, vector<1x128xf32>, vector<1x128xf32> -> vector<1x512xf32>
    %338 = tpu.concatenate %91, %173, %255, %337 in 0 : vector<1x512xf32>, vector<1x512xf32>, vector<1x512xf32>, vector<1x512xf32> -> vector<4x512xf32>
    %c0_68 = arith.constant 0 : index
    %c0_69 = arith.constant 0 : index
    %339 = vector.load %arg5[%c0_68, %c0_69] : memref<512x512xf32, #tpu.memory_space<vmem>>, vector<512x512xf32>
    %cst_70 = arith.constant dense<0.000000e+00> : vector<4x512xf32>
    %340 = tpu.matmul %338, %339, %cst_70 {dimension_numbers = #tpu.dot_dimension_numbers<[1], [0], [0], [1], [0, 0, 1, 1], [], []>} : vector<4x512xf32>, vector<512x512xf32>, vector<4x512xf32> -> vector<4x512xf32>
    %c0_71 = arith.constant 0 : index
    %c0_72 = arith.constant 0 : index
    %341 = vector.load %arg6[%c0_71, %c0_72] : memref<1x512xf32, #tpu.memory_space<vmem>>, vector<1x512xf32>
    %342 = vector.broadcast %341 : vector<1x512xf32> to vector<4x512xf32>
    %343 = arith.addf %340, %342 : vector<4x512xf32>
    %c0_73 = arith.constant 0 : index
    %c0_74 = arith.constant 0 : index
    %c0_75 = arith.constant 0 : index
    %344 = vector.load %arg7[%c0_73, %c0_74, %c0_75] : memref<1x4x512xf32, #tpu.memory_space<vmem>>, vector<1x4x512xf32>
    %345 = vector.shape_cast %344 : vector<1x4x512xf32> to vector<4x512xf32>
    %346 = vector.shape_cast %343 : vector<4x512xf32> to vector<1x4x512xf32>
    tpu.vector_store %arg7[%c0_73, %c0_74, %c0_75], %346 {strides = array<i32>} : memref<1x4x512xf32, #tpu.memory_space<vmem>>, vector<1x4x512xf32>,
    return
  }
  func.func @transform_0(%arg0: i32) -> (i32, i32) {
    %c0_i32 = arith.constant 0 : i32
    %c0_i32_0 = arith.constant 0 : i32
    return %arg0, %c0_i32 : i32, i32
  }
  func.func @transform_1(%arg0: i32) -> (i32, i32) {
    %c0_i32 = arith.constant 0 : i32
    %c0_i32_0 = arith.constant 0 : i32
    %c0_i32_1 = arith.constant 0 : i32
    return %c0_i32, %c0_i32_0 : i32, i32
  }
  func.func @transform_2(%arg0: i32) -> (i32, i32) {
    %c0_i32 = arith.constant 0 : i32
    %c0_i32_0 = arith.constant 0 : i32
    %c0_i32_1 = arith.constant 0 : i32
    return %c0_i32, %c0_i32_0 : i32, i32
  }
  func.func @transform_3(%arg0: i32) -> (i32, i32, i32) {
    %c0_i32 = arith.constant 0 : i32
    %c0_i32_0 = arith.constant 0 : i32
    %c0_i32_1 = arith.constant 0 : i32
    %c0_i32_2 = arith.constant 0 : i32
    return %c0_i32, %c0_i32_0, %c0_i32_1 : i32, i32, i32
  }
  func.func @transform_4(%arg0: i32) -> (i32, i32) {
    %c0_i32 = arith.constant 0 : i32
    %c0_i32_0 = arith.constant 0 : i32
    %c0_i32_1 = arith.constant 0 : i32
    return %c0_i32, %c0_i32_0 : i32, i32
  }
  func.func @transform_5(%arg0: i32) -> (i32, i32) {
    %c0_i32 = arith.constant 0 : i32
    %c0_i32_0 = arith.constant 0 : i32
    %c0_i32_1 = arith.constant 0 : i32
    return %c0_i32, %c0_i32_0 : i32, i32
  }
  func.func @transform_6(%arg0: i32) -> (i32, i32, i32) {
    %c0_i32 = arith.constant 0 : i32
    %c0_i32_0 = arith.constant 0 : i32
    %c0_i32_1 = arith.constant 0 : i32
    return %arg0, %c0_i32, %c0_i32_0 : i32, i32, i32
  }
}

</mosaic_0001>

<llo_original>
// kernel: tail_embedding_forward.1
$region0: #{tail_embedding_forward.1}
  #allocation0 [shape = 'u32[]', space=smem, size = 0x4, offset = 0x4, fixed_abs, tag = 'smem constant byte address 0x4 - core index']
  #allocation1 [shape = 'u32[72,128]{1,0:T(1,128)}', space=vmem, size = 0x9000, scoped, tag = 'internal scratch']
  %s0 = inlined_call_operand.vmem [shape: bf16[448,64], index: 0, kind: input, shape index: {}]
  %s1 = inlined_call_operand.vmem [shape: bf16[64,1024], index: 1, kind: input, shape index: {}]
  %s2 = inlined_call_operand.vmem [shape: f32[1,1024], index: 2, kind: input, shape index: {}]
  %s3 = inlined_call_operand.hbm [shape: f32[4,56,1024], index: 3, kind: input, shape index: {}]
  %s4 = inlined_call_operand.hbm [shape: f32[512,512], index: 4, kind: input, shape index: {}]
  %s5 = inlined_call_operand.vmem [shape: f32[1,512], index: 5, kind: input, shape index: {}]
  %s6 = inlined_call_operand.vmem [shape: f32[2,4,512], index: 6, kind: output, shape index: {}]
  %s7 = sld [smem:[#allocation0]]
  $region65: #{tail_embedding_forward.1} parent=0
    _
  %s9 = ssub.s32 1, %s7
  %s10 = scalar_select 0, %s9, %s7
  $region1: #{tail_embedding_forward.1} parent=0
    #allocation2 [shape = 'u8[917504]{0}', space=vmem, size = 0xe0000, scoped, tag = 'input window, operand 3, single buffered']
    #allocation3 [shape = 's32[2]{0}', space=sflag, size = 0x8, scoped, tag = 'scoped memory for tail_embedding_forward.1']
    #allocation4 [shape = 'u8[1048576]{0}', space=vmem, size = 0x100000, scoped, tag = 'input window, operand 4, single buffered']
    #allocation5 [shape = 's32[1]{0}', space=sflag, size = 0x4, scoped, tag = 'scoped memory for tail_embedding_forward.1']
    %11 = vsyncpa [#allocation3], 0
    %12 = vsyncpa [#allocation5], 0
    loop: start=0, step=1, limit=4
    $region2: #{tail_embedding_forward.1} parent=1 // loop_pre_header
      _
    $region3: #{tail_embedding_forward.1} parent=1 // loop_header
      %s14 = sphi 0, %s18
      %p15 = scmp.ge.s32.totalorder %s14, 4
      %s24 = sphi 0, %s26
      %s27 = sphi 0, %s24
      %s28 = sphi 0, %s27
      %s44 = sphi 0, %s28
      %s48 = sphi 0, %s48
      %s50 = sphi 0, %s48
      %s51 = sphi 0, %s50
      %s65 = sphi 0, %s51
      %s69 = sphi 0, %s69
      %s71 = sphi 0, %s69
      %s72 = sphi 0, %s71
      %s86 = sphi 0, %s72
      %s90 = sphi 0, %s90
      %s92 = sphi 0, %s90
      %s93 = sphi 0, %s92
      %s107 = sphi 0, %s93
      %s111 = sphi 0, %s111
      %s113 = sphi 0, %s111
      %s114 = sphi 0, %s113
      %s128 = sphi 0, %s114
      %s132 = sphi 0, %s132
      %s134 = sphi 0, %s132
      %s135 = sphi 0, %s134
      %s149 = sphi 0, %s135
      %s155 = sphi 0, %s157
      %s158 = sphi 0, %s155
      %s159 = sphi 0, %s158
      %s175 = sphi 0, %s159
    $region4: #{tail_embedding_forward.1} parent=1 // loop_header_branch
      %17 = sbr.rel (%p15) target = $region8
    $region5: #{tail_embedding_forward.1} parent=1 // loop_body
      %s19 = ssub.s32 %s14, 1
      %s20 = ssub.s32 %s14, 2
      %s21 = sadd.s32 %s14, 1
      %s22 = ssub.s32 %s14, %s21
      %p23 = scmp.eq.s32.totalorder %s22, 0
      %s25 = sadd.s32 %s24, 1
      %s26 = scalar_select %p23, %s24, %s25
      %p29 = pneg %p23
      %p30 = scmp.eq.s32.totalorder %s14, 1
      %p31 = por %p29, %p30
      %p32 = scmp.ne.s32.totalorder %s24, %s27
      %p33 = scmp.eq.s32.totalorder %s14, 0
      %p34 = por %p32, %p33
      %p35 = scmp.ne.s32.totalorder %s24, %s27
      %p36 = scmp.eq.s32.totalorder %s19, 1
      %p37 = por %p35, %p36
      %p38 = scmp.ne.s32.totalorder %s27, %s28
      %p39 = scmp.eq.s32.totalorder %s19, 0
      %p40 = por %p38, %p39
      %p41 = scmp.ne.s32.totalorder %s27, %s28
      %p42 = scmp.eq.s32.totalorder %s20, 1
      %p43 = por %p41, %p42
      %p45 = scmp.ne.s32.totalorder %s28, %s44
      %p46 = scmp.eq.s32.totalorder %s20, 0
      %p47 = por %p45, %p46
      %s49 = sadd.s32 %s48, 1
      %p52 = scmp.eq.s32.totalorder %s14, 1
      %p53 = scmp.ne.s32.totalorder %s48, %s50
      %p54 = scmp.eq.s32.totalorder %s14, 0
      %p55 = por %p53, %p54
      %p56 = scmp.ne.s32.totalorder %s48, %s50
      %p57 = scmp.eq.s32.totalorder %s19, 1
      %p58 = por %p56, %p57
      %p59 = scmp.ne.s32.totalorder %s50, %s51
      %p60 = scmp.eq.s32.totalorder %s19, 0
      %p61 = por %p59, %p60
      %p62 = scmp.ne.s32.totalorder %s50, %s51
      %p63 = scmp.eq.s32.totalorder %s20, 1
      %p64 = por %p62, %p63
      %p66 = scmp.ne.s32.totalorder %s51, %s65
      %p67 = scmp.eq.s32.totalorder %s20, 0
      %p68 = por %p66, %p67
      %s70 = sadd.s32 %s69, 1
      %p73 = scmp.eq.s32.totalorder %s14, 1
      %p74 = scmp.ne.s32.totalorder %s69, %s71
      %p75 = scmp.eq.s32.totalorder %s14, 0
      %p76 = por %p74, %p75
      %p77 = scmp.ne.s32.totalorder %s69, %s71
      %p78 = scmp.eq.s32.totalorder %s19, 1
      %p79 = por %p77, %p78
      %p80 = scmp.ne.s32.totalorder %s71, %s72
      %p81 = scmp.eq.s32.totalorder %s19, 0
      %p82 = por %p80, %p81
      %p83 = scmp.ne.s32.totalorder %s71, %s72
      %p84 = scmp.eq.s32.totalorder %s20, 1
      %p85 = por %p83, %p84
      %p87 = scmp.ne.s32.totalorder %s72, %s86
      %p88 = scmp.eq.s32.totalorder %s20, 0
      %p89 = por %p87, %p88
      %s91 = sadd.s32 %s90, 1
      %p94 = scmp.eq.s32.totalorder %s14, 1
      %p95 = scmp.ne.s32.totalorder %s90, %s92
      %p96 = scmp.eq.s32.totalorder %s14, 0
      %p97 = por %p95, %p96
      %p98 = scmp.ne.s32.totalorder %s90, %s92
      %p99 = scmp.eq.s32.totalorder %s19, 1
      %p100 = por %p98, %p99
      %p101 = scmp.ne.s32.totalorder %s92, %s93
      %p102 = scmp.eq.s32.totalorder %s19, 0
      %p103 = por %p101, %p102
      %p104 = scmp.ne.s32.totalorder %s92, %s93
      %p105 = scmp.eq.s32.totalorder %s20, 1
      %p106 = por %p104, %p105
      %p108 = scmp.ne.s32.totalorder %s93, %s107
      %p109 = scmp.eq.s32.totalorder %s20, 0
      %p110 = por %p108, %p109
      %s112 = sadd.s32 %s111, 1
      %p115 = scmp.eq.s32.totalorder %s14, 1
      %p116 = scmp.ne.s32.totalorder %s111, %s113
      %p117 = scmp.eq.s32.totalorder %s14, 0
      %p118 = por %p116, %p117
      %p119 = scmp.ne.s32.totalorder %s111, %s113
      %p120 = scmp.eq.s32.totalorder %s19, 1
      %p121 = por %p119, %p120
      %p122 = scmp.ne.s32.totalorder %s113, %s114
      %p123 = scmp.eq.s32.totalorder %s19, 0
      %p124 = por %p122, %p123
      %p125 = scmp.ne.s32.totalorder %s113, %s114
      %p126 = scmp.eq.s32.totalorder %s20, 1
      %p127 = por %p125, %p126
      %p129 = scmp.ne.s32.totalorder %s114, %s128
      %p130 = scmp.eq.s32.totalorder %s20, 0
      %p131 = por %p129, %p130
      %s133 = sadd.s32 %s132, 1
      %p136 = scmp.eq.s32.totalorder %s14, 1
      %p137 = scmp.ne.s32.totalorder %s132, %s134
      %p138 = scmp.eq.s32.totalorder %s14, 0
      %p139 = por %p137, %p138
      %p140 = scmp.ne.s32.totalorder %s132, %s134
      %p141 = scmp.eq.s32.totalorder %s19, 1
      %p142 = por %p140, %p141
      %p143 = scmp.ne.s32.totalorder %s134, %s135
      %p144 = scmp.eq.s32.totalorder %s19, 0
      %p145 = por %p143, %p144
      %p146 = scmp.ne.s32.totalorder %s134, %s135
      %p147 = scmp.eq.s32.totalorder %s20, 1
      %p148 = por %p146, %p147
      %p150 = scmp.ne.s32.totalorder %s135, %s149
      %p151 = scmp.eq.s32.totalorder %s20, 0
      %p152 = por %p150, %p151
      %s153 = ssub.s32 %s14, %s21
      %p154 = scmp.eq.s32.totalorder %s153, 0
      %s156 = sadd.s32 %s155, 1
      %s157 = scalar_select %p154, %s155, %s156
      %p160 = pneg %p154
      %p161 = scmp.eq.s32.totalorder %s14, 1
      %p162 = por %p160, %p161
      %p163 = scmp.ne.s32.totalorder %s155, %s158
      %p164 = scmp.eq.s32.totalorder %s14, 0
      %p165 = por %p163, %p164
      %p166 = scmp.ne.s32.totalorder %s155, %s158
      %p167 = scmp.eq.s32.totalorder %s19, 1
      %p168 = por %p166, %p167
      %p169 = scmp.ne.s32.totalorder %s158, %s159
      %p170 = scmp.eq.s32.totalorder %s19, 0
      %p171 = por %p169, %p170
      %p172 = scmp.ne.s32.totalorder %s158, %s159
      %p173 = scmp.eq.s32.totalorder %s20, 1
      %p174 = por %p172, %p173
      %p176 = scmp.ne.s32.totalorder %s159, %s175
      %p177 = scmp.eq.s32.totalorder %s20, 0
      %p178 = por %p176, %p177
      %p179 = scmp.le.s32.totalorder 1, %s14
      %p180 = scmp.lt.s32.totalorder %s14, 3
      %p181 = pnand %p179, %p180
      %p182 = pneg %p181
      // Predicated region
      $region9: #{tail_embedding_forward.1} parent=5 // pred_check
        _
      $region10: #{tail_embedding_forward.1} parent=5 // pred_check_branch
        %184 = sbr.rel (%p181) target = $region12
      $region11: #{tail_embedding_forward.1} parent=5 // pred_region
        %s185 = ssub.s32 %s14, 1
        // Predicated region
        $region13: #{tail_embedding_forward.1} parent=11 // pred_check
          %p186 = pneg %p61
        $region14: #{tail_embedding_forward.1} parent=11 // pred_check_branch
          %188 = sbr.rel (%p186) target = $region16
        $region15: #{tail_embedding_forward.1} parent=11 // pred_region
          _
        $region16: #{tail_embedding_forward.1} parent=11 // pred_fallthru
          _
        // Predicated region
        $region17: #{tail_embedding_forward.1} parent=11 // pred_check
          %p189 = pneg %p82
        $region18: #{tail_embedding_forward.1} parent=11 // pred_check_branch
          %191 = sbr.rel (%p189) target = $region20
        $region19: #{tail_embedding_forward.1} parent=11 // pred_region
          _
        $region20: #{tail_embedding_forward.1} parent=11 // pred_fallthru
          _
        // Predicated region
        $region21: #{tail_embedding_forward.1} parent=11 // pred_check
          %p192 = pneg %p103
        $region22: #{tail_embedding_forward.1} parent=11 // pred_check_branch
          %194 = sbr.rel (%p192) target = $region24
        $region23: #{tail_embedding_forward.1} parent=11 // pred_region
          %196 = vsyncadd [#allocation3], 0
          %s197 = sshll.u32 %s3, 4
          %s198 = int_to_ptr.hbm [resolvable:$true] %s197
          %s199 = sshll.u32 [#allocation2], 4
          %s200 = int_to_ptr.vmem [resolvable:$true] %s199
          %205 = dma.hbm_to_vmem [thread:$0]  %s198, 28672, %s200, [#allocation3], 1024, 1024, 64
        $region24: #{tail_embedding_forward.1} parent=11 // pred_fallthru
          _
        // Predicated region
        $region25: #{tail_embedding_forward.1} parent=11 // pred_check
          %p206 = pneg %p124
        $region26: #{tail_embedding_forward.1} parent=11 // pred_check_branch
          %208 = sbr.rel (%p206) target = $region28
        $region27: #{tail_embedding_forward.1} parent=11 // pred_region
          %210 = vsyncadd [#allocation5], 0
          %s211 = sshll.u32 %s4, 4
          %s212 = int_to_ptr.hbm [resolvable:$true] %s211
          %s213 = sshll.u32 [#allocation4], 4
          %s214 = int_to_ptr.vmem [resolvable:$true] %s213
          %219 = dma.hbm_to_vmem [thread:$0]  %s212, 32768, %s214, [#allocation5], 512, 512, 32
        $region28: #{tail_embedding_forward.1} parent=11 // pred_fallthru
          _
        // Predicated region
        $region29: #{tail_embedding_forward.1} parent=11 // pred_check
          %p220 = pneg %p145
        $region30: #{tail_embedding_forward.1} parent=11 // pred_check_branch
          %222 = sbr.rel (%p220) target = $region32
        $region31: #{tail_embedding_forward.1} parent=11 // pred_region
          _
        $region32: #{tail_embedding_forward.1} parent=11 // pred_fallthru
          _
      $region12: #{tail_embedding_forward.1} parent=5 // pred_fallthru
        _
      %p223 = scmp.lt.s32.totalorder %s14, 2
      // Predicated region
      $region33: #{tail_embedding_forward.1} parent=5 // pred_check
        %p224 = pneg %p223
      $region34: #{tail_embedding_forward.1} parent=5 // pred_check_branch
        %226 = sbr.rel (%p224) target = $region36
      $region35: #{tail_embedding_forward.1} parent=5 // pred_region
        // Predicated region
        $region37: #{tail_embedding_forward.1} parent=35 // pred_check
          %p227 = pneg %p34
        $region38: #{tail_embedding_forward.1} parent=35 // pred_check_branch
          %229 = sbr.rel (%p227) target = $region40
        $region39: #{tail_embedding_forward.1} parent=35 // pred_region
          %s230 = smul.u32 28, %s14
          %p231 = scmp.lt.s32.totalorder %s230, 55
          %s232 = scalar_select %p231, %s230, 55
          %s233 = smul.addr %s232, 4
          %s234 = scalar_lea.vmem %s0, %s233
          %s235 = smul.u32 28, %s14
        $region40: #{tail_embedding_forward.1} parent=35 // pred_fallthru
          _
      $region36: #{tail_embedding_forward.1} parent=5 // pred_fallthru
        _
      %p236 = scmp.le.s32.totalorder 1, %s14
      %p237 = scmp.lt.s32.totalorder %s14, 3
      %p238 = pnand %p236, %p237
      %p239 = pneg %p238
      // Predicated region
      $region41: #{tail_embedding_forward.1} parent=5 // pred_check
        _
      $region42: #{tail_embedding_forward.1} parent=5 // pred_check_branch
        %241 = sbr.rel (%p238) target = $region44
      $region43: #{tail_embedding_forward.1} parent=5 // pred_region
        %s242 = ssub.s32 %s14, 1
        // Predicated region
        $region45: #{tail_embedding_forward.1} parent=43 // pred_check
          %p243 = pneg %p103
        $region46: #{tail_embedding_forward.1} parent=43 // pred_check_branch
          %245 = sbr.rel (%p243) target = $region48
        $region47: #{tail_embedding_forward.1} parent=43 // pred_region
          %247 = dma.done [#allocation3], 28672
        $region48: #{tail_embedding_forward.1} parent=43 // pred_fallthru
          _
        // Predicated region
        $region49: #{tail_embedding_forward.1} parent=43 // pred_check
          %p248 = pneg %p124
        $region50: #{tail_embedding_forward.1} parent=43 // pred_check_branch
          %250 = sbr.rel (%p248) target = $region52
        $region51: #{tail_embedding_forward.1} parent=43 // pred_region
          %252 = dma.done [#allocation5], 32768
        $region52: #{tail_embedding_forward.1} parent=43 // pred_fallthru
          _
        %s253 = smul.u32 28, %s19
        %p254 = scmp.lt.s32.totalorder %s253, 55
        %s255 = scalar_select %p254, %s253, 55
        %s256 = smul.addr %s255, 4
        %s257 = scalar_lea.vmem %s0, %s256
        %p258 = pneg %p40
        %p259 = pneg %p37
        %p260 = pneg %p61
        %p261 = pneg %p58
        %p262 = pneg %p82
        %p263 = pneg %p79
        %p264 = pneg %p103
        %p265 = pneg %p100
        %p266 = pneg %p124
        %p267 = pneg %p121
        %p268 = pneg %p145
        %p269 = pneg %p142
        %p270 = pneg %p171
        %p271 = pneg %p168
        %p272 = scmp.lt.s32.totalorder %s19, 1
        %s273 = scalar_select %p272, %s19, 1
        %s274 = smul.addr %s273, 4
        %s275 = smul.addr %s274, 4
        %s276 = scalar_lea.vmem %s6, %s275
        %s277 = smul.u32 28, %s19
        %p278 = scmp.lt.s32.totalorder %s277, 55
        %s279 = scalar_select %p278, %s277, 55
        %s280 = smul.addr %s279, 4
        %s281 = scalar_lea.vmem %s0, %s280
        %s282 = smul.u32 28, %s19
        %p283 = scmp.lt.s32.totalorder %s19, 1
        %s284 = scalar_select %p283, %s19, 1
        %s285 = smul.addr %s284, 4
        %s286 = smul.addr %s285, 4
        %s287 = scalar_lea.vmem %s6, %s286
        %v289 = vld [vmem:[%s281] sm:$0xf]
        %v290 = vld [vmem:[%s281 + $0x4] sm:$0xf]
        %v291 = vld [vmem:[%s281 + $0x8] sm:$0xf]
        %v292 = vld [vmem:[%s281 + $0xc] sm:$0xf]
        %v293 = vld [vmem:[%s281 + $0x10] sm:$0xf]
        %v294 = vld [vmem:[%s281 + $0x14] sm:$0xf]
        %v295 = vld [vmem:[%s281 + $0x18] sm:$0xf]
        %v296 = vld [vmem:[%s281 + $0x1c] sm:$0xf]
        %v297 = vld [vmem:[%s281 + $0x20] sm:$0xf]
        %v298 = vld [vmem:[%s281 + $0x24] sm:$0xf]
        %v299 = vld [vmem:[%s281 + $0x28] sm:$0xf]
        %v300 = vld [vmem:[%s281 + $0x2c] sm:$0xf]
        %v301 = vld [vmem:[%s281 + $0x30] sm:$0xf]
        %v302 = vld [vmem:[%s281 + $0x34] sm:$0xf]
        %v303 = vld [vmem:[%s281 + $0x38] sm:$0xf]
        %v304 = vld [vmem:[%s281 + $0x3c] sm:$0xf]
        %v305 = vld [vmem:[%s281 + $0x40] sm:$0xf]
        %v306 = vld [vmem:[%s281 + $0x44] sm:$0xf]
        %v307 = vld [vmem:[%s281 + $0x48] sm:$0xf]
        %v308 = vld [vmem:[%s281 + $0x4c] sm:$0xf]
        %v309 = vld [vmem:[%s281 + $0x50] sm:$0xf]
        %v310 = vld [vmem:[%s281 + $0x54] sm:$0xf]
        %v311 = vld [vmem:[%s281 + $0x58] sm:$0xf]
        %v312 = vld [vmem:[%s281 + $0x5c] sm:$0xf]
        %v313 = vld [vmem:[%s281 + $0x60] sm:$0xf]
        %v314 = vld [vmem:[%s281 + $0x64] sm:$0xf]
        %v315 = vld [vmem:[%s281 + $0x68] sm:$0xf]
        %v316 = vld [vmem:[%s281 + $0x6c] sm:$0xf]
        %v317 = vld [vmem:[%s1] sm:$0xff]
        %v318 = vld [vmem:[%s1 + $0x8] sm:$0xff]
        %v319 = vld [vmem:[%s1 + $0x10] sm:$0xff]
        %v320 = vld [vmem:[%s1 + $0x18] sm:$0xff]
        %v321 = vld [vmem:[%s1 + $0x20] sm:$0xff]
        %v322 = vld [vmem:[%s1 + $0x28] sm:$0xff]
        %v323 = vld [vmem:[%s1 + $0x30] sm:$0xff]
        %v324 = vld [vmem:[%s1 + $0x38] sm:$0xff]
        %v325 = vld [vmem:[%s1 + $0x40] sm:$0xff]
        %v326 = vld [vmem:[%s1 + $0x48] sm:$0xff]
        %v327 = vld [vmem:[%s1 + $0x50] sm:$0xff]
        %v328 = vld [vmem:[%s1 + $0x58] sm:$0xff]
        %v329 = vld [vmem:[%s1 + $0x60] sm:$0xff]
        %v330 = vld [vmem:[%s1 + $0x68] sm:$0xff]
        %v331 = vld [vmem:[%s1 + $0x70] sm:$0xff]
        %v332 = vld [vmem:[%s1 + $0x78] sm:$0xff]
        %v333 = vld [vmem:[%s1 + $0x80] sm:$0xff]
        %v334 = vld [vmem:[%s1 + $0x88] sm:$0xff]
        %v335 = vld [vmem:[%s1 + $0x90] sm:$0xff]
        %v336 = vld [vmem:[%s1 + $0x98] sm:$0xff]
        %v337 = vld [vmem:[%s1 + $0xa0] sm:$0xff]
        %v338 = vld [vmem:[%s1 + $0xa8] sm:$0xff]
        %v339 = vld [vmem:[%s1 + $0xb0] sm:$0xff]
        %v340 = vld [vmem:[%s1 + $0xb8] sm:$0xff]
        %v341 = vld [vmem:[%s1 + $0xc0] sm:$0xff]
        %v342 = vld [vmem:[%s1 + $0xc8] sm:$0xff]
        %v343 = vld [vmem:[%s1 + $0xd0] sm:$0xff]
        %v344 = vld [vmem:[%s1 + $0xd8] sm:$0xff]
        %v345 = vld [vmem:[%s1 + $0xe0] sm:$0xff]
        %v346 = vld [vmem:[%s1 + $0xe8] sm:$0xff]
        %v347 = vld [vmem:[%s1 + $0xf0] sm:$0xff]
        %v348 = vld [vmem:[%s1 + $0xf8] sm:$0xff]
        %v349 = vld [vmem:[%s2] sm:$0xff]
        %v351 = vperm.slane %v349, 0
        %v352 = vperm.slane %v349, 1
        %v353 = vperm.slane %v349, 2
        %v354 = vperm.slane %v349, 3
        %v355 = vperm.slane %v349, 4
        %v356 = vperm.slane %v349, 5
        %v357 = vperm.slane %v349, 6
        %v358 = vperm.slane %v349, 7
        %v395 = vunpack.c.l.b16 %v289
        %v396 = vunpack.c.l.b16 %v290
        %v397 = vunpack.c.l.b16 %v291
        %v398 = vunpack.c.l.b16 %v292
        %v399 = vunpack.c.l.b16 %v293
        %v400 = vunpack.c.l.b16 %v294
        %v401 = vunpack.c.l.b16 %v295
        %v402 = vunpack.c.l.b16 %v296
        %v403 = vunpack.c.l.b16 %v297
        %v404 = vunpack.c.l.b16 %v298
        %v405 = vunpack.c.l.b16 %v299
        %v406 = vunpack.c.l.b16 %v300
        %v407 = vunpack.c.l.b16 %v301
        %v408 = vunpack.c.l.b16 %v302
        %v409 = vunpack.c.l.b16 %v303
        %v410 = vunpack.c.l.b16 %v304
        %v411 = vunpack.c.l.b16 %v305
        %v412 = vunpack.c.l.b16 %v306
        %v413 = vunpack.c.l.b16 %v307
        %v414 = vunpack.c.l.b16 %v308
        %v415 = vunpack.c.l.b16 %v309
        %v416 = vunpack.c.l.b16 %v310
        %v417 = vunpack.c.l.b16 %v311
        %v418 = vunpack.c.l.b16 %v312
        %v419 = vunpack.c.l.b16 %v313
        %v420 = vunpack.c.l.b16 %v314
        %v421 = vunpack.c.l.b16 %v315
        %v422 = vunpack.c.l.b16 %v316
        %v423 = vpack.c.b16 %v396, %v395
        %v424 = vpack.c.b16 %v398, %v397
        %v425 = vpack.c.b16 %v400, %v399
        %v426 = vpack.c.b16 %v402, %v401
        %v427 = vpack.c.b16 %v404, %v403
        %v428 = vpack.c.b16 %v406, %v405
        %v429 = vpack.c.b16 %v408, %v407
        %v430 = vpack.c.b16 %v410, %v409
        %v431 = vpack.c.b16 %v412, %v411
        %v432 = vpack.c.b16 %v414, %v413
        %v433 = vpack.c.b16 %v416, %v415
        %v434 = vpack.c.b16 %v418, %v417
        %v435 = vpack.c.b16 %v420, %v419
        %v436 = vpack.c.b16 %v422, %v421
        %v469 = vunpack.c.l.b16 %v317
        %v470 = vunpack.c.h.b16 %v317
        %v471 = vunpack.c.l.b16 %v318
        %v472 = vunpack.c.h.b16 %v318
        %v473 = vunpack.c.l.b16 %v319
        %v474 = vunpack.c.h.b16 %v319
        %v475 = vunpack.c.l.b16 %v320
        %v476 = vunpack.c.h.b16 %v320
        %v477 = vunpack.c.l.b16 %v321
        %v478 = vunpack.c.h.b16 %v321
        %v479 = vunpack.c.l.b16 %v322
        %v480 = vunpack.c.h.b16 %v322
        %v481 = vunpack.c.l.b16 %v323
        %v482 = vunpack.c.h.b16 %v323
        %v483 = vunpack.c.l.b16 %v324
        %v484 = vunpack.c.h.b16 %v324
        %v485 = vunpack.c.l.b16 %v325
        %v486 = vunpack.c.h.b16 %v325
        %v487 = vunpack.c.l.b16 %v326
        %v488 = vunpack.c.h.b16 %v326
        %v489 = vunpack.c.l.b16 %v327
        %v490 = vunpack.c.h.b16 %v327
        %v491 = vunpack.c.l.b16 %v328
        %v492 = vunpack.c.h.b16 %v328
        %v493 = vunpack.c.l.b16 %v329
        %v494 = vunpack.c.h.b16 %v329
        %v495 = vunpack.c.l.b16 %v330
        %v496 = vunpack.c.h.b16 %v330
        %v497 = vunpack.c.l.b16 %v331
        %v498 = vunpack.c.h.b16 %v331
        %v499 = vunpack.c.l.b16 %v332
        %v500 = vunpack.c.h.b16 %v332
        %v501 = vunpack.c.l.b16 %v333
        %v502 = vunpack.c.h.b16 %v333
        %v503 = vunpack.c.l.b16 %v334
        %v504 = vunpack.c.h.b16 %v334
        %v505 = vunpack.c.l.b16 %v335
        %v506 = vunpack.c.h.b16 %v335
        %v507 = vunpack.c.l.b16 %v336
        %v508 = vunpack.c.h.b16 %v336
        %v509 = vunpack.c.l.b16 %v337
        %v510 = vunpack.c.h.b16 %v337
        %v511 = vunpack.c.l.b16 %v338
        %v512 = vunpack.c.h.b16 %v338
        %v513 = vunpack.c.l.b16 %v339
        %v514 = vunpack.c.h.b16 %v339
        %v515 = vunpack.c.l.b16 %v340
        %v516 = vunpack.c.h.b16 %v340
        %v517 = vunpack.c.l.b16 %v341
        %v518 = vunpack.c.h.b16 %v341
        %v519 = vunpack.c.l.b16 %v342
        %v520 = vunpack.c.h.b16 %v342
        %v521 = vunpack.c.l.b16 %v343
        %v522 = vunpack.c.h.b16 %v343
        %v523 = vunpack.c.l.b16 %v344
        %v524 = vunpack.c.h.b16 %v344
        %v525 = vunpack.c.l.b16 %v345
        %v526 = vunpack.c.h.b16 %v345
        %v527 = vunpack.c.l.b16 %v346
        %v528 = vunpack.c.h.b16 %v346
        %v529 = vunpack.c.l.b16 %v347
        %v530 = vunpack.c.h.b16 %v347
        %v531 = vunpack.c.l.b16 %v348
        %v532 = vunpack.c.h.b16 %v348
        %v533 = vpack.c.b16 %v477, %v469
        %v534 = vpack.c.b16 %v478, %v470
        %v535 = vpack.c.b16 %v479, %v471
        %v536 = vpack.c.b16 %v480, %v472
        %v537 = vpack.c.b16 %v481, %v473
        %v538 = vpack.c.b16 %v482, %v474
        %v539 = vpack.c.b16 %v483, %v475
        %v540 = vpack.c.b16 %v484, %v476
        %v541 = vpack.c.b16 %v493, %v485
        %v542 = vpack.c.b16 %v494, %v486
        %v543 = vpack.c.b16 %v495, %v487
        %v544 = vpack.c.b16 %v496, %v488
        %v545 = vpack.c.b16 %v497, %v489
        %v546 = vpack.c.b16 %v498, %v490
        %v547 = vpack.c.b16 %v499, %v491
        %v548 = vpack.c.b16 %v500, %v492
        %v549 = vpack.c.b16 %v509, %v501
        %v550 = vpack.c.b16 %v510, %v502
        %v551 = vpack.c.b16 %v511, %v503
        %v552 = vpack.c.b16 %v512, %v504
        %v553 = vpack.c.b16 %v513, %v505
        %v554 = vpack.c.b16 %v514, %v506
        %v555 = vpack.c.b16 %v515, %v507
        %v556 = vpack.c.b16 %v516, %v508
        %v557 = vpack.c.b16 %v525, %v517
        %v558 = vpack.c.b16 %v526, %v518
        %v559 = vpack.c.b16 %v527, %v519
        %v560 = vpack.c.b16 %v528, %v520
        %v561 = vpack.c.b16 %v529, %v521
        %v562 = vpack.c.b16 %v530, %v522
        %v563 = vpack.c.b16 %v531, %v523
        %v564 = vpack.c.b16 %v532, %v524
        %vm597 = vcmask 523264
        %v599 = vsel %vm597, %v423, 0
        %v602 = vsel %vm597, %v424, 0
        %v605 = vsel %vm597, %v425, 0
        %v608 = vsel %vm597, %v426, 0
        %v611 = vsel %vm597, %v427, 0
        %v614 = vsel %vm597, %v428, 0
        %v617 = vsel %vm597, %v429, 0
        %v620 = vsel %vm597, %v430, 0
        %v623 = vsel %vm597, %v431, 0
        %v626 = vsel %vm597, %v432, 0
        %v629 = vsel %vm597, %v433, 0
        %v632 = vsel %vm597, %v434, 0
        %v635 = vsel %vm597, %v435, 0
        %v638 = vsel %vm597, %v436, 0
        %640 = vmatpush.bf16.msra.mxu0 0
        %641 = vmatpush.bf16.msra.mxu0 0
        %642 = vmatpush.bf16.msra.mxu0 0
        %643 = vmatpush.bf16.msra.mxu0 0
        %644 = vmatpush.bf16.msra.mxu0 %v557
        %645 = vmatpush.bf16.msra.mxu0 %v549
        %646 = vmatpush.bf16.msra.mxu0 %v541
        %647 = vmatpush.bf16.msra.mxu0 %v533
        %648 = vmatmul.bf16.gmra.mxu0 %v599
        %v649 = vpop.f32.mrf.mxu0
        %v650 = vadd.f32 %v351, %v649
        %v651 = vpop.f32.mrf.mxu0
        %v652 = vadd.f32 %v351, %v651
        %653 = vmatmul.bf16.gmra.mxu0 %v602
        %v654 = vpop.f32.mrf.mxu0
        %v655 = vadd.f32 %v351, %v654
        %v656 = vpop.f32.mrf.mxu0
        %v657 = vadd.f32 %v351, %v656
        %658 = vmatmul.bf16.gmra.mxu0 %v605
        %v659 = vpop.f32.mrf.mxu0
        %v660 = vadd.f32 %v351, %v659
        %v661 = vpop.f32.mrf.mxu0
        %v662 = vadd.f32 %v351, %v661
        %663 = vmatmul.bf16.gmra.mxu0 %v608
        %v664 = vpop.f32.mrf.mxu0
        %v665 = vadd.f32 %v351, %v664
        %v666 = vpop.f32.mrf.mxu0
        %v667 = vadd.f32 %v351, %v666
        %668 = vmatmul.bf16.gmra.mxu0 %v611
        %v669 = vpop.f32.mrf.mxu0
        %v670 = vadd.f32 %v351, %v669
        %v671 = vpop.f32.mrf.mxu0
        %v672 = vadd.f32 %v351, %v671
        %673 = vmatmul.bf16.gmra.mxu0 %v614
        %v674 = vpop.f32.mrf.mxu0
        %v675 = vadd.f32 %v351, %v674
        %v676 = vpop.f32.mrf.mxu0
        %v677 = vadd.f32 %v351, %v676
        %678 = vmatmul.bf16.gmra.mxu0 %v617
        %v679 = vpop.f32.mrf.mxu0
        %v680 = vadd.f32 %v351, %v679
        %v681 = vpop.f32.mrf.mxu0
        %v682 = vadd.f32 %v351, %v681
        %683 = vmatmul.bf16.gmra.mxu0 %v620
        %v684 = vpop.f32.mrf.mxu0
        %v685 = vadd.f32 %v351, %v684
        %v686 = vpop.f32.mrf.mxu0
        %v687 = vadd.f32 %v351, %v686
        %688 = vmatmul.bf16.gmra.mxu0 %v623
        %v689 = vpop.f32.mrf.mxu0
        %v690 = vadd.f32 %v351, %v689
        %v691 = vpop.f32.mrf.mxu0
        %v692 = vadd.f32 %v351, %v691
        %693 = vmatmul.bf16.gmra.mxu0 %v626
        %v694 = vpop.f32.mrf.mxu0
        %v695 = vadd.f32 %v351, %v694
        %v696 = vpop.f32.mrf.mxu0
        %v697 = vadd.f32 %v351, %v696
        %698 = vmatmul.bf16.gmra.mxu0 %v629
        %v699 = vpop.f32.mrf.mxu0
        %v700 = vadd.f32 %v351, %v699
        %v701 = vpop.f32.mrf.mxu0
        %v702 = vadd.f32 %v351, %v701
        %703 = vmatmul.bf16.gmra.mxu0 %v632
        %v704 = vpop.f32.mrf.mxu0
        %v705 = vadd.f32 %v351, %v704
        %v706 = vpop.f32.mrf.mxu0
        %v707 = vadd.f32 %v351, %v706
        %708 = vmatmul.bf16.gmra.mxu0 %v635
        %v709 = vpop.f32.mrf.mxu0
        %v710 = vadd.f32 %v351, %v709
        %v711 = vpop.f32.mrf.mxu0
        %v712 = vadd.f32 %v351, %v711
        %713 = vmatmul.bf16.gmra.mxu0 %v638
        %v714 = vpop.f32.mrf.mxu0
        %v715 = vadd.f32 %v351, %v714
        %v716 = vpop.f32.mrf.mxu0
        %v717 = vadd.f32 %v351, %v716
        %718 = vdwg.mxu0
        %719 = vmatpush.bf16.msra.mxu0 0
        %720 = vmatpush.bf16.msra.mxu0 0
        %721 = vmatpush.bf16.msra.mxu0 0
        %722 = vmatpush.bf16.msra.mxu0 0
        %723 = vmatpush.bf16.msra.mxu0 %v558
        %724 = vmatpush.bf16.msra.mxu0 %v550
        %725 = vmatpush.bf16.msra.mxu0 %v542
        %726 = vmatpush.bf16.msra.mxu0 %v534
        %727 = vmatmul.bf16.gmra.mxu0 %v599
        %v728 = vpop.f32.mrf.mxu0
        %v729 = vadd.f32 %v352, %v728
        %v730 = vpop.f32.mrf.mxu0
        %v731 = vadd.f32 %v352, %v730
        %732 = vmatmul.bf16.gmra.mxu0 %v602
        %v733 = vpop.f32.mrf.mxu0
        %v734 = vadd.f32 %v352, %v733
        %v735 = vpop.f32.mrf.mxu0
        %v736 = vadd.f32 %v352, %v735
        %737 = vmatmul.bf16.gmra.mxu0 %v605
        %v738 = vpop.f32.mrf.mxu0
        %v739 = vadd.f32 %v352, %v738
        %v740 = vpop.f32.mrf.mxu0
        %v741 = vadd.f32 %v352, %v740
        %742 = vmatmul.bf16.gmra.mxu0 %v608
        %v743 = vpop.f32.mrf.mxu0
        %v744 = vadd.f32 %v352, %v743
        %v745 = vpop.f32.mrf.mxu0
        %v746 = vadd.f32 %v352, %v745
        %747 = vmatmul.bf16.gmra.mxu0 %v611
        %v748 = vpop.f32.mrf.mxu0
        %v749 = vadd.f32 %v352, %v748
        %v750 = vpop.f32.mrf.mxu0
        %v751 = vadd.f32 %v352, %v750
        %752 = vmatmul.bf16.gmra.mxu0 %v614
        %v753 = vpop.f32.mrf.mxu0
        %v754 = vadd.f32 %v352, %v753
        %v755 = vpop.f32.mrf.mxu0
        %v756 = vadd.f32 %v352, %v755
        %757 = vmatmul.bf16.gmra.mxu0 %v617
        %v758 = vpop.f32.mrf.mxu0
        %v759 = vadd.f32 %v352, %v758
        %v760 = vpop.f32.mrf.mxu0
        %v761 = vadd.f32 %v352, %v760
        %762 = vmatmul.bf16.gmra.mxu0 %v620
        %v763 = vpop.f32.mrf.mxu0
        %v764 = vadd.f32 %v352, %v763
        %v765 = vpop.f32.mrf.mxu0
        %v766 = vadd.f32 %v352, %v765
        %767 = vmatmul.bf16.gmra.mxu0 %v623
        %v768 = vpop.f32.mrf.mxu0
        %v769 = vadd.f32 %v352, %v768
        %v770 = vpop.f32.mrf.mxu0
        %v771 = vadd.f32 %v352, %v770
        %772 = vmatmul.bf16.gmra.mxu0 %v626
        %v773 = vpop.f32.mrf.mxu0
        %v774 = vadd.f32 %v352, %v773
        %v775 = vpop.f32.mrf.mxu0
        %v776 = vadd.f32 %v352, %v775
        %777 = vmatmul.bf16.gmra.mxu0 %v629
        %v778 = vpop.f32.mrf.mxu0
        %v779 = vadd.f32 %v352, %v778
        %v780 = vpop.f32.mrf.mxu0
        %v781 = vadd.f32 %v352, %v780
        %782 = vmatmul.bf16.gmra.mxu0 %v632
        %v783 = vpop.f32.mrf.mxu0
        %v784 = vadd.f32 %v352, %v783
        %v785 = vpop.f32.mrf.mxu0
        %v786 = vadd.f32 %v352, %v785
        %787 = vmatmul.bf16.gmra.mxu0 %v635
        %v788 = vpop.f32.mrf.mxu0
        %v789 = vadd.f32 %v352, %v788
        %v790 = vpop.f32.mrf.mxu0
        %v791 = vadd.f32 %v352, %v790
        %792 = vmatmul.bf16.gmra.mxu0 %v638
        %v793 = vpop.f32.mrf.mxu0
        %v794 = vadd.f32 %v352, %v793
        %v795 = vpop.f32.mrf.mxu0
        %v796 = vadd.f32 %v352, %v795
        %797 = vdwg.mxu0
        %798 = vmatpush.bf16.msra.mxu0 0
        %799 = vmatpush.bf16.msra.mxu0 0
        %800 = vmatpush.bf16.msra.mxu0 0
        %801 = vmatpush.bf16.msra.mxu0 0
        %802 = vmatpush.bf16.msra.mxu0 %v559
        %803 = vmatpush.bf16.msra.mxu0 %v551
        %804 = vmatpush.bf16.msra.mxu0 %v543
        %805 = vmatpush.bf16.msra.mxu0 %v535
        %806 = vmatmul.bf16.gmra.mxu0 %v599
        %v807 = vpop.f32.mrf.mxu0
        %v808 = vadd.f32 %v353, %v807
        %v809 = vpop.f32.mrf.mxu0
        %v810 = vadd.f32 %v353, %v809
        %811 = vmatmul.bf16.gmra.mxu0 %v602
        %v812 = vpop.f32.mrf.mxu0
        %v813 = vadd.f32 %v353, %v812
        %v814 = vpop.f32.mrf.mxu0
        %v815 = vadd.f32 %v353, %v814
        %816 = vmatmul.bf16.gmra.mxu0 %v605
        %v817 = vpop.f32.mrf.mxu0
        %v818 = vadd.f32 %v353, %v817
        %v819 = vpop.f32.mrf.mxu0
        %v820 = vadd.f32 %v353, %v819
        %821 = vmatmul.bf16.gmra.mxu0 %v608
        %v822 = vpop.f32.mrf.mxu0
        %v823 = vadd.f32 %v353, %v822
        %v824 = vpop.f32.mrf.mxu0
        %v825 = vadd.f32 %v353, %v824
        %826 = vmatmul.bf16.gmra.mxu0 %v611
        %v827 = vpop.f32.mrf.mxu0
        %v828 = vadd.f32 %v353, %v827
        %v829 = vpop.f32.mrf.mxu0
        %v830 = vadd.f32 %v353, %v829
        %831 = vmatmul.bf16.gmra.mxu0 %v614
        %v832 = vpop.f32.mrf.mxu0
        %v833 = vadd.f32 %v353, %v832
        %v834 = vpop.f32.mrf.mxu0
        %v835 = vadd.f32 %v353, %v834
        %836 = vmatmul.bf16.gmra.mxu0 %v617
        %v837 = vpop.f32.mrf.mxu0
        %v838 = vadd.f32 %v353, %v837
        %v839 = vpop.f32.mrf.mxu0
        %v840 = vadd.f32 %v353, %v839
        %841 = vmatmul.bf16.gmra.mxu0 %v620
        %v842 = vpop.f32.mrf.mxu0
        %v843 = vadd.f32 %v353, %v842
        %v844 = vpop.f32.mrf.mxu0
        %v845 = vadd.f32 %v353, %v844
        %846 = vmatmul.bf16.gmra.mxu0 %v623
        %v847 = vpop.f32.mrf.mxu0
        %v848 = vadd.f32 %v353, %v847
        %v849 = vpop.f32.mrf.mxu0
        %v850 = vadd.f32 %v353, %v849
        %851 = vmatmul.bf16.gmra.mxu0 %v626
        %v852 = vpop.f32.mrf.mxu0
        %v853 = vadd.f32 %v353, %v852
        %v854 = vpop.f32.mrf.mxu0
        %v855 = vadd.f32 %v353, %v854
        %856 = vmatmul.bf16.gmra.mxu0 %v629
        %v857 = vpop.f32.mrf.mxu0
        %v858 = vadd.f32 %v353, %v857
        %v859 = vpop.f32.mrf.mxu0
        %v860 = vadd.f32 %v353, %v859
        %861 = vmatmul.bf16.gmra.mxu0 %v632
        %v862 = vpop.f32.mrf.mxu0
        %v863 = vadd.f32 %v353, %v862
        %v864 = vpop.f32.mrf.mxu0
        %v865 = vadd.f32 %v353, %v864
        %866 = vmatmul.bf16.gmra.mxu0 %v635
        %v867 = vpop.f32.mrf.mxu0
        %v868 = vadd.f32 %v353, %v867
        %v869 = vpop.f32.mrf.mxu0
        %v870 = vadd.f32 %v353, %v869
        %871 = vmatmul.bf16.gmra.mxu0 %v638
        %v872 = vpop.f32.mrf.mxu0
        %v873 = vadd.f32 %v353, %v872
        %v874 = vpop.f32.mrf.mxu0
        %v875 = vadd.f32 %v353, %v874
        %876 = vdwg.mxu0
        %877 = vmatpush.bf16.msra.mxu0 0
        %878 = vmatpush.bf16.msra.mxu0 0
        %879 = vmatpush.bf16.msra.mxu0 0
        %880 = vmatpush.bf16.msra.mxu0 0
        %881 = vmatpush.bf16.msra.mxu0 %v560
        %882 = vmatpush.bf16.msra.mxu0 %v552
        %883 = vmatpush.bf16.msra.mxu0 %v544
        %884 = vmatpush.bf16.msra.mxu0 %v536
        %885 = vmatmul.bf16.gmra.mxu0 %v599
        %v886 = vpop.f32.mrf.mxu0
        %v887 = vadd.f32 %v354, %v886
        %v888 = vpop.f32.mrf.mxu0
        %v889 = vadd.f32 %v354, %v888
        %890 = vmatmul.bf16.gmra.mxu0 %v602
        %v891 = vpop.f32.mrf.mxu0
        %v892 = vadd.f32 %v354, %v891
        %v893 = vpop.f32.mrf.mxu0
        %v894 = vadd.f32 %v354, %v893
        %895 = vmatmul.bf16.gmra.mxu0 %v605
        %v896 = vpop.f32.mrf.mxu0
        %v897 = vadd.f32 %v354, %v896
        %v898 = vpop.f32.mrf.mxu0
        %v899 = vadd.f32 %v354, %v898
        %900 = vmatmul.bf16.gmra.mxu0 %v608
        %v901 = vpop.f32.mrf.mxu0
        %v902 = vadd.f32 %v354, %v901
        %v903 = vpop.f32.mrf.mxu0
        %v904 = vadd.f32 %v354, %v903
        %905 = vmatmul.bf16.gmra.mxu0 %v611
        %v906 = vpop.f32.mrf.mxu0
        %v907 = vadd.f32 %v354, %v906
        %v908 = vpop.f32.mrf.mxu0
        %v909 = vadd.f32 %v354, %v908
        %910 = vmatmul.bf16.gmra.mxu0 %v614
        %v911 = vpop.f32.mrf.mxu0
        %v912 = vadd.f32 %v354, %v911
        %v913 = vpop.f32.mrf.mxu0
        %v914 = vadd.f32 %v354, %v913
        %915 = vmatmul.bf16.gmra.mxu0 %v617
        %v916 = vpop.f32.mrf.mxu0
        %v917 = vadd.f32 %v354, %v916
        %v918 = vpop.f32.mrf.mxu0
        %v919 = vadd.f32 %v354, %v918
        %920 = vmatmul.bf16.gmra.mxu0 %v620
        %v921 = vpop.f32.mrf.mxu0
        %v922 = vadd.f32 %v354, %v921
        %v923 = vpop.f32.mrf.mxu0
        %v924 = vadd.f32 %v354, %v923
        %925 = vmatmul.bf16.gmra.mxu0 %v623
        %v926 = vpop.f32.mrf.mxu0
        %v927 = vadd.f32 %v354, %v926
        %v928 = vpop.f32.mrf.mxu0
        %v929 = vadd.f32 %v354, %v928
        %930 = vmatmul.bf16.gmra.mxu0 %v626
        %v931 = vpop.f32.mrf.mxu0
        %v932 = vadd.f32 %v354, %v931
        %v933 = vpop.f32.mrf.mxu0
        %v934 = vadd.f32 %v354, %v933
        %935 = vmatmul.bf16.gmra.mxu0 %v629
        %v936 = vpop.f32.mrf.mxu0
        %v937 = vadd.f32 %v354, %v936
        %v938 = vpop.f32.mrf.mxu0
        %v939 = vadd.f32 %v354, %v938
        %940 = vmatmul.bf16.gmra.mxu0 %v632
        %v941 = vpop.f32.mrf.mxu0
        %v942 = vadd.f32 %v354, %v941
        %v943 = vpop.f32.mrf.mxu0
        %v944 = vadd.f32 %v354, %v943
        %945 = vmatmul.bf16.gmra.mxu0 %v635
        %v946 = vpop.f32.mrf.mxu0
        %v947 = vadd.f32 %v354, %v946
        %v948 = vpop.f32.mrf.mxu0
        %v949 = vadd.f32 %v354, %v948
        %950 = vmatmul.bf16.gmra.mxu0 %v638
        %v951 = vpop.f32.mrf.mxu0
        %v952 = vadd.f32 %v354, %v951
        %v953 = vpop.f32.mrf.mxu0
        %v954 = vadd.f32 %v354, %v953
        %955 = vdwg.mxu0
        %956 = vmatpush.bf16.msra.mxu0 0
        %957 = vmatpush.bf16.msra.mxu0 0
        %958 = vmatpush.bf16.msra.mxu0 0
        %959 = vmatpush.bf16.msra.mxu0 0
        %960 = vmatpush.bf16.msra.mxu0 %v561
        %961 = vmatpush.bf16.msra.mxu0 %v553
        %962 = vmatpush.bf16.msra.mxu0 %v545
        %963 = vmatpush.bf16.msra.mxu0 %v537
        %964 = vmatmul.bf16.gmra.mxu0 %v599
        %v965 = vpop.f32.mrf.mxu0
        %v966 = vadd.f32 %v355, %v965
        %v967 = vpop.f32.mrf.mxu0
        %v968 = vadd.f32 %v355, %v967
        %969 = vmatmul.bf16.gmra.mxu0 %v602
        %v970 = vpop.f32.mrf.mxu0
        %v971 = vadd.f32 %v355, %v970
        %v972 = vpop.f32.mrf.mxu0
        %v973 = vadd.f32 %v355, %v972
        %974 = vmatmul.bf16.gmra.mxu0 %v605
        %v975 = vpop.f32.mrf.mxu0
        %v976 = vadd.f32 %v355, %v975
        %v977 = vpop.f32.mrf.mxu0
        %v978 = vadd.f32 %v355, %v977
        %979 = vmatmul.bf16.gmra.mxu0 %v608
        %v980 = vpop.f32.mrf.mxu0
        %v981 = vadd.f32 %v355, %v980
        %v982 = vpop.f32.mrf.mxu0
        %v983 = vadd.f32 %v355, %v982
        %984 = vmatmul.bf16.gmra.mxu0 %v611
        %v985 = vpop.f32.mrf.mxu0
        %v986 = vadd.f32 %v355, %v985
        %v987 = vpop.f32.mrf.mxu0
        %v988 = vadd.f32 %v355, %v987
        %989 = vmatmul.bf16.gmra.mxu0 %v614
        %v990 = vpop.f32.mrf.mxu0
        %v991 = vadd.f32 %v355, %v990
        %v992 = vpop.f32.mrf.mxu0
        %v993 = vadd.f32 %v355, %v992
        %994 = vmatmul.bf16.gmra.mxu0 %v617
        %v995 = vpop.f32.mrf.mxu0
        %v996 = vadd.f32 %v355, %v995
        %v997 = vpop.f32.mrf.mxu0
        %v998 = vadd.f32 %v355, %v997
        %999 = vmatmul.bf16.gmra.mxu0 %v620
        %v1000 = vpop.f32.mrf.mxu0
        %v1001 = vadd.f32 %v355, %v1000
        %v1002 = vpop.f32.mrf.mxu0
        %v1003 = vadd.f32 %v355, %v1002
        %1004 = vmatmul.bf16.gmra.mxu0 %v623
        %v1005 = vpop.f32.mrf.mxu0
        %v1006 = vadd.f32 %v355, %v1005
        %v1007 = vpop.f32.mrf.mxu0
        %v1008 = vadd.f32 %v355, %v1007
        %1009 = vmatmul.bf16.gmra.mxu0 %v626
        %v1010 = vpop.f32.mrf.mxu0
        %v1011 = vadd.f32 %v355, %v1010
        %v1012 = vpop.f32.mrf.mxu0
        %v1013 = vadd.f32 %v355, %v1012
        %1014 = vmatmul.bf16.gmra.mxu0 %v629
        %v1015 = vpop.f32.mrf.mxu0
        %v1016 = vadd.f32 %v355, %v1015
        %v1017 = vpop.f32.mrf.mxu0
        %v1018 = vadd.f32 %v355, %v1017
        %1019 = vmatmul.bf16.gmra.mxu0 %v632
        %v1020 = vpop.f32.mrf.mxu0
        %v1021 = vadd.f32 %v355, %v1020
        %v1022 = vpop.f32.mrf.mxu0
        %v1023 = vadd.f32 %v355, %v1022
        %1024 = vmatmul.bf16.gmra.mxu0 %v635
        %v1025 = vpop.f32.mrf.mxu0
        %v1026 = vadd.f32 %v355, %v1025
        %v1027 = vpop.f32.mrf.mxu0
        %v1028 = vadd.f32 %v355, %v1027
        %1029 = vmatmul.bf16.gmra.mxu0 %v638
        %v1030 = vpop.f32.mrf.mxu0
        %v1031 = vadd.f32 %v355, %v1030
        %v1032 = vpop.f32.mrf.mxu0
        %v1033 = vadd.f32 %v355, %v1032
        %1034 = vdwg.mxu0
        %1035 = vmatpush.bf16.msra.mxu0 0
        %1036 = vmatpush.bf16.msra.mxu0 0
        %1037 = vmatpush.bf16.msra.mxu0 0
        %1038 = vmatpush.bf16.msra.mxu0 0
        %1039 = vmatpush.bf16.msra.mxu0 %v562
        %1040 = vmatpush.bf16.msra.mxu0 %v554
        %1041 = vmatpush.bf16.msra.mxu0 %v546
        %1042 = vmatpush.bf16.msra.mxu0 %v538
        %1043 = vmatmul.bf16.gmra.mxu0 %v599
        %v1044 = vpop.f32.mrf.mxu0
        %v1045 = vadd.f32 %v356, %v1044
        %v1046 = vpop.f32.mrf.mxu0
        %v1047 = vadd.f32 %v356, %v1046
        %1048 = vmatmul.bf16.gmra.mxu0 %v602
        %v1049 = vpop.f32.mrf.mxu0
        %v1050 = vadd.f32 %v356, %v1049
        %v1051 = vpop.f32.mrf.mxu0
        %v1052 = vadd.f32 %v356, %v1051
        %1053 = vmatmul.bf16.gmra.mxu0 %v605
        %v1054 = vpop.f32.mrf.mxu0
        %v1055 = vadd.f32 %v356, %v1054
        %v1056 = vpop.f32.mrf.mxu0
        %v1057 = vadd.f32 %v356, %v1056
        %1058 = vmatmul.bf16.gmra.mxu0 %v608
        %v1059 = vpop.f32.mrf.mxu0
        %v1060 = vadd.f32 %v356, %v1059
        %v1061 = vpop.f32.mrf.mxu0
        %v1062 = vadd.f32 %v356, %v1061
        %1063 = vmatmul.bf16.gmra.mxu0 %v611
        %v1064 = vpop.f32.mrf.mxu0
        %v1065 = vadd.f32 %v356, %v1064
        %v1066 = vpop.f32.mrf.mxu0
        %v1067 = vadd.f32 %v356, %v1066
        %1068 = vmatmul.bf16.gmra.mxu0 %v614
        %v1069 = vpop.f32.mrf.mxu0
        %v1070 = vadd.f32 %v356, %v1069
        %v1071 = vpop.f32.mrf.mxu0
        %v1072 = vadd.f32 %v356, %v1071
        %1073 = vmatmul.bf16.gmra.mxu0 %v617
        %v1074 = vpop.f32.mrf.mxu0
        %v1075 = vadd.f32 %v356, %v1074
        %v1076 = vpop.f32.mrf.mxu0
        %v1077 = vadd.f32 %v356, %v1076
        %1078 = vmatmul.bf16.gmra.mxu0 %v620
        %v1079 = vpop.f32.mrf.mxu0
        %v1080 = vadd.f32 %v356, %v1079
        %v1081 = vpop.f32.mrf.mxu0
        %v1082 = vadd.f32 %v356, %v1081
        %1083 = vmatmul.bf16.gmra.mxu0 %v623
        %v1084 = vpop.f32.mrf.mxu0
        %v1085 = vadd.f32 %v356, %v1084
        %v1086 = vpop.f32.mrf.mxu0
        %v1087 = vadd.f32 %v356, %v1086
        %1088 = vmatmul.bf16.gmra.mxu0 %v626
        %v1089 = vpop.f32.mrf.mxu0
        %v1090 = vadd.f32 %v356, %v1089
        %v1091 = vpop.f32.mrf.mxu0
        %v1092 = vadd.f32 %v356, %v1091
        %1093 = vmatmul.bf16.gmra.mxu0 %v629
        %v1094 = vpop.f32.mrf.mxu0
        %v1095 = vadd.f32 %v356, %v1094
        %v1096 = vpop.f32.mrf.mxu0
        %v1097 = vadd.f32 %v356, %v1096
        %1098 = vmatmul.bf16.gmra.mxu0 %v632
        %v1099 = vpop.f32.mrf.mxu0
        %v1100 = vadd.f32 %v356, %v1099
        %v1101 = vpop.f32.mrf.mxu0
        %v1102 = vadd.f32 %v356, %v1101
        %1103 = vmatmul.bf16.gmra.mxu0 %v635
        %v1104 = vpop.f32.mrf.mxu0
        %v1105 = vadd.f32 %v356, %v1104
        %v1106 = vpop.f32.mrf.mxu0
        %v1107 = vadd.f32 %v356, %v1106
        %1108 = vmatmul.bf16.gmra.mxu0 %v638
        %v1109 = vpop.f32.mrf.mxu0
        %v1110 = vadd.f32 %v356, %v1109
        %v1111 = vpop.f32.mrf.mxu0
        %v1112 = vadd.f32 %v356, %v1111
        %1113 = vdwg.mxu0
        %1114 = vmatpush.bf16.msra.mxu0 0
        %1115 = vmatpush.bf16.msra.mxu0 0
        %1116 = vmatpush.bf16.msra.mxu0 0
        %1117 = vmatpush.bf16.msra.mxu0 0
        %1118 = vmatpush.bf16.msra.mxu0 %v563
        %1119 = vmatpush.bf16.msra.mxu0 %v555
        %1120 = vmatpush.bf16.msra.mxu0 %v547
        %1121 = vmatpush.bf16.msra.mxu0 %v539
        %1122 = vmatmul.bf16.gmra.mxu0 %v599
        %v1123 = vpop.f32.mrf.mxu0
        %v1124 = vadd.f32 %v357, %v1123
        %v1125 = vpop.f32.mrf.mxu0
        %v1126 = vadd.f32 %v357, %v1125
        %1127 = vmatmul.bf16.gmra.mxu0 %v602
        %v1128 = vpop.f32.mrf.mxu0
        %v1129 = vadd.f32 %v357, %v1128
        %v1130 = vpop.f32.mrf.mxu0
        %v1131 = vadd.f32 %v357, %v1130
        %1132 = vmatmul.bf16.gmra.mxu0 %v605
        %v1133 = vpop.f32.mrf.mxu0
        %v1134 = vadd.f32 %v357, %v1133
        %v1135 = vpop.f32.mrf.mxu0
        %v1136 = vadd.f32 %v357, %v1135
        %1137 = vmatmul.bf16.gmra.mxu0 %v608
        %v1138 = vpop.f32.mrf.mxu0
        %v1139 = vadd.f32 %v357, %v1138
        %v1140 = vpop.f32.mrf.mxu0
        %v1141 = vadd.f32 %v357, %v1140
        %1142 = vmatmul.bf16.gmra.mxu0 %v611
        %v1143 = vpop.f32.mrf.mxu0
        %v1144 = vadd.f32 %v357, %v1143
        %v1145 = vpop.f32.mrf.mxu0
        %v1146 = vadd.f32 %v357, %v1145
        %1147 = vmatmul.bf16.gmra.mxu0 %v614
        %v1148 = vpop.f32.mrf.mxu0
        %v1149 = vadd.f32 %v357, %v1148
        %v1150 = vpop.f32.mrf.mxu0
        %v1151 = vadd.f32 %v357, %v1150
        %1152 = vmatmul.bf16.gmra.mxu0 %v617
        %v1153 = vpop.f32.mrf.mxu0
        %v1154 = vadd.f32 %v357, %v1153
        %v1155 = vpop.f32.mrf.mxu0
        %v1156 = vadd.f32 %v357, %v1155
        %1157 = vmatmul.bf16.gmra.mxu0 %v620
        %v1158 = vpop.f32.mrf.mxu0
        %v1159 = vadd.f32 %v357, %v1158
        %v1160 = vpop.f32.mrf.mxu0
        %v1161 = vadd.f32 %v357, %v1160
        %1162 = vmatmul.bf16.gmra.mxu0 %v623
        %v1163 = vpop.f32.mrf.mxu0
        %v1164 = vadd.f32 %v357, %v1163
        %v1165 = vpop.f32.mrf.mxu0
        %v1166 = vadd.f32 %v357, %v1165
        %1167 = vmatmul.bf16.gmra.mxu0 %v626
        %v1168 = vpop.f32.mrf.mxu0
        %v1169 = vadd.f32 %v357, %v1168
        %v1170 = vpop.f32.mrf.mxu0
        %v1171 = vadd.f32 %v357, %v1170
        %1172 = vmatmul.bf16.gmra.mxu0 %v629
        %v1173 = vpop.f32.mrf.mxu0
        %v1174 = vadd.f32 %v357, %v1173
        %v1175 = vpop.f32.mrf.mxu0
        %v1176 = vadd.f32 %v357, %v1175
        %1177 = vmatmul.bf16.gmra.mxu0 %v632
        %v1178 = vpop.f32.mrf.mxu0
        %v1179 = vadd.f32 %v357, %v1178
        %v1180 = vpop.f32.mrf.mxu0
        %v1181 = vadd.f32 %v357, %v1180
        %1182 = vmatmul.bf16.gmra.mxu0 %v635
        %v1183 = vpop.f32.mrf.mxu0
        %v1184 = vadd.f32 %v357, %v1183
        %v1185 = vpop.f32.mrf.mxu0
        %v1186 = vadd.f32 %v357, %v1185
        %1187 = vmatmul.bf16.gmra.mxu0 %v638
        %v1188 = vpop.f32.mrf.mxu0
        %v1189 = vadd.f32 %v357, %v1188
        %v1190 = vpop.f32.mrf.mxu0
        %v1191 = vadd.f32 %v357, %v1190
        %1192 = vdwg.mxu0
        %1193 = vmatpush.bf16.msra.mxu0 0
        %1194 = vmatpush.bf16.msra.mxu0 0
        %1195 = vmatpush.bf16.msra.mxu0 0
        %1196 = vmatpush.bf16.msra.mxu0 0
        %1197 = vmatpush.bf16.msra.mxu0 %v564
        %1198 = vmatpush.bf16.msra.mxu0 %v556
        %1199 = vmatpush.bf16.msra.mxu0 %v548
        %1200 = vmatpush.bf16.msra.mxu0 %v540
        %1201 = vmatmul.bf16.gmra.mxu0 %v599
        %v1202 = vpop.f32.mrf.mxu0
        %v1203 = vadd.f32 %v358, %v1202
        %v1204 = vpop.f32.mrf.mxu0
        %v1205 = vadd.f32 %v358, %v1204
        %1206 = vmatmul.bf16.gmra.mxu0 %v602
        %v1207 = vpop.f32.mrf.mxu0
        %v1208 = vadd.f32 %v358, %v1207
        %v1209 = vpop.f32.mrf.mxu0
        %v1210 = vadd.f32 %v358, %v1209
        %1211 = vmatmul.bf16.gmra.mxu0 %v605
        %v1212 = vpop.f32.mrf.mxu0
        %v1213 = vadd.f32 %v358, %v1212
        %v1214 = vpop.f32.mrf.mxu0
        %v1215 = vadd.f32 %v358, %v1214
        %1216 = vmatmul.bf16.gmra.mxu0 %v608
        %v1217 = vpop.f32.mrf.mxu0
        %v1218 = vadd.f32 %v358, %v1217
        %v1219 = vpop.f32.mrf.mxu0
        %v1220 = vadd.f32 %v358, %v1219
        %1221 = vmatmul.bf16.gmra.mxu0 %v611
        %v1222 = vpop.f32.mrf.mxu0
        %v1223 = vadd.f32 %v358, %v1222
        %v1224 = vpop.f32.mrf.mxu0
        %v1225 = vadd.f32 %v358, %v1224
        %1226 = vmatmul.bf16.gmra.mxu0 %v614
        %v1227 = vpop.f32.mrf.mxu0
        %v1228 = vadd.f32 %v358, %v1227
        %v1229 = vpop.f32.mrf.mxu0
        %v1230 = vadd.f32 %v358, %v1229
        %1231 = vmatmul.bf16.gmra.mxu0 %v617
        %v1232 = vpop.f32.mrf.mxu0
        %v1233 = vadd.f32 %v358, %v1232
        %v1234 = vpop.f32.mrf.mxu0
        %v1235 = vadd.f32 %v358, %v1234
        %1236 = vmatmul.bf16.gmra.mxu0 %v620
        %v1237 = vpop.f32.mrf.mxu0
        %v1238 = vadd.f32 %v358, %v1237
        %v1239 = vpop.f32.mrf.mxu0
        %v1240 = vadd.f32 %v358, %v1239
        %1241 = vmatmul.bf16.gmra.mxu0 %v623
        %v1242 = vpop.f32.mrf.mxu0
        %v1243 = vadd.f32 %v358, %v1242
        %v1244 = vpop.f32.mrf.mxu0
        %v1245 = vadd.f32 %v358, %v1244
        %1246 = vmatmul.bf16.gmra.mxu0 %v626
        %v1247 = vpop.f32.mrf.mxu0
        %v1248 = vadd.f32 %v358, %v1247
        %v1249 = vpop.f32.mrf.mxu0
        %v1250 = vadd.f32 %v358, %v1249
        %1251 = vmatmul.bf16.gmra.mxu0 %v629
        %v1252 = vpop.f32.mrf.mxu0
        %v1253 = vadd.f32 %v358, %v1252
        %v1254 = vpop.f32.mrf.mxu0
        %v1255 = vadd.f32 %v358, %v1254
        %1256 = vmatmul.bf16.gmra.mxu0 %v632
        %v1257 = vpop.f32.mrf.mxu0
        %v1258 = vadd.f32 %v358, %v1257
        %v1259 = vpop.f32.mrf.mxu0
        %v1260 = vadd.f32 %v358, %v1259
        %1261 = vmatmul.bf16.gmra.mxu0 %v635
        %v1262 = vpop.f32.mrf.mxu0
        %v1263 = vadd.f32 %v358, %v1262
        %v1264 = vpop.f32.mrf.mxu0
        %v1265 = vadd.f32 %v358, %v1264
        %1266 = vmatmul.bf16.gmra.mxu0 %v638
        %v1267 = vpop.f32.mrf.mxu0
        %v1268 = vadd.f32 %v358, %v1267
        %v1269 = vpop.f32.mrf.mxu0
        %v1270 = vadd.f32 %v358, %v1269
        %1271 = vdwg.mxu0
        %v1272 = vmax.f32 %v650, 0.0
        %v1273 = vmax.f32 %v729, 0.0
        %v1274 = vmax.f32 %v808, 0.0
        %v1275 = vmax.f32 %v887, 0.0
        %v1276 = vmax.f32 %v966, 0.0
        %v1277 = vmax.f32 %v1045, 0.0
        %v1278 = vmax.f32 %v1124, 0.0
        %v1279 = vmax.f32 %v1203, 0.0
        %v1280 = vmax.f32 %v652, 0.0
        %v1281 = vmax.f32 %v731, 0.0
        %v1282 = vmax.f32 %v810, 0.0
        %v1283 = vmax.f32 %v889, 0.0
        %v1284 = vmax.f32 %v968, 0.0
        %v1285 = vmax.f32 %v1047, 0.0
        %v1286 = vmax.f32 %v1126, 0.0
        %v1287 = vmax.f32 %v1205, 0.0
        %v1288 = vmax.f32 %v655, 0.0
        %v1289 = vmax.f32 %v734, 0.0
        %v1290 = vmax.f32 %v813, 0.0
        %v1291 = vmax.f32 %v892, 0.0
        %v1292 = vmax.f32 %v971, 0.0
        %v1293 = vmax.f32 %v1050, 0.0
        %v1294 = vmax.f32 %v1129, 0.0
        %v1295 = vmax.f32 %v1208, 0.0
        %v1296 = vmax.f32 %v657, 0.0
        %v1297 = vmax.f32 %v736, 0.0
        %v1298 = vmax.f32 %v815, 0.0
        %v1299 = vmax.f32 %v894, 0.0
        %v1300 = vmax.f32 %v973, 0.0
        %v1301 = vmax.f32 %v1052, 0.0
        %v1302 = vmax.f32 %v1131, 0.0
        %v1303 = vmax.f32 %v1210, 0.0
        %v1304 = vmax.f32 %v660, 0.0
        %v1305 = vmax.f32 %v739, 0.0
        %v1306 = vmax.f32 %v818, 0.0
        %v1307 = vmax.f32 %v897, 0.0
        %v1308 = vmax.f32 %v976, 0.0
        %v1309 = vmax.f32 %v1055, 0.0
        %v1310 = vmax.f32 %v1134, 0.0
        %v1311 = vmax.f32 %v1213, 0.0
        %v1312 = vmax.f32 %v662, 0.0
        %v1313 = vmax.f32 %v741, 0.0
        %v1314 = vmax.f32 %v820, 0.0
        %v1315 = vmax.f32 %v899, 0.0
        %v1316 = vmax.f32 %v978, 0.0
        %v1317 = vmax.f32 %v1057, 0.0
        %v1318 = vmax.f32 %v1136, 0.0
        %v1319 = vmax.f32 %v1215, 0.0
        %v1320 = vmax.f32 %v665, 0.0
        %v1321 = vmax.f32 %v744, 0.0
        %v1322 = vmax.f32 %v823, 0.0
        %v1323 = vmax.f32 %v902, 0.0
        %v1324 = vmax.f32 %v981, 0.0
        %v1325 = vmax.f32 %v1060, 0.0
        %v1326 = vmax.f32 %v1139, 0.0
        %v1327 = vmax.f32 %v1218, 0.0
        %v1328 = vmax.f32 %v667, 0.0
        %v1329 = vmax.f32 %v746, 0.0
        %v1330 = vmax.f32 %v825, 0.0
        %v1331 = vmax.f32 %v904, 0.0
        %v1332 = vmax.f32 %v983, 0.0
        %v1333 = vmax.f32 %v1062, 0.0
        %v1334 = vmax.f32 %v1141, 0.0
        %v1335 = vmax.f32 %v1220, 0.0
        %v1336 = vmax.f32 %v670, 0.0
        %v1337 = vmax.f32 %v749, 0.0
        %v1338 = vmax.f32 %v828, 0.0
        %v1339 = vmax.f32 %v907, 0.0
        %v1340 = vmax.f32 %v986, 0.0
        %v1341 = vmax.f32 %v1065, 0.0
        %v1342 = vmax.f32 %v1144, 0.0
        %v1343 = vmax.f32 %v1223, 0.0
        %v1344 = vmax.f32 %v672, 0.0
        %v1345 = vmax.f32 %v751, 0.0
        %v1346 = vmax.f32 %v830, 0.0
        %v1347 = vmax.f32 %v909, 0.0
        %v1348 = vmax.f32 %v988, 0.0
        %v1349 = vmax.f32 %v1067, 0.0
        %v1350 = vmax.f32 %v1146, 0.0
        %v1351 = vmax.f32 %v1225, 0.0
        %v1352 = vmax.f32 %v675, 0.0
        %v1353 = vmax.f32 %v754, 0.0
        %v1354 = vmax.f32 %v833, 0.0
        %v1355 = vmax.f32 %v912, 0.0
        %v1356 = vmax.f32 %v991, 0.0
        %v1357 = vmax.f32 %v1070, 0.0
        %v1358 = vmax.f32 %v1149, 0.0
        %v1359 = vmax.f32 %v1228, 0.0
        %v1360 = vmax.f32 %v677, 0.0
        %v1361 = vmax.f32 %v756, 0.0
        %v1362 = vmax.f32 %v835, 0.0
        %v1363 = vmax.f32 %v914, 0.0
        %v1364 = vmax.f32 %v993, 0.0
        %v1365 = vmax.f32 %v1072, 0.0
        %v1366 = vmax.f32 %v1151, 0.0
        %v1367 = vmax.f32 %v1230, 0.0
        %v1368 = vmax.f32 %v680, 0.0
        %v1369 = vmax.f32 %v759, 0.0
        %v1370 = vmax.f32 %v838, 0.0
        %v1371 = vmax.f32 %v917, 0.0
        %v1372 = vmax.f32 %v996, 0.0
        %v1373 = vmax.f32 %v1075, 0.0
        %v1374 = vmax.f32 %v1154, 0.0
        %v1375 = vmax.f32 %v1233, 0.0
        %v1376 = vmax.f32 %v682, 0.0
        %v1377 = vmax.f32 %v761, 0.0
        %v1378 = vmax.f32 %v840, 0.0
        %v1379 = vmax.f32 %v919, 0.0
        %v1380 = vmax.f32 %v998, 0.0
        %v1381 = vmax.f32 %v1077, 0.0
        %v1382 = vmax.f32 %v1156, 0.0
        %v1383 = vmax.f32 %v1235, 0.0
        %v1384 = vmax.f32 %v685, 0.0
        %v1385 = vmax.f32 %v764, 0.0
        %v1386 = vmax.f32 %v843, 0.0
        %v1387 = vmax.f32 %v922, 0.0
        %v1388 = vmax.f32 %v1001, 0.0
        %v1389 = vmax.f32 %v1080, 0.0
        %v1390 = vmax.f32 %v1159, 0.0
        %v1391 = vmax.f32 %v1238, 0.0
        %v1392 = vmax.f32 %v687, 0.0
        %v1393 = vmax.f32 %v766, 0.0
        %v1394 = vmax.f32 %v845, 0.0
        %v1395 = vmax.f32 %v924, 0.0
        %v1396 = vmax.f32 %v1003, 0.0
        %v1397 = vmax.f32 %v1082, 0.0
        %v1398 = vmax.f32 %v1161, 0.0
        %v1399 = vmax.f32 %v1240, 0.0
        %v1400 = vmax.f32 %v690, 0.0
        %v1401 = vmax.f32 %v769, 0.0
        %v1402 = vmax.f32 %v848, 0.0
        %v1403 = vmax.f32 %v927, 0.0
        %v1404 = vmax.f32 %v1006, 0.0
        %v1405 = vmax.f32 %v1085, 0.0
        %v1406 = vmax.f32 %v1164, 0.0
        %v1407 = vmax.f32 %v1243, 0.0
        %v1408 = vmax.f32 %v692, 0.0
        %v1409 = vmax.f32 %v771, 0.0
        %v1410 = vmax.f32 %v850, 0.0
        %v1411 = vmax.f32 %v929, 0.0
        %v1412 = vmax.f32 %v1008, 0.0
        %v1413 = vmax.f32 %v1087, 0.0
        %v1414 = vmax.f32 %v1166, 0.0
        %v1415 = vmax.f32 %v1245, 0.0
        %v1416 = vmax.f32 %v695, 0.0
        %v1417 = vmax.f32 %v774, 0.0
        %v1418 = vmax.f32 %v853, 0.0
        %v1419 = vmax.f32 %v932, 0.0
        %v1420 = vmax.f32 %v1011, 0.0
        %v1421 = vmax.f32 %v1090, 0.0
        %v1422 = vmax.f32 %v1169, 0.0
        %v1423 = vmax.f32 %v1248, 0.0
        %v1424 = vmax.f32 %v697, 0.0
        %v1425 = vmax.f32 %v776, 0.0
        %v1426 = vmax.f32 %v855, 0.0
        %v1427 = vmax.f32 %v934, 0.0
        %v1428 = vmax.f32 %v1013, 0.0
        %v1429 = vmax.f32 %v1092, 0.0
        %v1430 = vmax.f32 %v1171, 0.0
        %v1431 = vmax.f32 %v1250, 0.0
        %v1432 = vmax.f32 %v700, 0.0
        %v1433 = vmax.f32 %v779, 0.0
        %v1434 = vmax.f32 %v858, 0.0
        %v1435 = vmax.f32 %v937, 0.0
        %v1436 = vmax.f32 %v1016, 0.0
        %v1437 = vmax.f32 %v1095, 0.0
        %v1438 = vmax.f32 %v1174, 0.0
        %v1439 = vmax.f32 %v1253, 0.0
        %v1440 = vmax.f32 %v702, 0.0
        %v1441 = vmax.f32 %v781, 0.0
        %v1442 = vmax.f32 %v860, 0.0
        %v1443 = vmax.f32 %v939, 0.0
        %v1444 = vmax.f32 %v1018, 0.0
        %v1445 = vmax.f32 %v1097, 0.0
        %v1446 = vmax.f32 %v1176, 0.0
        %v1447 = vmax.f32 %v1255, 0.0
        %v1448 = vmax.f32 %v705, 0.0
        %v1449 = vmax.f32 %v784, 0.0
        %v1450 = vmax.f32 %v863, 0.0
        %v1451 = vmax.f32 %v942, 0.0
        %v1452 = vmax.f32 %v1021, 0.0
        %v1453 = vmax.f32 %v1100, 0.0
        %v1454 = vmax.f32 %v1179, 0.0
        %v1455 = vmax.f32 %v1258, 0.0
        %v1456 = vmax.f32 %v707, 0.0
        %v1457 = vmax.f32 %v786, 0.0
        %v1458 = vmax.f32 %v865, 0.0
        %v1459 = vmax.f32 %v944, 0.0
        %v1460 = vmax.f32 %v1023, 0.0
        %v1461 = vmax.f32 %v1102, 0.0
        %v1462 = vmax.f32 %v1181, 0.0
        %v1463 = vmax.f32 %v1260, 0.0
        %v1464 = vmax.f32 %v710, 0.0
        %v1465 = vmax.f32 %v789, 0.0
        %v1466 = vmax.f32 %v868, 0.0
        %v1467 = vmax.f32 %v947, 0.0
        %v1468 = vmax.f32 %v1026, 0.0
        %v1469 = vmax.f32 %v1105, 0.0
        %v1470 = vmax.f32 %v1184, 0.0
        %v1471 = vmax.f32 %v1263, 0.0
        %v1472 = vmax.f32 %v712, 0.0
        %v1473 = vmax.f32 %v791, 0.0
        %v1474 = vmax.f32 %v870, 0.0
        %v1475 = vmax.f32 %v949, 0.0
        %v1476 = vmax.f32 %v1028, 0.0
        %v1477 = vmax.f32 %v1107, 0.0
        %v1478 = vmax.f32 %v1186, 0.0
        %v1479 = vmax.f32 %v1265, 0.0
        %v1480 = vmax.f32 %v715, 0.0
        %v1481 = vmax.f32 %v794, 0.0
        %v1482 = vmax.f32 %v873, 0.0
        %v1483 = vmax.f32 %v952, 0.0
        %v1484 = vmax.f32 %v1031, 0.0
        %v1485 = vmax.f32 %v1110, 0.0
        %v1486 = vmax.f32 %v1189, 0.0
        %v1487 = vmax.f32 %v1268, 0.0
        %v1488 = vmax.f32 %v717, 0.0
        %v1489 = vmax.f32 %v796, 0.0
        %v1490 = vmax.f32 %v875, 0.0
        %v1491 = vmax.f32 %v954, 0.0
        %v1492 = vmax.f32 %v1033, 0.0
        %v1493 = vmax.f32 %v1112, 0.0
        %v1494 = vmax.f32 %v1191, 0.0
        %v1495 = vmax.f32 %v1270, 0.0
        %v1496 = vmin.f32 %v1272, 6.0
        %v1497 = vmin.f32 %v1273, 6.0
        %v1498 = vmin.f32 %v1274, 6.0
        %v1499 = vmin.f32 %v1275, 6.0
        %v1500 = vmin.f32 %v1276, 6.0
        %v1501 = vmin.f32 %v1277, 6.0
        %v1502 = vmin.f32 %v1278, 6.0
        %v1503 = vmin.f32 %v1279, 6.0
        %v1504 = vmin.f32 %v1280, 6.0
        %v1505 = vmin.f32 %v1281, 6.0
        %v1506 = vmin.f32 %v1282, 6.0
        %v1507 = vmin.f32 %v1283, 6.0
        %v1508 = vmin.f32 %v1284, 6.0
        %v1509 = vmin.f32 %v1285, 6.0
        %v1510 = vmin.f32 %v1286, 6.0
        %v1511 = vmin.f32 %v1287, 6.0
        %v1512 = vmin.f32 %v1288, 6.0
        %v1513 = vmin.f32 %v1289, 6.0
        %v1514 = vmin.f32 %v1290, 6.0
        %v1515 = vmin.f32 %v1291, 6.0
        %v1516 = vmin.f32 %v1292, 6.0
        %v1517 = vmin.f32 %v1293, 6.0
        %v1518 = vmin.f32 %v1294, 6.0
        %v1519 = vmin.f32 %v1295, 6.0
        %v1520 = vmin.f32 %v1296, 6.0
        %v1521 = vmin.f32 %v1297, 6.0
        %v1522 = vmin.f32 %v1298, 6.0
        %v1523 = vmin.f32 %v1299, 6.0
        %v1524 = vmin.f32 %v1300, 6.0
        %v1525 = vmin.f32 %v1301, 6.0
        %v1526 = vmin.f32 %v1302, 6.0
        %v1527 = vmin.f32 %v1303, 6.0
        %v1528 = vmin.f32 %v1304, 6.0
        %v1529 = vmin.f32 %v1305, 6.0
        %v1530 = vmin.f32 %v1306, 6.0
        %v1531 = vmin.f32 %v1307, 6.0
        %v1532 = vmin.f32 %v1308, 6.0
        %v1533 = vmin.f32 %v1309, 6.0
        %v1534 = vmin.f32 %v1310, 6.0
        %v1535 = vmin.f32 %v1311, 6.0
        %v1536 = vmin.f32 %v1312, 6.0
        %v1537 = vmin.f32 %v1313, 6.0
        %v1538 = vmin.f32 %v1314, 6.0
        %v1539 = vmin.f32 %v1315, 6.0
        %v1540 = vmin.f32 %v1316, 6.0
        %v1541 = vmin.f32 %v1317, 6.0
        %v1542 = vmin.f32 %v1318, 6.0
        %v1543 = vmin.f32 %v1319, 6.0
        %v1544 = vmin.f32 %v1320, 6.0
        %v1545 = vmin.f32 %v1321, 6.0
        %v1546 = vmin.f32 %v1322, 6.0
        %v1547 = vmin.f32 %v1323, 6.0
        %v1548 = vmin.f32 %v1324, 6.0
        %v1549 = vmin.f32 %v1325, 6.0
        %v1550 = vmin.f32 %v1326, 6.0
        %v1551 = vmin.f32 %v1327, 6.0
        %v1552 = vmin.f32 %v1328, 6.0
        %v1553 = vmin.f32 %v1329, 6.0
        %v1554 = vmin.f32 %v1330, 6.0
        %v1555 = vmin.f32 %v1331, 6.0
        %v1556 = vmin.f32 %v1332, 6.0
        %v1557 = vmin.f32 %v1333, 6.0
        %v1558 = vmin.f32 %v1334, 6.0
        %v1559 = vmin.f32 %v1335, 6.0
        %v1560 = vmin.f32 %v1336, 6.0
        %v1561 = vmin.f32 %v1337, 6.0
        %v1562 = vmin.f32 %v1338, 6.0
        %v1563 = vmin.f32 %v1339, 6.0
        %v1564 = vmin.f32 %v1340, 6.0
        %v1565 = vmin.f32 %v1341, 6.0
        %v1566 = vmin.f32 %v1342, 6.0
        %v1567 = vmin.f32 %v1343, 6.0
        %v1568 = vmin.f32 %v1344, 6.0
        %v1569 = vmin.f32 %v1345, 6.0
        %v1570 = vmin.f32 %v1346, 6.0
        %v1571 = vmin.f32 %v1347, 6.0
        %v1572 = vmin.f32 %v1348, 6.0
        %v1573 = vmin.f32 %v1349, 6.0
        %v1574 = vmin.f32 %v1350, 6.0
        %v1575 = vmin.f32 %v1351, 6.0
        %v1576 = vmin.f32 %v1352, 6.0
        %v1577 = vmin.f32 %v1353, 6.0
        %v1578 = vmin.f32 %v1354, 6.0
        %v1579 = vmin.f32 %v1355, 6.0
        %v1580 = vmin.f32 %v1356, 6.0
        %v1581 = vmin.f32 %v1357, 6.0
        %v1582 = vmin.f32 %v1358, 6.0
        %v1583 = vmin.f32 %v1359, 6.0
        %v1584 = vmin.f32 %v1360, 6.0
        %v1585 = vmin.f32 %v1361, 6.0
        %v1586 = vmin.f32 %v1362, 6.0
        %v1587 = vmin.f32 %v1363, 6.0
        %v1588 = vmin.f32 %v1364, 6.0
        %v1589 = vmin.f32 %v1365, 6.0
        %v1590 = vmin.f32 %v1366, 6.0
        %v1591 = vmin.f32 %v1367, 6.0
        %v1592 = vmin.f32 %v1368, 6.0
        %v1593 = vmin.f32 %v1369, 6.0
        %v1594 = vmin.f32 %v1370, 6.0
        %v1595 = vmin.f32 %v1371, 6.0
        %v1596 = vmin.f32 %v1372, 6.0
        %v1597 = vmin.f32 %v1373, 6.0
        %v1598 = vmin.f32 %v1374, 6.0
        %v1599 = vmin.f32 %v1375, 6.0
        %v1600 = vmin.f32 %v1376, 6.0
        %v1601 = vmin.f32 %v1377, 6.0
        %v1602 = vmin.f32 %v1378, 6.0
        %v1603 = vmin.f32 %v1379, 6.0
        %v1604 = vmin.f32 %v1380, 6.0
        %v1605 = vmin.f32 %v1381, 6.0
        %v1606 = vmin.f32 %v1382, 6.0
        %v1607 = vmin.f32 %v1383, 6.0
        %v1608 = vmin.f32 %v1384, 6.0
        %v1609 = vmin.f32 %v1385, 6.0
        %v1610 = vmin.f32 %v1386, 6.0
        %v1611 = vmin.f32 %v1387, 6.0
        %v1612 = vmin.f32 %v1388, 6.0
        %v1613 = vmin.f32 %v1389, 6.0
        %v1614 = vmin.f32 %v1390, 6.0
        %v1615 = vmin.f32 %v1391, 6.0
        %v1616 = vmin.f32 %v1392, 6.0
        %v1617 = vmin.f32 %v1393, 6.0
        %v1618 = vmin.f32 %v1394, 6.0
        %v1619 = vmin.f32 %v1395, 6.0
        %v1620 = vmin.f32 %v1396, 6.0
        %v1621 = vmin.f32 %v1397, 6.0
        %v1622 = vmin.f32 %v1398, 6.0
        %v1623 = vmin.f32 %v1399, 6.0
        %v1624 = vmin.f32 %v1400, 6.0
        %v1625 = vmin.f32 %v1401, 6.0
        %v1626 = vmin.f32 %v1402, 6.0
        %v1627 = vmin.f32 %v1403, 6.0
        %v1628 = vmin.f32 %v1404, 6.0
        %v1629 = vmin.f32 %v1405, 6.0
        %v1630 = vmin.f32 %v1406, 6.0
        %v1631 = vmin.f32 %v1407, 6.0
        %v1632 = vmin.f32 %v1408, 6.0
        %v1633 = vmin.f32 %v1409, 6.0
        %v1634 = vmin.f32 %v1410, 6.0
        %v1635 = vmin.f32 %v1411, 6.0
        %v1636 = vmin.f32 %v1412, 6.0
        %v1637 = vmin.f32 %v1413, 6.0
        %v1638 = vmin.f32 %v1414, 6.0
        %v1639 = vmin.f32 %v1415, 6.0
        %v1640 = vmin.f32 %v1416, 6.0
        %v1641 = vmin.f32 %v1417, 6.0
        %v1642 = vmin.f32 %v1418, 6.0
        %v1643 = vmin.f32 %v1419, 6.0
        %v1644 = vmin.f32 %v1420, 6.0
        %v1645 = vmin.f32 %v1421, 6.0
        %v1646 = vmin.f32 %v1422, 6.0
        %v1647 = vmin.f32 %v1423, 6.0
        %v1648 = vmin.f32 %v1424, 6.0
        %v1649 = vmin.f32 %v1425, 6.0
        %v1650 = vmin.f32 %v1426, 6.0
        %v1651 = vmin.f32 %v1427, 6.0
        %v1652 = vmin.f32 %v1428, 6.0
        %v1653 = vmin.f32 %v1429, 6.0
        %v1654 = vmin.f32 %v1430, 6.0
        %v1655 = vmin.f32 %v1431, 6.0
        %v1656 = vmin.f32 %v1432, 6.0
        %v1657 = vmin.f32 %v1433, 6.0
        %v1658 = vmin.f32 %v1434, 6.0
        %v1659 = vmin.f32 %v1435, 6.0
        %v1660 = vmin.f32 %v1436, 6.0
        %v1661 = vmin.f32 %v1437, 6.0
        %v1662 = vmin.f32 %v1438, 6.0
        %v1663 = vmin.f32 %v1439, 6.0
        %v1664 = vmin.f32 %v1440, 6.0
        %v1665 = vmin.f32 %v1441, 6.0
        %v1666 = vmin.f32 %v1442, 6.0
        %v1667 = vmin.f32 %v1443, 6.0
        %v1668 = vmin.f32 %v1444, 6.0
        %v1669 = vmin.f32 %v1445, 6.0
        %v1670 = vmin.f32 %v1446, 6.0
        %v1671 = vmin.f32 %v1447, 6.0
        %v1672 = vmin.f32 %v1448, 6.0
        %v1673 = vmin.f32 %v1449, 6.0
        %v1674 = vmin.f32 %v1450, 6.0
        %v1675 = vmin.f32 %v1451, 6.0
        %v1676 = vmin.f32 %v1452, 6.0
        %v1677 = vmin.f32 %v1453, 6.0
        %v1678 = vmin.f32 %v1454, 6.0
        %v1679 = vmin.f32 %v1455, 6.0
        %v1680 = vmin.f32 %v1456, 6.0
        %v1681 = vmin.f32 %v1457, 6.0
        %v1682 = vmin.f32 %v1458, 6.0
        %v1683 = vmin.f32 %v1459, 6.0
        %v1684 = vmin.f32 %v1460, 6.0
        %v1685 = vmin.f32 %v1461, 6.0
        %v1686 = vmin.f32 %v1462, 6.0
        %v1687 = vmin.f32 %v1463, 6.0
        %v1688 = vmin.f32 %v1464, 6.0
        %v1689 = vmin.f32 %v1465, 6.0
        %v1690 = vmin.f32 %v1466, 6.0
        %v1691 = vmin.f32 %v1467, 6.0
        %v1692 = vmin.f32 %v1468, 6.0
        %v1693 = vmin.f32 %v1469, 6.0
        %v1694 = vmin.f32 %v1470, 6.0
        %v1695 = vmin.f32 %v1471, 6.0
        %v1696 = vmin.f32 %v1472, 6.0
        %v1697 = vmin.f32 %v1473, 6.0
        %v1698 = vmin.f32 %v1474, 6.0
        %v1699 = vmin.f32 %v1475, 6.0
        %v1700 = vmin.f32 %v1476, 6.0
        %v1701 = vmin.f32 %v1477, 6.0
        %v1702 = vmin.f32 %v1478, 6.0
        %v1703 = vmin.f32 %v1479, 6.0
        %v1704 = vmin.f32 %v1480, 6.0
        %v1705 = vmin.f32 %v1481, 6.0
        %v1706 = vmin.f32 %v1482, 6.0
        %v1707 = vmin.f32 %v1483, 6.0
        %v1708 = vmin.f32 %v1484, 6.0
        %v1709 = vmin.f32 %v1485, 6.0
        %v1710 = vmin.f32 %v1486, 6.0
        %v1711 = vmin.f32 %v1487, 6.0
        %v1712 = vmin.f32 %v1488, 6.0
        %v1713 = vmin.f32 %v1489, 6.0
        %v1714 = vmin.f32 %v1490, 6.0
        %v1715 = vmin.f32 %v1491, 6.0
        %v1716 = vmin.f32 %v1492, 6.0
        %v1717 = vmin.f32 %v1493, 6.0
        %v1718 = vmin.f32 %v1494, 6.0
        %v1719 = vmin.f32 %v1495, 6.0
        %v1720 = vld [vmem:[#allocation2] sm:$0xff]
        %v1721 = vld [vmem:[#allocation2 + $0x8] sm:$0xff]
        %v1722 = vld [vmem:[#allocation2 + $0x10] sm:$0xff]
        %v1723 = vld [vmem:[#allocation2 + $0x18] sm:$0xff]
        %v1724 = vld [vmem:[#allocation2 + $0x20] sm:$0xff]
        %v1725 = vld [vmem:[#allocation2 + $0x28] sm:$0xff]
        %v1726 = vld [vmem:[#allocation2 + $0x30] sm:$0xff]
        %v1727 = vld [vmem:[#allocation2 + $0x38] sm:$0xff]
        %v1728 = vld [vmem:[#allocation2 + $0x40] sm:$0xff]
        %v1729 = vld [vmem:[#allocation2 + $0x48] sm:$0xff]
        %v1730 = vld [vmem:[#allocation2 + $0x50] sm:$0xff]
        %v1731 = vld [vmem:[#allocation2 + $0x58] sm:$0xff]
        %v1732 = vld [vmem:[#allocation2 + $0x60] sm:$0xff]
        %v1733 = vld [vmem:[#allocation2 + $0x68] sm:$0xff]
        %v1734 = vld [vmem:[#allocation2 + $0x70] sm:$0xff]
        %v1735 = vld [vmem:[#allocation2 + $0x78] sm:$0xff]
        %v1736 = vld [vmem:[#allocation2 + $0x80] sm:$0xff]
        %v1737 = vld [vmem:[#allocation2 + $0x88] sm:$0xff]
        %v1738 = vld [vmem:[#allocation2 + $0x90] sm:$0xff]
        %v1739 = vld [vmem:[#allocation2 + $0x98] sm:$0xff]
        %v1740 = vld [vmem:[#allocation2 + $0xa0] sm:$0xff]
        %v1741 = vld [vmem:[#allocation2 + $0xa8] sm:$0xff]
        %v1742 = vld [vmem:[#allocation2 + $0xb0] sm:$0xff]
        %v1743 = vld [vmem:[#allocation2 + $0xb8] sm:$0xff]
        %v1744 = vld [vmem:[#allocation2 + $0xc0] sm:$0xff]
        %v1745 = vld [vmem:[#allocation2 + $0xc8] sm:$0xff]
        %v1746 = vld [vmem:[#allocation2 + $0xd0] sm:$0xff]
        %v1747 = vld [vmem:[#allocation2 + $0xd8] sm:$0xff]
        %v1748 = vld [vmem:[#allocation2 + $0xe0] sm:$0xff]
        %v1749 = vld [vmem:[#allocation2 + $0xe8] sm:$0xff]
        %v1750 = vld [vmem:[#allocation2 + $0xf0] sm:$0xff]
        %v1751 = vld [vmem:[#allocation2 + $0xf8] sm:$0xff]
        %v1752 = vld [vmem:[#allocation2 + $0x100] sm:$0xff]
        %v1753 = vld [vmem:[#allocation2 + $0x108] sm:$0xff]
        %v1754 = vld [vmem:[#allocation2 + $0x110] sm:$0xff]
        %v1755 = vld [vmem:[#allocation2 + $0x118] sm:$0xff]
        %v1756 = vld [vmem:[#allocation2 + $0x120] sm:$0xff]
        %v1757 = vld [vmem:[#allocation2 + $0x128] sm:$0xff]
        %v1758 = vld [vmem:[#allocation2 + $0x130] sm:$0xff]
        %v1759 = vld [vmem:[#allocation2 + $0x138] sm:$0xff]
        %v1760 = vld [vmem:[#allocation2 + $0x140] sm:$0xff]
        %v1761 = vld [vmem:[#allocation2 + $0x148] sm:$0xff]
        %v1762 = vld [vmem:[#allocation2 + $0x150] sm:$0xff]
        %v1763 = vld [vmem:[#allocation2 + $0x158] sm:$0xff]
        %v1764 = vld [vmem:[#allocation2 + $0x160] sm:$0xff]
        %v1765 = vld [vmem:[#allocation2 + $0x168] sm:$0xff]
        %v1766 = vld [vmem:[#allocation2 + $0x170] sm:$0xff]
        %v1767 = vld [vmem:[#allocation2 + $0x178] sm:$0xff]
        %v1768 = vld [vmem:[#allocation2 + $0x180] sm:$0xff]
        %v1769 = vld [vmem:[#allocation2 + $0x188] sm:$0xff]
        %v1770 = vld [vmem:[#allocation2 + $0x190] sm:$0xff]
        %v1771 = vld [vmem:[#allocation2 + $0x198] sm:$0xff]
        %v1772 = vld [vmem:[#allocation2 + $0x1a0] sm:$0xff]
        %v1773 = vld [vmem:[#allocation2 + $0x1a8] sm:$0xff]
        %v1774 = vld [vmem:[#allocation2 + $0x1b0] sm:$0xff]
        %v1775 = vld [vmem:[#allocation2 + $0x1b8] sm:$0xff]
        %v1776 = vmul.f32 %v1496, %v1720
        %v1777 = vmul.f32 %v1497, %v1721
        %v1778 = vmul.f32 %v1498, %v1722
        %v1779 = vmul.f32 %v1499, %v1723
        %v1780 = vmul.f32 %v1500, %v1724
        %v1781 = vmul.f32 %v1501, %v1725
        %v1782 = vmul.f32 %v1502, %v1726
        %v1783 = vmul.f32 %v1503, %v1727
        %v1784 = vmul.f32 %v1504, %v1728
        %v1785 = vmul.f32 %v1505, %v1729
        %v1786 = vmul.f32 %v1506, %v1730
        %v1787 = vmul.f32 %v1507, %v1731
        %v1788 = vmul.f32 %v1508, %v1732
        %v1789 = vmul.f32 %v1509, %v1733
        %v1790 = vmul.f32 %v1510, %v1734
        %v1791 = vmul.f32 %v1511, %v1735
        %v1792 = vmul.f32 %v1512, %v1736
        %v1793 = vmul.f32 %v1513, %v1737
        %v1794 = vmul.f32 %v1514, %v1738
        %v1795 = vmul.f32 %v1515, %v1739
        %v1796 = vmul.f32 %v1516, %v1740
        %v1797 = vmul.f32 %v1517, %v1741
        %v1798 = vmul.f32 %v1518, %v1742
        %v1799 = vmul.f32 %v1519, %v1743
        %v1800 = vmul.f32 %v1520, %v1744
        %v1801 = vmul.f32 %v1521, %v1745
        %v1802 = vmul.f32 %v1522, %v1746
        %v1803 = vmul.f32 %v1523, %v1747
        %v1804 = vmul.f32 %v1524, %v1748
        %v1805 = vmul.f32 %v1525, %v1749
        %v1806 = vmul.f32 %v1526, %v1750
        %v1807 = vmul.f32 %v1527, %v1751
        %v1808 = vmul.f32 %v1528, %v1752
        %v1809 = vmul.f32 %v1529, %v1753
        %v1810 = vmul.f32 %v1530, %v1754
        %v1811 = vmul.f32 %v1531, %v1755
        %v1812 = vmul.f32 %v1532, %v1756
        %v1813 = vmul.f32 %v1533, %v1757
        %v1814 = vmul.f32 %v1534, %v1758
        %v1815 = vmul.f32 %v1535, %v1759
        %v1816 = vmul.f32 %v1536, %v1760
        %v1817 = vmul.f32 %v1537, %v1761
        %v1818 = vmul.f32 %v1538, %v1762
        %v1819 = vmul.f32 %v1539, %v1763
        %v1820 = vmul.f32 %v1540, %v1764
        %v1821 = vmul.f32 %v1541, %v1765
        %v1822 = vmul.f32 %v1542, %v1766
        %v1823 = vmul.f32 %v1543, %v1767
        %v1824 = vmul.f32 %v1544, %v1768
        %v1825 = vmul.f32 %v1545, %v1769
        %v1826 = vmul.f32 %v1546, %v1770
        %v1827 = vmul.f32 %v1547, %v1771
        %v1828 = vmul.f32 %v1548, %v1772
        %v1829 = vmul.f32 %v1549, %v1773
        %v1830 = vmul.f32 %v1550, %v1774
        %v1831 = vmul.f32 %v1551, %v1775
        %v1832 = vadd.f32 %v1776, %v1777
        %v1833 = vadd.f32 %v1784, %v1785
        %v1834 = vadd.f32 %v1792, %v1793
        %v1835 = vadd.f32 %v1800, %v1801
        %v1836 = vadd.f32 %v1808, %v1809
        %v1837 = vadd.f32 %v1816, %v1817
        %v1838 = vadd.f32 %v1824, %v1825
        %v1839 = vadd.f32 %v1778, %v1779
        %v1840 = vadd.f32 %v1786, %v1787
        %v1841 = vadd.f32 %v1794, %v1795
        %v1842 = vadd.f32 %v1802, %v1803
        %v1843 = vadd.f32 %v1810, %v1811
        %v1844 = vadd.f32 %v1818, %v1819
        %v1845 = vadd.f32 %v1826, %v1827
        %v1846 = vadd.f32 %v1780, %v1781
        %v1847 = vadd.f32 %v1788, %v1789
        %v1848 = vadd.f32 %v1796, %v1797
        %v1849 = vadd.f32 %v1804, %v1805
        %v1850 = vadd.f32 %v1812, %v1813
        %v1851 = vadd.f32 %v1820, %v1821
        %v1852 = vadd.f32 %v1828, %v1829
        %v1853 = vadd.f32 %v1782, %v1783
        %v1854 = vadd.f32 %v1790, %v1791
        %v1855 = vadd.f32 %v1798, %v1799
        %v1856 = vadd.f32 %v1806, %v1807
        %v1857 = vadd.f32 %v1814, %v1815
        %v1858 = vadd.f32 %v1822, %v1823
        %v1859 = vadd.f32 %v1830, %v1831
        %v1860 = vadd.f32 %v1832, %v1839
        %v1861 = vadd.f32 %v1833, %v1840
        %v1862 = vadd.f32 %v1834, %v1841
        %v1863 = vadd.f32 %v1835, %v1842
        %v1864 = vadd.f32 %v1836, %v1843
        %v1865 = vadd.f32 %v1837, %v1844
        %v1866 = vadd.f32 %v1838, %v1845
        %v1867 = vadd.f32 %v1846, %v1853
        %v1868 = vadd.f32 %v1847, %v1854
        %v1869 = vadd.f32 %v1848, %v1855
        %v1870 = vadd.f32 %v1849, %v1856
        %v1871 = vadd.f32 %v1850, %v1857
        %v1872 = vadd.f32 %v1851, %v1858
        %v1873 = vadd.f32 %v1852, %v1859
        %v1874 = vadd.f32 %v1860, %v1867
        %v1875 = vadd.f32 %v1861, %v1868
        %v1876 = vadd.f32 %v1862, %v1869
        %v1877 = vadd.f32 %v1863, %v1870
        %v1878 = vadd.f32 %v1864, %v1871
        %v1879 = vadd.f32 %v1865, %v1872
        %v1880 = vadd.f32 %v1866, %v1873
        %v1881 = vadd.f32 %v1874, %v1875
        %v1882 = vadd.f32 %v1881, %v1876
        %v1883 = vadd.f32 %v1882, %v1877
        %v1884 = vadd.f32 %v1883, %v1878
        %v1885 = vadd.f32 %v1884, %v1879
        %v1886 = vadd.f32 %v1885, %v1880
        %v1887 = vrot.slane %v1886, 4
        %v1888 = vadd.f32 %v1886, %v1887
        %v1889 = vrot.slane %v1888, 2
        %v1890 = vadd.f32 %v1888, %v1889
        %v1891 = vrot.slane %v1890, 1
        %v1892 = vadd.f32 %v1890, %v1891
        %s1893 = scalar_lea.vmem [#allocation2], 448
        %v1894 = vld [vmem:[%s1893] sm:$0xff]
        %v1895 = vld [vmem:[%s1893 + $0x8] sm:$0xff]
        %v1896 = vld [vmem:[%s1893 + $0x10] sm:$0xff]
        %v1897 = vld [vmem:[%s1893 + $0x18] sm:$0xff]
        %v1898 = vld [vmem:[%s1893 + $0x20] sm:$0xff]
        %v1899 = vld [vmem:[%s1893 + $0x28] sm:$0xff]
        %v1900 = vld [vmem:[%s1893 + $0x30] sm:$0xff]
        %v1901 = vld [vmem:[%s1893 + $0x38] sm:$0xff]
        %v1902 = vld [vmem:[%s1893 + $0x40] sm:$0xff]
        %v1903 = vld [vmem:[%s1893 + $0x48] sm:$0xff]
        %v1904 = vld [vmem:[%s1893 + $0x50] sm:$0xff]
        %v1905 = vld [vmem:[%s1893 + $0x58] sm:$0xff]
        %v1906 = vld [vmem:[%s1893 + $0x60] sm:$0xff]
        %v1907 = vld [vmem:[%s1893 + $0x68] sm:$0xff]
        %v1908 = vld [vmem:[%s1893 + $0x70] sm:$0xff]
        %v1909 = vld [vmem:[%s1893 + $0x78] sm:$0xff]
        %v1910 = vld [vmem:[%s1893 + $0x80] sm:$0xff]
        %v1911 = vld [vmem:[%s1893 + $0x88] sm:$0xff]
        %v1912 = vld [vmem:[%s1893 + $0x90] sm:$0xff]
        %v1913 = vld [vmem:[%s1893 + $0x98] sm:$0xff]
        %v1914 = vld [vmem:[%s1893 + $0xa0] sm:$0xff]
        %v1915 = vld [vmem:[%s1893 + $0xa8] sm:$0xff]
        %v1916 = vld [vmem:[%s1893 + $0xb0] sm:$0xff]
        %v1917 = vld [vmem:[%s1893 + $0xb8] sm:$0xff]
        %v1918 = vld [vmem:[%s1893 + $0xc0] sm:$0xff]
        %v1919 = vld [vmem:[%s1893 + $0xc8] sm:$0xff]
        %v1920 = vld [vmem:[%s1893 + $0xd0] sm:$0xff]
        %v1921 = vld [vmem:[%s1893 + $0xd8] sm:$0xff]
        %v1922 = vld [vmem:[%s1893 + $0xe0] sm:$0xff]
        %v1923 = vld [vmem:[%s1893 + $0xe8] sm:$0xff]
        %v1924 = vld [vmem:[%s1893 + $0xf0] sm:$0xff]
        %v1925 = vld [vmem:[%s1893 + $0xf8] sm:$0xff]
        %v1926 = vld [vmem:[%s1893 + $0x100] sm:$0xff]
        %v1927 = vld [vmem:[%s1893 + $0x108] sm:$0xff]
        %v1928 = vld [vmem:[%s1893 + $0x110] sm:$0xff]
        %v1929 = vld [vmem:[%s1893 + $0x118] sm:$0xff]
        %v1930 = vld [vmem:[%s1893 + $0x120] sm:$0xff]
        %v1931 = vld [vmem:[%s1893 + $0x128] sm:$0xff]
        %v1932 = vld [vmem:[%s1893 + $0x130] sm:$0xff]
        %v1933 = vld [vmem:[%s1893 + $0x138] sm:$0xff]
        %v1934 = vld [vmem:[%s1893 + $0x140] sm:$0xff]
        %v1935 = vld [vmem:[%s1893 + $0x148] sm:$0xff]
        %v1936 = vld [vmem:[%s1893 + $0x150] sm:$0xff]
        %v1937 = vld [vmem:[%s1893 + $0x158] sm:$0xff]
        %v1938 = vld [vmem:[%s1893 + $0x160] sm:$0xff]
        %v1939 = vld [vmem:[%s1893 + $0x168] sm:$0xff]
        %v1940 = vld [vmem:[%s1893 + $0x170] sm:$0xff]
        %v1941 = vld [vmem:[%s1893 + $0x178] sm:$0xff]
        %v1942 = vld [vmem:[%s1893 + $0x180] sm:$0xff]
        %v1943 = vld [vmem:[%s1893 + $0x188] sm:$0xff]
        %v1944 = vld [vmem:[%s1893 + $0x190] sm:$0xff]
        %v1945 = vld [vmem:[%s1893 + $0x198] sm:$0xff]
        %v1946 = vld [vmem:[%s1893 + $0x1a0] sm:$0xff]
        %v1947 = vld [vmem:[%s1893 + $0x1a8] sm:$0xff]
        %v1948 = vld [vmem:[%s1893 + $0x1b0] sm:$0xff]
        %v1949 = vld [vmem:[%s1893 + $0x1b8] sm:$0xff]
        %v1950 = vmul.f32 %v1496, %v1894
        %v1951 = vmul.f32 %v1497, %v1895
        %v1952 = vmul.f32 %v1498, %v1896
        %v1953 = vmul.f32 %v1499, %v1897
        %v1954 = vmul.f32 %v1500, %v1898
        %v1955 = vmul.f32 %v1501, %v1899
        %v1956 = vmul.f32 %v1502, %v1900
        %v1957 = vmul.f32 %v1503, %v1901
        %v1958 = vmul.f32 %v1504, %v1902
        %v1959 = vmul.f32 %v1505, %v1903
        %v1960 = vmul.f32 %v1506, %v1904
        %v1961 = vmul.f32 %v1507, %v1905
        %v1962 = vmul.f32 %v1508, %v1906
        %v1963 = vmul.f32 %v1509, %v1907
        %v1964 = vmul.f32 %v1510, %v1908
        %v1965 = vmul.f32 %v1511, %v1909
        %v1966 = vmul.f32 %v1512, %v1910
        %v1967 = vmul.f32 %v1513, %v1911
        %v1968 = vmul.f32 %v1514, %v1912
        %v1969 = vmul.f32 %v1515, %v1913
        %v1970 = vmul.f32 %v1516, %v1914
        %v1971 = vmul.f32 %v1517, %v1915
        %v1972 = vmul.f32 %v1518, %v1916
        %v1973 = vmul.f32 %v1519, %v1917
        %v1974 = vmul.f32 %v1520, %v1918
        %v1975 = vmul.f32 %v1521, %v1919
        %v1976 = vmul.f32 %v1522, %v1920
        %v1977 = vmul.f32 %v1523, %v1921
        %v1978 = vmul.f32 %v1524, %v1922
        %v1979 = vmul.f32 %v1525, %v1923
        %v1980 = vmul.f32 %v1526, %v1924
        %v1981 = vmul.f32 %v1527, %v1925
        %v1982 = vmul.f32 %v1528, %v1926
        %v1983 = vmul.f32 %v1529, %v1927
        %v1984 = vmul.f32 %v1530, %v1928
        %v1985 = vmul.f32 %v1531, %v1929
        %v1986 = vmul.f32 %v1532, %v1930
        %v1987 = vmul.f32 %v1533, %v1931
        %v1988 = vmul.f32 %v1534, %v1932
        %v1989 = vmul.f32 %v1535, %v1933
        %v1990 = vmul.f32 %v1536, %v1934
        %v1991 = vmul.f32 %v1537, %v1935
        %v1992 = vmul.f32 %v1538, %v1936
        %v1993 = vmul.f32 %v1539, %v1937
        %v1994 = vmul.f32 %v1540, %v1938
        %v1995 = vmul.f32 %v1541, %v1939
        %v1996 = vmul.f32 %v1542, %v1940
        %v1997 = vmul.f32 %v1543, %v1941
        %v1998 = vmul.f32 %v1544, %v1942
        %v1999 = vmul.f32 %v1545, %v1943
        %v2000 = vmul.f32 %v1546, %v1944
        %v2001 = vmul.f32 %v1547, %v1945
        %v2002 = vmul.f32 %v1548, %v1946
        %v2003 = vmul.f32 %v1549, %v1947
        %v2004 = vmul.f32 %v1550, %v1948
        %v2005 = vmul.f32 %v1551, %v1949
        %v2006 = vadd.f32 %v1950, %v1951
        %v2007 = vadd.f32 %v1958, %v1959
        %v2008 = vadd.f32 %v1966, %v1967
        %v2009 = vadd.f32 %v1974, %v1975
        %v2010 = vadd.f32 %v1982, %v1983
        %v2011 = vadd.f32 %v1990, %v1991
        %v2012 = vadd.f32 %v1998, %v1999
        %v2013 = vadd.f32 %v1952, %v1953
        %v2014 = vadd.f32 %v1960, %v1961
        %v2015 = vadd.f32 %v1968, %v1969
        %v2016 = vadd.f32 %v1976, %v1977
        %v2017 = vadd.f32 %v1984, %v1985
        %v2018 = vadd.f32 %v1992, %v1993
        %v2019 = vadd.f32 %v2000, %v2001
        %v2020 = vadd.f32 %v1954, %v1955
        %v2021 = vadd.f32 %v1962, %v1963
        %v2022 = vadd.f32 %v1970, %v1971
        %v2023 = vadd.f32 %v1978, %v1979
        %v2024 = vadd.f32 %v1986, %v1987
        %v2025 = vadd.f32 %v1994, %v1995
        %v2026 = vadd.f32 %v2002, %v2003
        %v2027 = vadd.f32 %v1956, %v1957
        %v2028 = vadd.f32 %v1964, %v1965
        %v2029 = vadd.f32 %v1972, %v1973
        %v2030 = vadd.f32 %v1980, %v1981
        %v2031 = vadd.f32 %v1988, %v1989
        %v2032 = vadd.f32 %v1996, %v1997
        %v2033 = vadd.f32 %v2004, %v2005
        %v2034 = vadd.f32 %v2006, %v2013
        %v2035 = vadd.f32 %v2007, %v2014
        %v2036 = vadd.f32 %v2008, %v2015
        %v2037 = vadd.f32 %v2009, %v2016
        %v2038 = vadd.f32 %v2010, %v2017
        %v2039 = vadd.f32 %v2011, %v2018
        %v2040 = vadd.f32 %v2012, %v2019
        %v2041 = vadd.f32 %v2020, %v2027
        %v2042 = vadd.f32 %v2021, %v2028
        %v2043 = vadd.f32 %v2022, %v2029
        %v2044 = vadd.f32 %v2023, %v2030
        %v2045 = vadd.f32 %v2024, %v2031
        %v2046 = vadd.f32 %v2025, %v2032
        %v2047 = vadd.f32 %v2026, %v2033
        %v2048 = vadd.f32 %v2034, %v2041
        %v2049 = vadd.f32 %v2035, %v2042
        %v2050 = vadd.f32 %v2036, %v2043
        %v2051 = vadd.f32 %v2037, %v2044
        %v2052 = vadd.f32 %v2038, %v2045
        %v2053 = vadd.f32 %v2039, %v2046
        %v2054 = vadd.f32 %v2040, %v2047
        %v2055 = vadd.f32 %v2048, %v2049
        %v2056 = vadd.f32 %v2055, %v2050
        %v2057 = vadd.f32 %v2056, %v2051
        %v2058 = vadd.f32 %v2057, %v2052
        %v2059 = vadd.f32 %v2058, %v2053
        %v2060 = vadd.f32 %v2059, %v2054
        %v2061 = vrot.slane %v2060, 4
        %v2062 = vadd.f32 %v2060, %v2061
        %v2063 = vrot.slane %v2062, 2
        %v2064 = vadd.f32 %v2062, %v2063
        %v2065 = vrot.slane %v2064, 1
        %v2066 = vadd.f32 %v2064, %v2065
        %s2067 = scalar_lea.vmem [#allocation2], 896
        %v2068 = vld [vmem:[%s2067] sm:$0xff]
        %v2069 = vld [vmem:[%s2067 + $0x8] sm:$0xff]
        %v2070 = vld [vmem:[%s2067 + $0x10] sm:$0xff]
        %v2071 = vld [vmem:[%s2067 + $0x18] sm:$0xff]
        %v2072 = vld [vmem:[%s2067 + $0x20] sm:$0xff]
        %v2073 = vld [vmem:[%s2067 + $0x28] sm:$0xff]
        %v2074 = vld [vmem:[%s2067 + $0x30] sm:$0xff]
        %v2075 = vld [vmem:[%s2067 + $0x38] sm:$0xff]
        %v2076 = vld [vmem:[%s2067 + $0x40] sm:$0xff]
        %v2077 = vld [vmem:[%s2067 + $0x48] sm:$0xff]
        %v2078 = vld [vmem:[%s2067 + $0x50] sm:$0xff]
        %v2079 = vld [vmem:[%s2067 + $0x58] sm:$0xff]
        %v2080 = vld [vmem:[%s2067 + $0x60] sm:$0xff]
        %v2081 = vld [vmem:[%s2067 + $0x68] sm:$0xff]
        %v2082 = vld [vmem:[%s2067 + $0x70] sm:$0xff]
        %v2083 = vld [vmem:[%s2067 + $0x78] sm:$0xff]
        %v2084 = vld [vmem:[%s2067 + $0x80] sm:$0xff]
        %v2085 = vld [vmem:[%s2067 + $0x88] sm:$0xff]
        %v2086 = vld [vmem:[%s2067 + $0x90] sm:$0xff]
        %v2087 = vld [vmem:[%s2067 + $0x98] sm:$0xff]
        %v2088 = vld [vmem:[%s2067 + $0xa0] sm:$0xff]
        %v2089 = vld [vmem:[%s2067 + $0xa8] sm:$0xff]
        %v2090 = vld [vmem:[%s2067 + $0xb0] sm:$0xff]
        %v2091 = vld [vmem:[%s2067 + $0xb8] sm:$0xff]
        %v2092 = vld [vmem:[%s2067 + $0xc0] sm:$0xff]
        %v2093 = vld [vmem:[%s2067 + $0xc8] sm:$0xff]
        %v2094 = vld [vmem:[%s2067 + $0xd0] sm:$0xff]
        %v2095 = vld [vmem:[%s2067 + $0xd8] sm:$0xff]
        %v2096 = vld [vmem:[%s2067 + $0xe0] sm:$0xff]
        %v2097 = vld [vmem:[%s2067 + $0xe8] sm:$0xff]
        %v2098 = vld [vmem:[%s2067 + $0xf0] sm:$0xff]
        %v2099 = vld [vmem:[%s2067 + $0xf8] sm:$0xff]
        %v2100 = vld [vmem:[%s2067 + $0x100] sm:$0xff]
        %v2101 = vld [vmem:[%s2067 + $0x108] sm:$0xff]
        %v2102 = vld [vmem:[%s2067 + $0x110] sm:$0xff]
        %v2103 = vld [vmem:[%s2067 + $0x118] sm:$0xff]
        %v2104 = vld [vmem:[%s2067 + $0x120] sm:$0xff]
        %v2105 = vld [vmem:[%s2067 + $0x128] sm:$0xff]
        %v2106 = vld [vmem:[%s2067 + $0x130] sm:$0xff]
        %v2107 = vld [vmem:[%s2067 + $0x138] sm:$0xff]
        %v2108 = vld [vmem:[%s2067 + $0x140] sm:$0xff]
        %v2109 = vld [vmem:[%s2067 + $0x148] sm:$0xff]
        %v2110 = vld [vmem:[%s2067 + $0x150] sm:$0xff]
        %v2111 = vld [vmem:[%s2067 + $0x158] sm:$0xff]
        %v2112 = vld [vmem:[%s2067 + $0x160] sm:$0xff]
        %v2113 = vld [vmem:[%s2067 + $0x168] sm:$0xff]
        %v2114 = vld [vmem:[%s2067 + $0x170] sm:$0xff]
        %v2115 = vld [vmem:[%s2067 + $0x178] sm:$0xff]
        %v2116 = vld [vmem:[%s2067 + $0x180] sm:$0xff]
        %v2117 = vld [vmem:[%s2067 + $0x188] sm:$0xff]
        %v2118 = vld [vmem:[%s2067 + $0x190] sm:$0xff]
        %v2119 = vld [vmem:[%s2067 + $0x198] sm:$0xff]
        %v2120 = vld [vmem:[%s2067 + $0x1a0] sm:$0xff]
        %v2121 = vld [vmem:[%s2067 + $0x1a8] sm:$0xff]
        %v2122 = vld [vmem:[%s2067 + $0x1b0] sm:$0xff]
        %v2123 = vld [vmem:[%s2067 + $0x1b8] sm:$0xff]
        %v2124 = vmul.f32 %v1496, %v2068
        %v2125 = vmul.f32 %v1497, %v2069
        %v2126 = vmul.f32 %v1498, %v2070
        %v2127 = vmul.f32 %v1499, %v2071
        %v2128 = vmul.f32 %v1500, %v2072
        %v2129 = vmul.f32 %v1501, %v2073
        %v2130 = vmul.f32 %v1502, %v2074
        %v2131 = vmul.f32 %v1503, %v2075
        %v2132 = vmul.f32 %v1504, %v2076
        %v2133 = vmul.f32 %v1505, %v2077
        %v2134 = vmul.f32 %v1506, %v2078
        %v2135 = vmul.f32 %v1507, %v2079
        %v2136 = vmul.f32 %v1508, %v2080
        %v2137 = vmul.f32 %v1509, %v2081
        %v2138 = vmul.f32 %v1510, %v2082
        %v2139 = vmul.f32 %v1511, %v2083
        %v2140 = vmul.f32 %v1512, %v2084
        %v2141 = vmul.f32 %v1513, %v2085
        %v2142 = vmul.f32 %v1514, %v2086
        %v2143 = vmul.f32 %v1515, %v2087
        %v2144 = vmul.f32 %v1516, %v2088
        %v2145 = vmul.f32 %v1517, %v2089
        %v2146 = vmul.f32 %v1518, %v2090
        %v2147 = vmul.f32 %v1519, %v2091
        %v2148 = vmul.f32 %v1520, %v2092
        %v2149 = vmul.f32 %v1521, %v2093
        %v2150 = vmul.f32 %v1522, %v2094
        %v2151 = vmul.f32 %v1523, %v2095
        %v2152 = vmul.f32 %v1524, %v2096
        %v2153 = vmul.f32 %v1525, %v2097
        %v2154 = vmul.f32 %v1526, %v2098
        %v2155 = vmul.f32 %v1527, %v2099
        %v2156 = vmul.f32 %v1528, %v2100
        %v2157 = vmul.f32 %v1529, %v2101
        %v2158 = vmul.f32 %v1530, %v2102
        %v2159 = vmul.f32 %v1531, %v2103
        %v2160 = vmul.f32 %v1532, %v2104
        %v2161 = vmul.f32 %v1533, %v2105
        %v2162 = vmul.f32 %v1534, %v2106
        %v2163 = vmul.f32 %v1535, %v2107
        %v2164 = vmul.f32 %v1536, %v2108
        %v2165 = vmul.f32 %v1537, %v2109
        %v2166 = vmul.f32 %v1538, %v2110
        %v2167 = vmul.f32 %v1539, %v2111
        %v2168 = vmul.f32 %v1540, %v2112
        %v2169 = vmul.f32 %v1541, %v2113
        %v2170 = vmul.f32 %v1542, %v2114
        %v2171 = vmul.f32 %v1543, %v2115
        %v2172 = vmul.f32 %v1544, %v2116
        %v2173 = vmul.f32 %v1545, %v2117
        %v2174 = vmul.f32 %v1546, %v2118
        %v2175 = vmul.f32 %v1547, %v2119
        %v2176 = vmul.f32 %v1548, %v2120
        %v2177 = vmul.f32 %v1549, %v2121
        %v2178 = vmul.f32 %v1550, %v2122
        %v2179 = vmul.f32 %v1551, %v2123
        %v2180 = vadd.f32 %v2124, %v2125
        %v2181 = vadd.f32 %v2132, %v2133
        %v2182 = vadd.f32 %v2140, %v2141
        %v2183 = vadd.f32 %v2148, %v2149
        %v2184 = vadd.f32 %v2156, %v2157
        %v2185 = vadd.f32 %v2164, %v2165
        %v2186 = vadd.f32 %v2172, %v2173
        %v2187 = vadd.f32 %v2126, %v2127
        %v2188 = vadd.f32 %v2134, %v2135
        %v2189 = vadd.f32 %v2142, %v2143
        %v2190 = vadd.f32 %v2150, %v2151
        %v2191 = vadd.f32 %v2158, %v2159
        %v2192 = vadd.f32 %v2166, %v2167
        %v2193 = vadd.f32 %v2174, %v2175
        %v2194 = vadd.f32 %v2128, %v2129
        %v2195 = vadd.f32 %v2136, %v2137
        %v2196 = vadd.f32 %v2144, %v2145
        %v2197 = vadd.f32 %v2152, %v2153
        %v2198 = vadd.f32 %v2160, %v2161
        %v2199 = vadd.f32 %v2168, %v2169
        %v2200 = vadd.f32 %v2176, %v2177
        %v2201 = vadd.f32 %v2130, %v2131
        %v2202 = vadd.f32 %v2138, %v2139
        %v2203 = vadd.f32 %v2146, %v2147
        %v2204 = vadd.f32 %v2154, %v2155
        %v2205 = vadd.f32 %v2162, %v2163
        %v2206 = vadd.f32 %v2170, %v2171
        %v2207 = vadd.f32 %v2178, %v2179
        %v2208 = vadd.f32 %v2180, %v2187
        %v2209 = vadd.f32 %v2181, %v2188
        %v2210 = vadd.f32 %v2182, %v2189
        %v2211 = vadd.f32 %v2183, %v2190
        %v2212 = vadd.f32 %v2184, %v2191
        %v2213 = vadd.f32 %v2185, %v2192
        %v2214 = vadd.f32 %v2186, %v2193
        %v2215 = vadd.f32 %v2194, %v2201
        %v2216 = vadd.f32 %v2195, %v2202
        %v2217 = vadd.f32 %v2196, %v2203
        %v2218 = vadd.f32 %v2197, %v2204
        %v2219 = vadd.f32 %v2198, %v2205
        %v2220 = vadd.f32 %v2199, %v2206
        %v2221 = vadd.f32 %v2200, %v2207
        %v2222 = vadd.f32 %v2208, %v2215
        %v2223 = vadd.f32 %v2209, %v2216
        %v2224 = vadd.f32 %v2210, %v2217
        %v2225 = vadd.f32 %v2211, %v2218
        %v2226 = vadd.f32 %v2212, %v2219
        %v2227 = vadd.f32 %v2213, %v2220
        %v2228 = vadd.f32 %v2214, %v2221
        %v2229 = vadd.f32 %v2222, %v2223
        %v2230 = vadd.f32 %v2229, %v2224
        %v2231 = vadd.f32 %v2230, %v2225
        %v2232 = vadd.f32 %v2231, %v2226
        %v2233 = vadd.f32 %v2232, %v2227
        %v2234 = vadd.f32 %v2233, %v2228
        %v2235 = vrot.slane %v2234, 4
        %v2236 = vadd.f32 %v2234, %v2235
        %v2237 = vrot.slane %v2236, 2
        %v2238 = vadd.f32 %v2236, %v2237
        %v2239 = vrot.slane %v2238, 1
        %v2240 = vadd.f32 %v2238, %v2239
        %s2241 = scalar_lea.vmem [#allocation2], 1344
        %v2242 = vld [vmem:[%s2241] sm:$0xff]
        %v2243 = vld [vmem:[%s2241 + $0x8] sm:$0xff]
        %v2244 = vld [vmem:[%s2241 + $0x10] sm:$0xff]
        %v2245 = vld [vmem:[%s2241 + $0x18] sm:$0xff]
        %v2246 = vld [vmem:[%s2241 + $0x20] sm:$0xff]
        %v2247 = vld [vmem:[%s2241 + $0x28] sm:$0xff]
        %v2248 = vld [vmem:[%s2241 + $0x30] sm:$0xff]
        %v2249 = vld [vmem:[%s2241 + $0x38] sm:$0xff]
        %v2250 = vld [vmem:[%s2241 + $0x40] sm:$0xff]
        %v2251 = vld [vmem:[%s2241 + $0x48] sm:$0xff]
        %v2252 = vld [vmem:[%s2241 + $0x50] sm:$0xff]
        %v2253 = vld [vmem:[%s2241 + $0x58] sm:$0xff]
        %v2254 = vld [vmem:[%s2241 + $0x60] sm:$0xff]
        %v2255 = vld [vmem:[%s2241 + $0x68] sm:$0xff]
        %v2256 = vld [vmem:[%s2241 + $0x70] sm:$0xff]
        %v2257 = vld [vmem:[%s2241 + $0x78] sm:$0xff]
        %v2258 = vld [vmem:[%s2241 + $0x80] sm:$0xff]
        %v2259 = vld [vmem:[%s2241 + $0x88] sm:$0xff]
        %v2260 = vld [vmem:[%s2241 + $0x90] sm:$0xff]
        %v2261 = vld [vmem:[%s2241 + $0x98] sm:$0xff]
        %v2262 = vld [vmem:[%s2241 + $0xa0] sm:$0xff]
        %v2263 = vld [vmem:[%s2241 + $0xa8] sm:$0xff]
        %v2264 = vld [vmem:[%s2241 + $0xb0] sm:$0xff]
        %v2265 = vld [vmem:[%s2241 + $0xb8] sm:$0xff]
        %v2266 = vld [vmem:[%s2241 + $0xc0] sm:$0xff]
        %v2267 = vld [vmem:[%s2241 + $0xc8] sm:$0xff]
        %v2268 = vld [vmem:[%s2241 + $0xd0] sm:$0xff]
        %v2269 = vld [vmem:[%s2241 + $0xd8] sm:$0xff]
        %v2270 = vld [vmem:[%s2241 + $0xe0] sm:$0xff]
        %v2271 = vld [vmem:[%s2241 + $0xe8] sm:$0xff]
        %v2272 = vld [vmem:[%s2241 + $0xf0] sm:$0xff]
        %v2273 = vld [vmem:[%s2241 + $0xf8] sm:$0xff]
        %v2274 = vld [vmem:[%s2241 + $0x100] sm:$0xff]
        %v2275 = vld [vmem:[%s2241 + $0x108] sm:$0xff]
        %v2276 = vld [vmem:[%s2241 + $0x110] sm:$0xff]
        %v2277 = vld [vmem:[%s2241 + $0x118] sm:$0xff]
        %v2278 = vld [vmem:[%s2241 + $0x120] sm:$0xff]
        %v2279 = vld [vmem:[%s2241 + $0x128] sm:$0xff]
        %v2280 = vld [vmem:[%s2241 + $0x130] sm:$0xff]
        %v2281 = vld [vmem:[%s2241 + $0x138] sm:$0xff]
        %v2282 = vld [vmem:[%s2241 + $0x140] sm:$0xff]
        %v2283 = vld [vmem:[%s2241 + $0x148] sm:$0xff]
        %v2284 = vld [vmem:[%s2241 + $0x150] sm:$0xff]
        %v2285 = vld [vmem:[%s2241 + $0x158] sm:$0xff]
        %v2286 = vld [vmem:[%s2241 + $0x160] sm:$0xff]
        %v2287 = vld [vmem:[%s2241 + $0x168] sm:$0xff]
        %v2288 = vld [vmem:[%s2241 + $0x170] sm:$0xff]
        %v2289 = vld [vmem:[%s2241 + $0x178] sm:$0xff]
        %v2290 = vld [vmem:[%s2241 + $0x180] sm:$0xff]
        %v2291 = vld [vmem:[%s2241 + $0x188] sm:$0xff]
        %v2292 = vld [vmem:[%s2241 + $0x190] sm:$0xff]
        %v2293 = vld [vmem:[%s2241 + $0x198] sm:$0xff]
        %v2294 = vld [vmem:[%s2241 + $0x1a0] sm:$0xff]
        %v2295 = vld [vmem:[%s2241 + $0x1a8] sm:$0xff]
        %v2296 = vld [vmem:[%s2241 + $0x1b0] sm:$0xff]
        %v2297 = vld [vmem:[%s2241 + $0x1b8] sm:$0xff]
        %v2298 = vmul.f32 %v1496, %v2242
        %v2299 = vmul.f32 %v1497, %v2243
        %v2300 = vmul.f32 %v1498, %v2244
        %v2301 = vmul.f32 %v1499, %v2245
        %v2302 = vmul.f32 %v1500, %v2246
        %v2303 = vmul.f32 %v1501, %v2247
        %v2304 = vmul.f32 %v1502, %v2248
        %v2305 = vmul.f32 %v1503, %v2249
        %v2306 = vmul.f32 %v1504, %v2250
        %v2307 = vmul.f32 %v1505, %v2251
        %v2308 = vmul.f32 %v1506, %v2252
        %v2309 = vmul.f32 %v1507, %v2253
        %v2310 = vmul.f32 %v1508, %v2254
        %v2311 = vmul.f32 %v1509, %v2255
        %v2312 = vmul.f32 %v1510, %v2256
        %v2313 = vmul.f32 %v1511, %v2257
        %v2314 = vmul.f32 %v1512, %v2258
        %v2315 = vmul.f32 %v1513, %v2259
        %v2316 = vmul.f32 %v1514, %v2260
        %v2317 = vmul.f32 %v1515, %v2261
        %v2318 = vmul.f32 %v1516, %v2262
        %v2319 = vmul.f32 %v1517, %v2263
        %v2320 = vmul.f32 %v1518, %v2264
        %v2321 = vmul.f32 %v1519, %v2265
        %v2322 = vmul.f32 %v1520, %v2266
        %v2323 = vmul.f32 %v1521, %v2267
        %v2324 = vmul.f32 %v1522, %v2268
        %v2325 = vmul.f32 %v1523, %v2269
        %v2326 = vmul.f32 %v1524, %v2270
        %v2327 = vmul.f32 %v1525, %v2271
        %v2328 = vmul.f32 %v1526, %v2272
        %v2329 = vmul.f32 %v1527, %v2273
        %v2330 = vmul.f32 %v1528, %v2274
        %v2331 = vmul.f32 %v1529, %v2275
        %v2332 = vmul.f32 %v1530, %v2276
        %v2333 = vmul.f32 %v1531, %v2277
        %v2334 = vmul.f32 %v1532, %v2278
        %v2335 = vmul.f32 %v1533, %v2279
        %v2336 = vmul.f32 %v1534, %v2280
        %v2337 = vmul.f32 %v1535, %v2281
        %v2338 = vmul.f32 %v1536, %v2282
        %v2339 = vmul.f32 %v1537, %v2283
        %v2340 = vmul.f32 %v1538, %v2284
        %v2341 = vmul.f32 %v1539, %v2285
        %v2342 = vmul.f32 %v1540, %v2286
        %v2343 = vmul.f32 %v1541, %v2287
        %v2344 = vmul.f32 %v1542, %v2288
        %v2345 = vmul.f32 %v1543, %v2289
        %v2346 = vmul.f32 %v1544, %v2290
        %v2347 = vmul.f32 %v1545, %v2291
        %v2348 = vmul.f32 %v1546, %v2292
        %v2349 = vmul.f32 %v1547, %v2293
        %v2350 = vmul.f32 %v1548, %v2294
        %v2351 = vmul.f32 %v1549, %v2295
        %v2352 = vmul.f32 %v1550, %v2296
        %v2353 = vmul.f32 %v1551, %v2297
        %v2354 = vadd.f32 %v2298, %v2299
        %v2355 = vadd.f32 %v2306, %v2307
        %v2356 = vadd.f32 %v2314, %v2315
        %v2357 = vadd.f32 %v2322, %v2323
        %v2358 = vadd.f32 %v2330, %v2331
        %v2359 = vadd.f32 %v2338, %v2339
        %v2360 = vadd.f32 %v2346, %v2347
        %v2361 = vadd.f32 %v2300, %v2301
        %v2362 = vadd.f32 %v2308, %v2309
        %v2363 = vadd.f32 %v2316, %v2317
        %v2364 = vadd.f32 %v2324, %v2325
        %v2365 = vadd.f32 %v2332, %v2333
        %v2366 = vadd.f32 %v2340, %v2341
        %v2367 = vadd.f32 %v2348, %v2349
        %v2368 = vadd.f32 %v2302, %v2303
        %v2369 = vadd.f32 %v2310, %v2311
        %v2370 = vadd.f32 %v2318, %v2319
        %v2371 = vadd.f32 %v2326, %v2327
        %v2372 = vadd.f32 %v2334, %v2335
        %v2373 = vadd.f32 %v2342, %v2343
        %v2374 = vadd.f32 %v2350, %v2351
        %v2375 = vadd.f32 %v2304, %v2305
        %v2376 = vadd.f32 %v2312, %v2313
        %v2377 = vadd.f32 %v2320, %v2321
        %v2378 = vadd.f32 %v2328, %v2329
        %v2379 = vadd.f32 %v2336, %v2337
        %v2380 = vadd.f32 %v2344, %v2345
        %v2381 = vadd.f32 %v2352, %v2353
        %v2382 = vadd.f32 %v2354, %v2361
        %v2383 = vadd.f32 %v2355, %v2362
        %v2384 = vadd.f32 %v2356, %v2363
        %v2385 = vadd.f32 %v2357, %v2364
        %v2386 = vadd.f32 %v2358, %v2365
        %v2387 = vadd.f32 %v2359, %v2366
        %v2388 = vadd.f32 %v2360, %v2367
        %v2389 = vadd.f32 %v2368, %v2375
        %v2390 = vadd.f32 %v2369, %v2376
        %v2391 = vadd.f32 %v2370, %v2377
        %v2392 = vadd.f32 %v2371, %v2378
        %v2393 = vadd.f32 %v2372, %v2379
        %v2394 = vadd.f32 %v2373, %v2380
        %v2395 = vadd.f32 %v2374, %v2381
        %v2396 = vadd.f32 %v2382, %v2389
        %v2397 = vadd.f32 %v2383, %v2390
        %v2398 = vadd.f32 %v2384, %v2391
        %v2399 = vadd.f32 %v2385, %v2392
        %v2400 = vadd.f32 %v2386, %v2393
        %v2401 = vadd.f32 %v2387, %v2394
        %v2402 = vadd.f32 %v2388, %v2395
        %v2403 = vadd.f32 %v2396, %v2397
        %v2404 = vadd.f32 %v2403, %v2398
        %v2405 = vadd.f32 %v2404, %v2399
        %v2406 = vadd.f32 %v2405, %v2400
        %v2407 = vadd.f32 %v2406, %v2401
        %v2408 = vadd.f32 %v2407, %v2402
        %v2409 = vrot.slane %v2408, 4
        %v2410 = vadd.f32 %v2408, %v2409
        %v2411 = vrot.slane %v2410, 2
        %v2412 = vadd.f32 %v2410, %v2411
        %v2413 = vrot.slane %v2412, 1
        %v2414 = vadd.f32 %v2412, %v2413
        %v2415 = vmul.f32 %v1552, %v1720
        %v2416 = vmul.f32 %v1553, %v1721
        %v2417 = vmul.f32 %v1554, %v1722
        %v2418 = vmul.f32 %v1555, %v1723
        %v2419 = vmul.f32 %v1556, %v1724
        %v2420 = vmul.f32 %v1557, %v1725
        %v2421 = vmul.f32 %v1558, %v1726
        %v2422 = vmul.f32 %v1559, %v1727
        %v2423 = vmul.f32 %v1560, %v1728
        %v2424 = vmul.f32 %v1561, %v1729
        %v2425 = vmul.f32 %v1562, %v1730
        %v2426 = vmul.f32 %v1563, %v1731
        %v2427 = vmul.f32 %v1564, %v1732
        %v2428 = vmul.f32 %v1565, %v1733
        %v2429 = vmul.f32 %v1566, %v1734
        %v2430 = vmul.f32 %v1567, %v1735
        %v2431 = vmul.f32 %v1568, %v1736
        %v2432 = vmul.f32 %v1569, %v1737
        %v2433 = vmul.f32 %v1570, %v1738
        %v2434 = vmul.f32 %v1571, %v1739
        %v2435 = vmul.f32 %v1572, %v1740
        %v2436 = vmul.f32 %v1573, %v1741
        %v2437 = vmul.f32 %v1574, %v1742
        %v2438 = vmul.f32 %v1575, %v1743
        %v2439 = vmul.f32 %v1576, %v1744
        %v2440 = vmul.f32 %v1577, %v1745
        %v2441 = vmul.f32 %v1578, %v1746
        %v2442 = vmul.f32 %v1579, %v1747
        %v2443 = vmul.f32 %v1580, %v1748
        %v2444 = vmul.f32 %v1581, %v1749
        %v2445 = vmul.f32 %v1582, %v1750
        %v2446 = vmul.f32 %v1583, %v1751
        %v2447 = vmul.f32 %v1584, %v1752
        %v2448 = vmul.f32 %v1585, %v1753
        %v2449 = vmul.f32 %v1586, %v1754
        %v2450 = vmul.f32 %v1587, %v1755
        %v2451 = vmul.f32 %v1588, %v1756
        %v2452 = vmul.f32 %v1589, %v1757
        %v2453 = vmul.f32 %v1590, %v1758
        %v2454 = vmul.f32 %v1591, %v1759
        %v2455 = vmul.f32 %v1592, %v1760
        %v2456 = vmul.f32 %v1593, %v1761
        %v2457 = vmul.f32 %v1594, %v1762
        %v2458 = vmul.f32 %v1595, %v1763
        %v2459 = vmul.f32 %v1596, %v1764
        %v2460 = vmul.f32 %v1597, %v1765
        %v2461 = vmul.f32 %v1598, %v1766
        %v2462 = vmul.f32 %v1599, %v1767
        %v2463 = vmul.f32 %v1600, %v1768
        %v2464 = vmul.f32 %v1601, %v1769
        %v2465 = vmul.f32 %v1602, %v1770
        %v2466 = vmul.f32 %v1603, %v1771
        %v2467 = vmul.f32 %v1604, %v1772
        %v2468 = vmul.f32 %v1605, %v1773
        %v2469 = vmul.f32 %v1606, %v1774
        %v2470 = vmul.f32 %v1607, %v1775
        %v2471 = vadd.f32 %v2415, %v2416
        %v2472 = vadd.f32 %v2423, %v2424
        %v2473 = vadd.f32 %v2431, %v2432
        %v2474 = vadd.f32 %v2439, %v2440
        %v2475 = vadd.f32 %v2447, %v2448
        %v2476 = vadd.f32 %v2455, %v2456
        %v2477 = vadd.f32 %v2463, %v2464
        %v2478 = vadd.f32 %v2417, %v2418
        %v2479 = vadd.f32 %v2425, %v2426
        %v2480 = vadd.f32 %v2433, %v2434
        %v2481 = vadd.f32 %v2441, %v2442
        %v2482 = vadd.f32 %v2449, %v2450
        %v2483 = vadd.f32 %v2457, %v2458
        %v2484 = vadd.f32 %v2465, %v2466
        %v2485 = vadd.f32 %v2419, %v2420
        %v2486 = vadd.f32 %v2427, %v2428
        %v2487 = vadd.f32 %v2435, %v2436
        %v2488 = vadd.f32 %v2443, %v2444
        %v2489 = vadd.f32 %v2451, %v2452
        %v2490 = vadd.f32 %v2459, %v2460
        %v2491 = vadd.f32 %v2467, %v2468
        %v2492 = vadd.f32 %v2421, %v2422
        %v2493 = vadd.f32 %v2429, %v2430
        %v2494 = vadd.f32 %v2437, %v2438
        %v2495 = vadd.f32 %v2445, %v2446
        %v2496 = vadd.f32 %v2453, %v2454
        %v2497 = vadd.f32 %v2461, %v2462
        %v2498 = vadd.f32 %v2469, %v2470
        %v2499 = vadd.f32 %v2471, %v2478
        %v2500 = vadd.f32 %v2472, %v2479
        %v2501 = vadd.f32 %v2473, %v2480
        %v2502 = vadd.f32 %v2474, %v2481
        %v2503 = vadd.f32 %v2475, %v2482
        %v2504 = vadd.f32 %v2476, %v2483
        %v2505 = vadd.f32 %v2477, %v2484
        %v2506 = vadd.f32 %v2485, %v2492
        %v2507 = vadd.f32 %v2486, %v2493
        %v2508 = vadd.f32 %v2487, %v2494
        %v2509 = vadd.f32 %v2488, %v2495
        %v2510 = vadd.f32 %v2489, %v2496
        %v2511 = vadd.f32 %v2490, %v2497
        %v2512 = vadd.f32 %v2491, %v2498
        %v2513 = vadd.f32 %v2499, %v2506
        %v2514 = vadd.f32 %v2500, %v2507
        %v2515 = vadd.f32 %v2501, %v2508
        %v2516 = vadd.f32 %v2502, %v2509
        %v2517 = vadd.f32 %v2503, %v2510
        %v2518 = vadd.f32 %v2504, %v2511
        %v2519 = vadd.f32 %v2505, %v2512
        %v2520 = vadd.f32 %v2513, %v2514
        %v2521 = vadd.f32 %v2520, %v2515
        %v2522 = vadd.f32 %v2521, %v2516
        %v2523 = vadd.f32 %v2522, %v2517
        %v2524 = vadd.f32 %v2523, %v2518
        %v2525 = vadd.f32 %v2524, %v2519
        %v2526 = vrot.slane %v2525, 4
        %v2527 = vadd.f32 %v2525, %v2526
        %v2528 = vrot.slane %v2527, 2
        %v2529 = vadd.f32 %v2527, %v2528
        %v2530 = vrot.slane %v2529, 1
        %v2531 = vadd.f32 %v2529, %v2530
        %v2532 = vmul.f32 %v1552, %v1894
        %v2533 = vmul.f32 %v1553, %v1895
        %v2534 = vmul.f32 %v1554, %v1896
        %v2535 = vmul.f32 %v1555, %v1897
        %v2536 = vmul.f32 %v1556, %v1898
        %v2537 = vmul.f32 %v1557, %v1899
        %v2538 = vmul.f32 %v1558, %v1900
        %v2539 = vmul.f32 %v1559, %v1901
        %v2540 = vmul.f32 %v1560, %v1902
        %v2541 = vmul.f32 %v1561, %v1903
        %v2542 = vmul.f32 %v1562, %v1904
        %v2543 = vmul.f32 %v1563, %v1905
        %v2544 = vmul.f32 %v1564, %v1906
        %v2545 = vmul.f32 %v1565, %v1907
        %v2546 = vmul.f32 %v1566, %v1908
        %v2547 = vmul.f32 %v1567, %v1909
        %v2548 = vmul.f32 %v1568, %v1910
        %v2549 = vmul.f32 %v1569, %v1911
        %v2550 = vmul.f32 %v1570, %v1912
        %v2551 = vmul.f32 %v1571, %v1913
        %v2552 = vmul.f32 %v1572, %v1914
        %v2553 = vmul.f32 %v1573, %v1915
        %v2554 = vmul.f32 %v1574, %v1916
        %v2555 = vmul.f32 %v1575, %v1917
        %v2556 = vmul.f32 %v1576, %v1918
        %v2557 = vmul.f32 %v1577, %v1919
        %v2558 = vmul.f32 %v1578, %v1920
        %v2559 = vmul.f32 %v1579, %v1921
        %v2560 = vmul.f32 %v1580, %v1922
        %v2561 = vmul.f32 %v1581, %v1923
        %v2562 = vmul.f32 %v1582, %v1924
        %v2563 = vmul.f32 %v1583, %v1925
        %v2564 = vmul.f32 %v1584, %v1926
        %v2565 = vmul.f32 %v1585, %v1927
        %v2566 = vmul.f32 %v1586, %v1928
        %v2567 = vmul.f32 %v1587, %v1929
        %v2568 = vmul.f32 %v1588, %v1930
        %v2569 = vmul.f32 %v1589, %v1931
        %v2570 = vmul.f32 %v1590, %v1932
        %v2571 = vmul.f32 %v1591, %v1933
        %v2572 = vmul.f32 %v1592, %v1934
        %v2573 = vmul.f32 %v1593, %v1935
        %v2574 = vmul.f32 %v1594, %v1936
        %v2575 = vmul.f32 %v1595, %v1937
        %v2576 = vmul.f32 %v1596, %v1938
        %v2577 = vmul.f32 %v1597, %v1939
        %v2578 = vmul.f32 %v1598, %v1940
        %v2579 = vmul.f32 %v1599, %v1941
        %v2580 = vmul.f32 %v1600, %v1942
        %v2581 = vmul.f32 %v1601, %v1943
        %v2582 = vmul.f32 %v1602, %v1944
        %v2583 = vmul.f32 %v1603, %v1945
        %v2584 = vmul.f32 %v1604, %v1946
        %v2585 = vmul.f32 %v1605, %v1947
        %v2586 = vmul.f32 %v1606, %v1948
        %v2587 = vmul.f32 %v1607, %v1949
        %v2588 = vadd.f32 %v2532, %v2533
        %v2589 = vadd.f32 %v2540, %v2541
        %v2590 = vadd.f32 %v2548, %v2549
        %v2591 = vadd.f32 %v2556, %v2557
        %v2592 = vadd.f32 %v2564, %v2565
        %v2593 = vadd.f32 %v2572, %v2573
        %v2594 = vadd.f32 %v2580, %v2581
        %v2595 = vadd.f32 %v2534, %v2535
        %v2596 = vadd.f32 %v2542, %v2543
        %v2597 = vadd.f32 %v2550, %v2551
        %v2598 = vadd.f32 %v2558, %v2559
        %v2599 = vadd.f32 %v2566, %v2567
        %v2600 = vadd.f32 %v2574, %v2575
        %v2601 = vadd.f32 %v2582, %v2583
        %v2602 = vadd.f32 %v2536, %v2537
        %v2603 = vadd.f32 %v2544, %v2545
        %v2604 = vadd.f32 %v2552, %v2553
        %v2605 = vadd.f32 %v2560, %v2561
        %v2606 = vadd.f32 %v2568, %v2569
        %v2607 = vadd.f32 %v2576, %v2577
        %v2608 = vadd.f32 %v2584, %v2585
        %v2609 = vadd.f32 %v2538, %v2539
        %v2610 = vadd.f32 %v2546, %v2547
        %v2611 = vadd.f32 %v2554, %v2555
        %v2612 = vadd.f32 %v2562, %v2563
        %v2613 = vadd.f32 %v2570, %v2571
        %v2614 = vadd.f32 %v2578, %v2579
        %v2615 = vadd.f32 %v2586, %v2587
        %v2616 = vadd.f32 %v2588, %v2595
        %v2617 = vadd.f32 %v2589, %v2596
        %v2618 = vadd.f32 %v2590, %v2597
        %v2619 = vadd.f32 %v2591, %v2598
        %v2620 = vadd.f32 %v2592, %v2599
        %v2621 = vadd.f32 %v2593, %v2600
        %v2622 = vadd.f32 %v2594, %v2601
        %v2623 = vadd.f32 %v2602, %v2609
        %v2624 = vadd.f32 %v2603, %v2610
        %v2625 = vadd.f32 %v2604, %v2611
        %v2626 = vadd.f32 %v2605, %v2612
        %v2627 = vadd.f32 %v2606, %v2613
        %v2628 = vadd.f32 %v2607, %v2614
        %v2629 = vadd.f32 %v2608, %v2615
        %v2630 = vadd.f32 %v2616, %v2623
        %v2631 = vadd.f32 %v2617, %v2624
        %v2632 = vadd.f32 %v2618, %v2625
        %v2633 = vadd.f32 %v2619, %v2626
        %v2634 = vadd.f32 %v2620, %v2627
        %v2635 = vadd.f32 %v2621, %v2628
        %v2636 = vadd.f32 %v2622, %v2629
        %v2637 = vadd.f32 %v2630, %v2631
        %v2638 = vadd.f32 %v2637, %v2632
        %v2639 = vadd.f32 %v2638, %v2633
        %v2640 = vadd.f32 %v2639, %v2634
        %v2641 = vadd.f32 %v2640, %v2635
        %v2642 = vadd.f32 %v2641, %v2636
        %v2643 = vrot.slane %v2642, 4
        %v2644 = vadd.f32 %v2642, %v2643
        %v2645 = vrot.slane %v2644, 2
        %v2646 = vadd.f32 %v2644, %v2645
        %v2647 = vrot.slane %v2646, 1
        %v2648 = vadd.f32 %v2646, %v2647
        %v2649 = vmul.f32 %v1552, %v2068
        %v2650 = vmul.f32 %v1553, %v2069
        %v2651 = vmul.f32 %v1554, %v2070
        %v2652 = vmul.f32 %v1555, %v2071
        %v2653 = vmul.f32 %v1556, %v2072
        %v2654 = vmul.f32 %v1557, %v2073
        %v2655 = vmul.f32 %v1558, %v2074
        %v2656 = vmul.f32 %v1559, %v2075
        %v2657 = vmul.f32 %v1560, %v2076
        %v2658 = vmul.f32 %v1561, %v2077
        %v2659 = vmul.f32 %v1562, %v2078
        %v2660 = vmul.f32 %v1563, %v2079
        %v2661 = vmul.f32 %v1564, %v2080
        %v2662 = vmul.f32 %v1565, %v2081
        %v2663 = vmul.f32 %v1566, %v2082
        %v2664 = vmul.f32 %v1567, %v2083
        %v2665 = vmul.f32 %v1568, %v2084
        %v2666 = vmul.f32 %v1569, %v2085
        %v2667 = vmul.f32 %v1570, %v2086
        %v2668 = vmul.f32 %v1571, %v2087
        %v2669 = vmul.f32 %v1572, %v2088
        %v2670 = vmul.f32 %v1573, %v2089
        %v2671 = vmul.f32 %v1574, %v2090
        %v2672 = vmul.f32 %v1575, %v2091
        %v2673 = vmul.f32 %v1576, %v2092
        %v2674 = vmul.f32 %v1577, %v2093
        %v2675 = vmul.f32 %v1578, %v2094
        %v2676 = vmul.f32 %v1579, %v2095
        %v2677 = vmul.f32 %v1580, %v2096
        %v2678 = vmul.f32 %v1581, %v2097
        %v2679 = vmul.f32 %v1582, %v2098
        %v2680 = vmul.f32 %v1583, %v2099
        %v2681 = vmul.f32 %v1584, %v2100
        %v2682 = vmul.f32 %v1585, %v2101
        %v2683 = vmul.f32 %v1586, %v2102
        %v2684 = vmul.f32 %v1587, %v2103
        %v2685 = vmul.f32 %v1588, %v2104
        %v2686 = vmul.f32 %v1589, %v2105
        %v2687 = vmul.f32 %v1590, %v2106
        %v2688 = vmul.f32 %v1591, %v2107
        %v2689 = vmul.f32 %v1592, %v2108
        %v2690 = vmul.f32 %v1593, %v2109
        %v2691 = vmul.f32 %v1594, %v2110
        %v2692 = vmul.f32 %v1595, %v2111
        %v2693 = vmul.f32 %v1596, %v2112
        %v2694 = vmul.f32 %v1597, %v2113
        %v2695 = vmul.f32 %v1598, %v2114
        %v2696 = vmul.f32 %v1599, %v2115
        %v2697 = vmul.f32 %v1600, %v2116
        %v2698 = vmul.f32 %v1601, %v2117
        %v2699 = vmul.f32 %v1602, %v2118
        %v2700 = vmul.f32 %v1603, %v2119
        %v2701 = vmul.f32 %v1604, %v2120
        %v2702 = vmul.f32 %v1605, %v2121
        %v2703 = vmul.f32 %v1606, %v2122
        %v2704 = vmul.f32 %v1607, %v2123
        %v2705 = vadd.f32 %v2649, %v2650
        %v2706 = vadd.f32 %v2657, %v2658
        %v2707 = vadd.f32 %v2665, %v2666
        %v2708 = vadd.f32 %v2673, %v2674
        %v2709 = vadd.f32 %v2681, %v2682
        %v2710 = vadd.f32 %v2689, %v2690
        %v2711 = vadd.f32 %v2697, %v2698
        %v2712 = vadd.f32 %v2651, %v2652
        %v2713 = vadd.f32 %v2659, %v2660
        %v2714 = vadd.f32 %v2667, %v2668
        %v2715 = vadd.f32 %v2675, %v2676
        %v2716 = vadd.f32 %v2683, %v2684
        %v2717 = vadd.f32 %v2691, %v2692
        %v2718 = vadd.f32 %v2699, %v2700
        %v2719 = vadd.f32 %v2653, %v2654
        %v2720 = vadd.f32 %v2661, %v2662
        %v2721 = vadd.f32 %v2669, %v2670
        %v2722 = vadd.f32 %v2677, %v2678
        %v2723 = vadd.f32 %v2685, %v2686
        %v2724 = vadd.f32 %v2693, %v2694
        %v2725 = vadd.f32 %v2701, %v2702
        %v2726 = vadd.f32 %v2655, %v2656
        %v2727 = vadd.f32 %v2663, %v2664
        %v2728 = vadd.f32 %v2671, %v2672
        %v2729 = vadd.f32 %v2679, %v2680
        %v2730 = vadd.f32 %v2687, %v2688
        %v2731 = vadd.f32 %v2695, %v2696
        %v2732 = vadd.f32 %v2703, %v2704
        %v2733 = vadd.f32 %v2705, %v2712
        %v2734 = vadd.f32 %v2706, %v2713
        %v2735 = vadd.f32 %v2707, %v2714
        %v2736 = vadd.f32 %v2708, %v2715
        %v2737 = vadd.f32 %v2709, %v2716
        %v2738 = vadd.f32 %v2710, %v2717
        %v2739 = vadd.f32 %v2711, %v2718
        %v2740 = vadd.f32 %v2719, %v2726
        %v2741 = vadd.f32 %v2720, %v2727
        %v2742 = vadd.f32 %v2721, %v2728
        %v2743 = vadd.f32 %v2722, %v2729
        %v2744 = vadd.f32 %v2723, %v2730
        %v2745 = vadd.f32 %v2724, %v2731
        %v2746 = vadd.f32 %v2725, %v2732
        %v2747 = vadd.f32 %v2733, %v2740
        %v2748 = vadd.f32 %v2734, %v2741
        %v2749 = vadd.f32 %v2735, %v2742
        %v2750 = vadd.f32 %v2736, %v2743
        %v2751 = vadd.f32 %v2737, %v2744
        %v2752 = vadd.f32 %v2738, %v2745
        %v2753 = vadd.f32 %v2739, %v2746
        %v2754 = vadd.f32 %v2747, %v2748
        %v2755 = vadd.f32 %v2754, %v2749
        %v2756 = vadd.f32 %v2755, %v2750
        %v2757 = vadd.f32 %v2756, %v2751
        %v2758 = vadd.f32 %v2757, %v2752
        %v2759 = vadd.f32 %v2758, %v2753
        %v2760 = vrot.slane %v2759, 4
        %v2761 = vadd.f32 %v2759, %v2760
        %v2762 = vrot.slane %v2761, 2
        %v2763 = vadd.f32 %v2761, %v2762
        %v2764 = vrot.slane %v2763, 1
        %v2765 = vadd.f32 %v2763, %v2764
        %v2766 = vmul.f32 %v1552, %v2242
        %v2767 = vmul.f32 %v1553, %v2243
        %v2768 = vmul.f32 %v1554, %v2244
        %v2769 = vmul.f32 %v1555, %v2245
        %v2770 = vmul.f32 %v1556, %v2246
        %v2771 = vmul.f32 %v1557, %v2247
        %v2772 = vmul.f32 %v1558, %v2248
        %v2773 = vmul.f32 %v1559, %v2249
        %v2774 = vmul.f32 %v1560, %v2250
        %v2775 = vmul.f32 %v1561, %v2251
        %v2776 = vmul.f32 %v1562, %v2252
        %v2777 = vmul.f32 %v1563, %v2253
        %v2778 = vmul.f32 %v1564, %v2254
        %v2779 = vmul.f32 %v1565, %v2255
        %v2780 = vmul.f32 %v1566, %v2256
        %v2781 = vmul.f32 %v1567, %v2257
        %v2782 = vmul.f32 %v1568, %v2258
        %v2783 = vmul.f32 %v1569, %v2259
        %v2784 = vmul.f32 %v1570, %v2260
        %v2785 = vmul.f32 %v1571, %v2261
        %v2786 = vmul.f32 %v1572, %v2262
        %v2787 = vmul.f32 %v1573, %v2263
        %v2788 = vmul.f32 %v1574, %v2264
        %v2789 = vmul.f32 %v1575, %v2265
        %v2790 = vmul.f32 %v1576, %v2266
        %v2791 = vmul.f32 %v1577, %v2267
        %v2792 = vmul.f32 %v1578, %v2268
        %v2793 = vmul.f32 %v1579, %v2269
        %v2794 = vmul.f32 %v1580, %v2270
        %v2795 = vmul.f32 %v1581, %v2271
        %v2796 = vmul.f32 %v1582, %v2272
        %v2797 = vmul.f32 %v1583, %v2273
        %v2798 = vmul.f32 %v1584, %v2274
        %v2799 = vmul.f32 %v1585, %v2275
        %v2800 = vmul.f32 %v1586, %v2276
        %v2801 = vmul.f32 %v1587, %v2277
        %v2802 = vmul.f32 %v1588, %v2278
        %v2803 = vmul.f32 %v1589, %v2279
        %v2804 = vmul.f32 %v1590, %v2280
        %v2805 = vmul.f32 %v1591, %v2281
        %v2806 = vmul.f32 %v1592, %v2282
        %v2807 = vmul.f32 %v1593, %v2283
        %v2808 = vmul.f32 %v1594, %v2284
        %v2809 = vmul.f32 %v1595, %v2285
        %v2810 = vmul.f32 %v1596, %v2286
        %v2811 = vmul.f32 %v1597, %v2287
        %v2812 = vmul.f32 %v1598, %v2288
        %v2813 = vmul.f32 %v1599, %v2289
        %v2814 = vmul.f32 %v1600, %v2290
        %v2815 = vmul.f32 %v1601, %v2291
        %v2816 = vmul.f32 %v1602, %v2292
        %v2817 = vmul.f32 %v1603, %v2293
        %v2818 = vmul.f32 %v1604, %v2294
        %v2819 = vmul.f32 %v1605, %v2295
        %v2820 = vmul.f32 %v1606, %v2296
        %v2821 = vmul.f32 %v1607, %v2297
        %v2822 = vadd.f32 %v2766, %v2767
        %v2823 = vadd.f32 %v2774, %v2775
        %v2824 = vadd.f32 %v2782, %v2783
        %v2825 = vadd.f32 %v2790, %v2791
        %v2826 = vadd.f32 %v2798, %v2799
        %v2827 = vadd.f32 %v2806, %v2807
        %v2828 = vadd.f32 %v2814, %v2815
        %v2829 = vadd.f32 %v2768, %v2769
        %v2830 = vadd.f32 %v2776, %v2777
        %v2831 = vadd.f32 %v2784, %v2785
        %v2832 = vadd.f32 %v2792, %v2793
        %v2833 = vadd.f32 %v2800, %v2801
        %v2834 = vadd.f32 %v2808, %v2809
        %v2835 = vadd.f32 %v2816, %v2817
        %v2836 = vadd.f32 %v2770, %v2771
        %v2837 = vadd.f32 %v2778, %v2779
        %v2838 = vadd.f32 %v2786, %v2787
        %v2839 = vadd.f32 %v2794, %v2795
        %v2840 = vadd.f32 %v2802, %v2803
        %v2841 = vadd.f32 %v2810, %v2811
        %v2842 = vadd.f32 %v2818, %v2819
        %v2843 = vadd.f32 %v2772, %v2773
        %v2844 = vadd.f32 %v2780, %v2781
        %v2845 = vadd.f32 %v2788, %v2789
        %v2846 = vadd.f32 %v2796, %v2797
        %v2847 = vadd.f32 %v2804, %v2805
        %v2848 = vadd.f32 %v2812, %v2813
        %v2849 = vadd.f32 %v2820, %v2821
        %v2850 = vadd.f32 %v2822, %v2829
        %v2851 = vadd.f32 %v2823, %v2830
        %v2852 = vadd.f32 %v2824, %v2831
        %v2853 = vadd.f32 %v2825, %v2832
        %v2854 = vadd.f32 %v2826, %v2833
        %v2855 = vadd.f32 %v2827, %v2834
        %v2856 = vadd.f32 %v2828, %v2835
        %v2857 = vadd.f32 %v2836, %v2843
        %v2858 = vadd.f32 %v2837, %v2844
        %v2859 = vadd.f32 %v2838, %v2845
        %v2860 = vadd.f32 %v2839, %v2846
        %v2861 = vadd.f32 %v2840, %v2847
        %v2862 = vadd.f32 %v2841, %v2848
        %v2863 = vadd.f32 %v2842, %v2849
        %v2864 = vadd.f32 %v2850, %v2857
        %v2865 = vadd.f32 %v2851, %v2858
        %v2866 = vadd.f32 %v2852, %v2859
        %v2867 = vadd.f32 %v2853, %v2860
        %v2868 = vadd.f32 %v2854, %v2861
        %v2869 = vadd.f32 %v2855, %v2862
        %v2870 = vadd.f32 %v2856, %v2863
        %v2871 = vadd.f32 %v2864, %v2865
        %v2872 = vadd.f32 %v2871, %v2866
        %v2873 = vadd.f32 %v2872, %v2867
        %v2874 = vadd.f32 %v2873, %v2868
        %v2875 = vadd.f32 %v2874, %v2869
        %v2876 = vadd.f32 %v2875, %v2870
        %v2877 = vrot.slane %v2876, 4
        %v2878 = vadd.f32 %v2876, %v2877
        %v2879 = vrot.slane %v2878, 2
        %v2880 = vadd.f32 %v2878, %v2879
        %v2881 = vrot.slane %v2880, 1
        %v2882 = vadd.f32 %v2880, %v2881
        %v2883 = vmul.f32 %v1608, %v1720
        %v2884 = vmul.f32 %v1609, %v1721
        %v2885 = vmul.f32 %v1610, %v1722
        %v2886 = vmul.f32 %v1611, %v1723
        %v2887 = vmul.f32 %v1612, %v1724
        %v2888 = vmul.f32 %v1613, %v1725
        %v2889 = vmul.f32 %v1614, %v1726
        %v2890 = vmul.f32 %v1615, %v1727
        %v2891 = vmul.f32 %v1616, %v1728
        %v2892 = vmul.f32 %v1617, %v1729
        %v2893 = vmul.f32 %v1618, %v1730
        %v2894 = vmul.f32 %v1619, %v1731
        %v2895 = vmul.f32 %v1620, %v1732
        %v2896 = vmul.f32 %v1621, %v1733
        %v2897 = vmul.f32 %v1622, %v1734
        %v2898 = vmul.f32 %v1623, %v1735
        %v2899 = vmul.f32 %v1624, %v1736
        %v2900 = vmul.f32 %v1625, %v1737
        %v2901 = vmul.f32 %v1626, %v1738
        %v2902 = vmul.f32 %v1627, %v1739
        %v2903 = vmul.f32 %v1628, %v1740
        %v2904 = vmul.f32 %v1629, %v1741
        %v2905 = vmul.f32 %v1630, %v1742
        %v2906 = vmul.f32 %v1631, %v1743
        %v2907 = vmul.f32 %v1632, %v1744
        %v2908 = vmul.f32 %v1633, %v1745
        %v2909 = vmul.f32 %v1634, %v1746
        %v2910 = vmul.f32 %v1635, %v1747
        %v2911 = vmul.f32 %v1636, %v1748
        %v2912 = vmul.f32 %v1637, %v1749
        %v2913 = vmul.f32 %v1638, %v1750
        %v2914 = vmul.f32 %v1639, %v1751
        %v2915 = vmul.f32 %v1640, %v1752
        %v2916 = vmul.f32 %v1641, %v1753
        %v2917 = vmul.f32 %v1642, %v1754
        %v2918 = vmul.f32 %v1643, %v1755
        %v2919 = vmul.f32 %v1644, %v1756
        %v2920 = vmul.f32 %v1645, %v1757
        %v2921 = vmul.f32 %v1646, %v1758
        %v2922 = vmul.f32 %v1647, %v1759
        %v2923 = vmul.f32 %v1648, %v1760
        %v2924 = vmul.f32 %v1649, %v1761
        %v2925 = vmul.f32 %v1650, %v1762
        %v2926 = vmul.f32 %v1651, %v1763
        %v2927 = vmul.f32 %v1652, %v1764
        %v2928 = vmul.f32 %v1653, %v1765
        %v2929 = vmul.f32 %v1654, %v1766
        %v2930 = vmul.f32 %v1655, %v1767
        %v2931 = vmul.f32 %v1656, %v1768
        %v2932 = vmul.f32 %v1657, %v1769
        %v2933 = vmul.f32 %v1658, %v1770
        %v2934 = vmul.f32 %v1659, %v1771
        %v2935 = vmul.f32 %v1660, %v1772
        %v2936 = vmul.f32 %v1661, %v1773
        %v2937 = vmul.f32 %v1662, %v1774
        %v2938 = vmul.f32 %v1663, %v1775
        %v2939 = vadd.f32 %v2883, %v2884
        %v2940 = vadd.f32 %v2891, %v2892
        %v2941 = vadd.f32 %v2899, %v2900
        %v2942 = vadd.f32 %v2907, %v2908
        %v2943 = vadd.f32 %v2915, %v2916
        %v2944 = vadd.f32 %v2923, %v2924
        %v2945 = vadd.f32 %v2931, %v2932
        %v2946 = vadd.f32 %v2885, %v2886
        %v2947 = vadd.f32 %v2893, %v2894
        %v2948 = vadd.f32 %v2901, %v2902
        %v2949 = vadd.f32 %v2909, %v2910
        %v2950 = vadd.f32 %v2917, %v2918
        %v2951 = vadd.f32 %v2925, %v2926
        %v2952 = vadd.f32 %v2933, %v2934
        %v2953 = vadd.f32 %v2887, %v2888
        %v2954 = vadd.f32 %v2895, %v2896
        %v2955 = vadd.f32 %v2903, %v2904
        %v2956 = vadd.f32 %v2911, %v2912
        %v2957 = vadd.f32 %v2919, %v2920
        %v2958 = vadd.f32 %v2927, %v2928
        %v2959 = vadd.f32 %v2935, %v2936
        %v2960 = vadd.f32 %v2889, %v2890
        %v2961 = vadd.f32 %v2897, %v2898
        %v2962 = vadd.f32 %v2905, %v2906
        %v2963 = vadd.f32 %v2913, %v2914
        %v2964 = vadd.f32 %v2921, %v2922
        %v2965 = vadd.f32 %v2929, %v2930
        %v2966 = vadd.f32 %v2937, %v2938
        %v2967 = vadd.f32 %v2939, %v2946
        %v2968 = vadd.f32 %v2940, %v2947
        %v2969 = vadd.f32 %v2941, %v2948
        %v2970 = vadd.f32 %v2942, %v2949
        %v2971 = vadd.f32 %v2943, %v2950
        %v2972 = vadd.f32 %v2944, %v2951
        %v2973 = vadd.f32 %v2945, %v2952
        %v2974 = vadd.f32 %v2953, %v2960
        %v2975 = vadd.f32 %v2954, %v2961
        %v2976 = vadd.f32 %v2955, %v2962
        %v2977 = vadd.f32 %v2956, %v2963
        %v2978 = vadd.f32 %v2957, %v2964
        %v2979 = vadd.f32 %v2958, %v2965
        %v2980 = vadd.f32 %v2959, %v2966
        %v2981 = vadd.f32 %v2967, %v2974
        %v2982 = vadd.f32 %v2968, %v2975
        %v2983 = vadd.f32 %v2969, %v2976
        %v2984 = vadd.f32 %v2970, %v2977
        %v2985 = vadd.f32 %v2971, %v2978
        %v2986 = vadd.f32 %v2972, %v2979
        %v2987 = vadd.f32 %v2973, %v2980
        %v2988 = vadd.f32 %v2981, %v2982
        %v2989 = vadd.f32 %v2988, %v2983
        %v2990 = vadd.f32 %v2989, %v2984
        %v2991 = vadd.f32 %v2990, %v2985
        %v2992 = vadd.f32 %v2991, %v2986
        %v2993 = vadd.f32 %v2992, %v2987
        %v2994 = vrot.slane %v2993, 4
        %v2995 = vadd.f32 %v2993, %v2994
        %v2996 = vrot.slane %v2995, 2
        %v2997 = vadd.f32 %v2995, %v2996
        %v2998 = vrot.slane %v2997, 1
        %v2999 = vadd.f32 %v2997, %v2998
        %v3000 = vmul.f32 %v1608, %v1894
        %v3001 = vmul.f32 %v1609, %v1895
        %v3002 = vmul.f32 %v1610, %v1896
        %v3003 = vmul.f32 %v1611, %v1897
        %v3004 = vmul.f32 %v1612, %v1898
        %v3005 = vmul.f32 %v1613, %v1899
        %v3006 = vmul.f32 %v1614, %v1900
        %v3007 = vmul.f32 %v1615, %v1901
        %v3008 = vmul.f32 %v1616, %v1902
        %v3009 = vmul.f32 %v1617, %v1903
        %v3010 = vmul.f32 %v1618, %v1904
        %v3011 = vmul.f32 %v1619, %v1905
        %v3012 = vmul.f32 %v1620, %v1906
        %v3013 = vmul.f32 %v1621, %v1907
        %v3014 = vmul.f32 %v1622, %v1908
        %v3015 = vmul.f32 %v1623, %v1909
        %v3016 = vmul.f32 %v1624, %v1910
        %v3017 = vmul.f32 %v1625, %v1911
        %v3018 = vmul.f32 %v1626, %v1912
        %v3019 = vmul.f32 %v1627, %v1913
        %v3020 = vmul.f32 %v1628, %v1914
        %v3021 = vmul.f32 %v1629, %v1915
        %v3022 = vmul.f32 %v1630, %v1916
        %v3023 = vmul.f32 %v1631, %v1917
        %v3024 = vmul.f32 %v1632, %v1918
        %v3025 = vmul.f32 %v1633, %v1919
        %v3026 = vmul.f32 %v1634, %v1920
        %v3027 = vmul.f32 %v1635, %v1921
        %v3028 = vmul.f32 %v1636, %v1922
        %v3029 = vmul.f32 %v1637, %v1923
        %v3030 = vmul.f32 %v1638, %v1924
        %v3031 = vmul.f32 %v1639, %v1925
        %v3032 = vmul.f32 %v1640, %v1926
        %v3033 = vmul.f32 %v1641, %v1927
        %v3034 = vmul.f32 %v1642, %v1928
        %v3035 = vmul.f32 %v1643, %v1929
        %v3036 = vmul.f32 %v1644, %v1930
        %v3037 = vmul.f32 %v1645, %v1931
        %v3038 = vmul.f32 %v1646, %v1932
        %v3039 = vmul.f32 %v1647, %v1933
        %v3040 = vmul.f32 %v1648, %v1934
        %v3041 = vmul.f32 %v1649, %v1935
        %v3042 = vmul.f32 %v1650, %v1936
        %v3043 = vmul.f32 %v1651, %v1937
        %v3044 = vmul.f32 %v1652, %v1938
        %v3045 = vmul.f32 %v1653, %v1939
        %v3046 = vmul.f32 %v1654, %v1940
        %v3047 = vmul.f32 %v1655, %v1941
        %v3048 = vmul.f32 %v1656, %v1942
        %v3049 = vmul.f32 %v1657, %v1943
        %v3050 = vmul.f32 %v1658, %v1944
        %v3051 = vmul.f32 %v1659, %v1945
        %v3052 = vmul.f32 %v1660, %v1946
        %v3053 = vmul.f32 %v1661, %v1947
        %v3054 = vmul.f32 %v1662, %v1948
        %v3055 = vmul.f32 %v1663, %v1949
        %v3056 = vadd.f32 %v3000, %v3001
        %v3057 = vadd.f32 %v3008, %v3009
        %v3058 = vadd.f32 %v3016, %v3017
        %v3059 = vadd.f32 %v3024, %v3025
        %v3060 = vadd.f32 %v3032, %v3033
        %v3061 = vadd.f32 %v3040, %v3041
        %v3062 = vadd.f32 %v3048, %v3049
        %v3063 = vadd.f32 %v3002, %v3003
        %v3064 = vadd.f32 %v3010, %v3011
        %v3065 = vadd.f32 %v3018, %v3019
        %v3066 = vadd.f32 %v3026, %v3027
        %v3067 = vadd.f32 %v3034, %v3035
        %v3068 = vadd.f32 %v3042, %v3043
        %v3069 = vadd.f32 %v3050, %v3051
        %v3070 = vadd.f32 %v3004, %v3005
        %v3071 = vadd.f32 %v3012, %v3013
        %v3072 = vadd.f32 %v3020, %v3021
        %v3073 = vadd.f32 %v3028, %v3029
        %v3074 = vadd.f32 %v3036, %v3037
        %v3075 = vadd.f32 %v3044, %v3045
        %v3076 = vadd.f32 %v3052, %v3053
        %v3077 = vadd.f32 %v3006, %v3007
        %v3078 = vadd.f32 %v3014, %v3015
        %v3079 = vadd.f32 %v3022, %v3023
        %v3080 = vadd.f32 %v3030, %v3031
        %v3081 = vadd.f32 %v3038, %v3039
        %v3082 = vadd.f32 %v3046, %v3047
        %v3083 = vadd.f32 %v3054, %v3055
        %v3084 = vadd.f32 %v3056, %v3063
        %v3085 = vadd.f32 %v3057, %v3064
        %v3086 = vadd.f32 %v3058, %v3065
        %v3087 = vadd.f32 %v3059, %v3066
        %v3088 = vadd.f32 %v3060, %v3067
        %v3089 = vadd.f32 %v3061, %v3068
        %v3090 = vadd.f32 %v3062, %v3069
        %v3091 = vadd.f32 %v3070, %v3077
        %v3092 = vadd.f32 %v3071, %v3078
        %v3093 = vadd.f32 %v3072, %v3079
        %v3094 = vadd.f32 %v3073, %v3080
        %v3095 = vadd.f32 %v3074, %v3081
        %v3096 = vadd.f32 %v3075, %v3082
        %v3097 = vadd.f32 %v3076, %v3083
        %v3098 = vadd.f32 %v3084, %v3091
        %v3099 = vadd.f32 %v3085, %v3092
        %v3100 = vadd.f32 %v3086, %v3093
        %v3101 = vadd.f32 %v3087, %v3094
        %v3102 = vadd.f32 %v3088, %v3095
        %v3103 = vadd.f32 %v3089, %v3096
        %v3104 = vadd.f32 %v3090, %v3097
        %v3105 = vadd.f32 %v3098, %v3099
        %v3106 = vadd.f32 %v3105, %v3100
        %v3107 = vadd.f32 %v3106, %v3101
        %v3108 = vadd.f32 %v3107, %v3102
        %v3109 = vadd.f32 %v3108, %v3103
        %v3110 = vadd.f32 %v3109, %v3104
        %v3111 = vrot.slane %v3110, 4
        %v3112 = vadd.f32 %v3110, %v3111
        %v3113 = vrot.slane %v3112, 2
        %v3114 = vadd.f32 %v3112, %v3113
        %v3115 = vrot.slane %v3114, 1
        %v3116 = vadd.f32 %v3114, %v3115
        %v3117 = vmul.f32 %v1608, %v2068
        %v3118 = vmul.f32 %v1609, %v2069
        %v3119 = vmul.f32 %v1610, %v2070
        %v3120 = vmul.f32 %v1611, %v2071
        %v3121 = vmul.f32 %v1612, %v2072
        %v3122 = vmul.f32 %v1613, %v2073
        %v3123 = vmul.f32 %v1614, %v2074
        %v3124 = vmul.f32 %v1615, %v2075
        %v3125 = vmul.f32 %v1616, %v2076
        %v3126 = vmul.f32 %v1617, %v2077
        %v3127 = vmul.f32 %v1618, %v2078
        %v3128 = vmul.f32 %v1619, %v2079
        %v3129 = vmul.f32 %v1620, %v2080
        %v3130 = vmul.f32 %v1621, %v2081
        %v3131 = vmul.f32 %v1622, %v2082
        %v3132 = vmul.f32 %v1623, %v2083
        %v3133 = vmul.f32 %v1624, %v2084
        %v3134 = vmul.f32 %v1625, %v2085
        %v3135 = vmul.f32 %v1626, %v2086
        %v3136 = vmul.f32 %v1627, %v2087
        %v3137 = vmul.f32 %v1628, %v2088
        %v3138 = vmul.f32 %v1629, %v2089
        %v3139 = vmul.f32 %v1630, %v2090
        %v3140 = vmul.f32 %v1631, %v2091
        %v3141 = vmul.f32 %v1632, %v2092
        %v3142 = vmul.f32 %v1633, %v2093
        %v3143 = vmul.f32 %v1634, %v2094
        %v3144 = vmul.f32 %v1635, %v2095
        %v3145 = vmul.f32 %v1636, %v2096
        %v3146 = vmul.f32 %v1637, %v2097
        %v3147 = vmul.f32 %v1638, %v2098
        %v3148 = vmul.f32 %v1639, %v2099
        %v3149 = vmul.f32 %v1640, %v2100
        %v3150 = vmul.f32 %v1641, %v2101
        %v3151 = vmul.f32 %v1642, %v2102
        %v3152 = vmul.f32 %v1643, %v2103
        %v3153 = vmul.f32 %v1644, %v2104
        %v3154 = vmul.f32 %v1645, %v2105
        %v3155 = vmul.f32 %v1646, %v2106
        %v3156 = vmul.f32 %v1647, %v2107
        %v3157 = vmul.f32 %v1648, %v2108
        %v3158 = vmul.f32 %v1649, %v2109
        %v3159 = vmul.f32 %v1650, %v2110
        %v3160 = vmul.f32 %v1651, %v2111
        %v3161 = vmul.f32 %v1652, %v2112
        %v3162 = vmul.f32 %v1653, %v2113
        %v3163 = vmul.f32 %v1654, %v2114
        %v3164 = vmul.f32 %v1655, %v2115
        %v3165 = vmul.f32 %v1656, %v2116
        %v3166 = vmul.f32 %v1657, %v2117
        %v3167 = vmul.f32 %v1658, %v2118
        %v3168 = vmul.f32 %v1659, %v2119
        %v3169 = vmul.f32 %v1660, %v2120
        %v3170 = vmul.f32 %v1661, %v2121
        %v3171 = vmul.f32 %v1662, %v2122
        %v3172 = vmul.f32 %v1663, %v2123
        %v3173 = vadd.f32 %v3117, %v3118
        %v3174 = vadd.f32 %v3125, %v3126
        %v3175 = vadd.f32 %v3133, %v3134
        %v3176 = vadd.f32 %v3141, %v3142
        %v3177 = vadd.f32 %v3149, %v3150
        %v3178 = vadd.f32 %v3157, %v3158
        %v3179 = vadd.f32 %v3165, %v3166
        %v3180 = vadd.f32 %v3119, %v3120
        %v3181 = vadd.f32 %v3127, %v3128
        %v3182 = vadd.f32 %v3135, %v3136
        %v3183 = vadd.f32 %v3143, %v3144
        %v3184 = vadd.f32 %v3151, %v3152
        %v3185 = vadd.f32 %v3159, %v3160
        %v3186 = vadd.f32 %v3167, %v3168
        %v3187 = vadd.f32 %v3121, %v3122
        %v3188 = vadd.f32 %v3129, %v3130
        %v3189 = vadd.f32 %v3137, %v3138
        %v3190 = vadd.f32 %v3145, %v3146
        %v3191 = vadd.f32 %v3153, %v3154
        %v3192 = vadd.f32 %v3161, %v3162
        %v3193 = vadd.f32 %v3169, %v3170
        %v3194 = vadd.f32 %v3123, %v3124
        %v3195 = vadd.f32 %v3131, %v3132
        %v3196 = vadd.f32 %v3139, %v3140
        %v3197 = vadd.f32 %v3147, %v3148
        %v3198 = vadd.f32 %v3155, %v3156
        %v3199 = vadd.f32 %v3163, %v3164
        %v3200 = vadd.f32 %v3171, %v3172
        %v3201 = vadd.f32 %v3173, %v3180
        %v3202 = vadd.f32 %v3174, %v3181
        %v3203 = vadd.f32 %v3175, %v3182
        %v3204 = vadd.f32 %v3176, %v3183
        %v3205 = vadd.f32 %v3177, %v3184
        %v3206 = vadd.f32 %v3178, %v3185
        %v3207 = vadd.f32 %v3179, %v3186
        %v3208 = vadd.f32 %v3187, %v3194
        %v3209 = vadd.f32 %v3188, %v3195
        %v3210 = vadd.f32 %v3189, %v3196
        %v3211 = vadd.f32 %v3190, %v3197
        %v3212 = vadd.f32 %v3191, %v3198
        %v3213 = vadd.f32 %v3192, %v3199
        %v3214 = vadd.f32 %v3193, %v3200
        %v3215 = vadd.f32 %v3201, %v3208
        %v3216 = vadd.f32 %v3202, %v3209
        %v3217 = vadd.f32 %v3203, %v3210
        %v3218 = vadd.f32 %v3204, %v3211
        %v3219 = vadd.f32 %v3205, %v3212
        %v3220 = vadd.f32 %v3206, %v3213
        %v3221 = vadd.f32 %v3207, %v3214
        %v3222 = vadd.f32 %v3215, %v3216
        %v3223 = vadd.f32 %v3222, %v3217
        %v3224 = vadd.f32 %v3223, %v3218
        %v3225 = vadd.f32 %v3224, %v3219
        %v3226 = vadd.f32 %v3225, %v3220
        %v3227 = vadd.f32 %v3226, %v3221
        %v3228 = vrot.slane %v3227, 4
        %v3229 = vadd.f32 %v3227, %v3228
        %v3230 = vrot.slane %v3229, 2
        %v3231 = vadd.f32 %v3229, %v3230
        %v3232 = vrot.slane %v3231, 1
        %v3233 = vadd.f32 %v3231, %v3232
        %v3234 = vmul.f32 %v1608, %v2242
        %v3235 = vmul.f32 %v1609, %v2243
        %v3236 = vmul.f32 %v1610, %v2244
        %v3237 = vmul.f32 %v1611, %v2245
        %v3238 = vmul.f32 %v1612, %v2246
        %v3239 = vmul.f32 %v1613, %v2247
        %v3240 = vmul.f32 %v1614, %v2248
        %v3241 = vmul.f32 %v1615, %v2249
        %v3242 = vmul.f32 %v1616, %v2250
        %v3243 = vmul.f32 %v1617, %v2251
        %v3244 = vmul.f32 %v1618, %v2252
        %v3245 = vmul.f32 %v1619, %v2253
        %v3246 = vmul.f32 %v1620, %v2254
        %v3247 = vmul.f32 %v1621, %v2255
        %v3248 = vmul.f32 %v1622, %v2256
        %v3249 = vmul.f32 %v1623, %v2257
        %v3250 = vmul.f32 %v1624, %v2258
        %v3251 = vmul.f32 %v1625, %v2259
        %v3252 = vmul.f32 %v1626, %v2260
        %v3253 = vmul.f32 %v1627, %v2261
        %v3254 = vmul.f32 %v1628, %v2262
        %v3255 = vmul.f32 %v1629, %v2263
        %v3256 = vmul.f32 %v1630, %v2264
        %v3257 = vmul.f32 %v1631, %v2265
        %v3258 = vmul.f32 %v1632, %v2266
        %v3259 = vmul.f32 %v1633, %v2267
        %v3260 = vmul.f32 %v1634, %v2268
        %v3261 = vmul.f32 %v1635, %v2269
        %v3262 = vmul.f32 %v1636, %v2270
        %v3263 = vmul.f32 %v1637, %v2271
        %v3264 = vmul.f32 %v1638, %v2272
        %v3265 = vmul.f32 %v1639, %v2273
        %v3266 = vmul.f32 %v1640, %v2274
        %v3267 = vmul.f32 %v1641, %v2275
        %v3268 = vmul.f32 %v1642, %v2276
        %v3269 = vmul.f32 %v1643, %v2277
        %v3270 = vmul.f32 %v1644, %v2278
        %v3271 = vmul.f32 %v1645, %v2279
        %v3272 = vmul.f32 %v1646, %v2280
        %v3273 = vmul.f32 %v1647, %v2281
        %v3274 = vmul.f32 %v1648, %v2282
        %v3275 = vmul.f32 %v1649, %v2283
        %v3276 = vmul.f32 %v1650, %v2284
        %v3277 = vmul.f32 %v1651, %v2285
        %v3278 = vmul.f32 %v1652, %v2286
        %v3279 = vmul.f32 %v1653, %v2287
        %v3280 = vmul.f32 %v1654, %v2288
        %v3281 = vmul.f32 %v1655, %v2289
        %v3282 = vmul.f32 %v1656, %v2290
        %v3283 = vmul.f32 %v1657, %v2291
        %v3284 = vmul.f32 %v1658, %v2292
        %v3285 = vmul.f32 %v1659, %v2293
        %v3286 = vmul.f32 %v1660, %v2294
        %v3287 = vmul.f32 %v1661, %v2295
        %v3288 = vmul.f32 %v1662, %v2296
        %v3289 = vmul.f32 %v1663, %v2297
        %v3290 = vadd.f32 %v3234, %v3235
        %v3291 = vadd.f32 %v3242, %v3243
        %v3292 = vadd.f32 %v3250, %v3251
        %v3293 = vadd.f32 %v3258, %v3259
        %v3294 = vadd.f32 %v3266, %v3267
        %v3295 = vadd.f32 %v3274, %v3275
        %v3296 = vadd.f32 %v3282, %v3283
        %v3297 = vadd.f32 %v3236, %v3237
        %v3298 = vadd.f32 %v3244, %v3245
        %v3299 = vadd.f32 %v3252, %v3253
        %v3300 = vadd.f32 %v3260, %v3261
        %v3301 = vadd.f32 %v3268, %v3269
        %v3302 = vadd.f32 %v3276, %v3277
        %v3303 = vadd.f32 %v3284, %v3285
        %v3304 = vadd.f32 %v3238, %v3239
        %v3305 = vadd.f32 %v3246, %v3247
        %v3306 = vadd.f32 %v3254, %v3255
        %v3307 = vadd.f32 %v3262, %v3263
        %v3308 = vadd.f32 %v3270, %v3271
        %v3309 = vadd.f32 %v3278, %v3279
        %v3310 = vadd.f32 %v3286, %v3287
        %v3311 = vadd.f32 %v3240, %v3241
        %v3312 = vadd.f32 %v3248, %v3249
        %v3313 = vadd.f32 %v3256, %v3257
        %v3314 = vadd.f32 %v3264, %v3265
        %v3315 = vadd.f32 %v3272, %v3273
        %v3316 = vadd.f32 %v3280, %v3281
        %v3317 = vadd.f32 %v3288, %v3289
        %v3318 = vadd.f32 %v3290, %v3297
        %v3319 = vadd.f32 %v3291, %v3298
        %v3320 = vadd.f32 %v3292, %v3299
        %v3321 = vadd.f32 %v3293, %v3300
        %v3322 = vadd.f32 %v3294, %v3301
        %v3323 = vadd.f32 %v3295, %v3302
        %v3324 = vadd.f32 %v3296, %v3303
        %v3325 = vadd.f32 %v3304, %v3311
        %v3326 = vadd.f32 %v3305, %v3312
        %v3327 = vadd.f32 %v3306, %v3313
        %v3328 = vadd.f32 %v3307, %v3314
        %v3329 = vadd.f32 %v3308, %v3315
        %v3330 = vadd.f32 %v3309, %v3316
        %v3331 = vadd.f32 %v3310, %v3317
        %v3332 = vadd.f32 %v3318, %v3325
        %v3333 = vadd.f32 %v3319, %v3326
        %v3334 = vadd.f32 %v3320, %v3327
        %v3335 = vadd.f32 %v3321, %v3328
        %v3336 = vadd.f32 %v3322, %v3329
        %v3337 = vadd.f32 %v3323, %v3330
        %v3338 = vadd.f32 %v3324, %v3331
        %v3339 = vadd.f32 %v3332, %v3333
        %v3340 = vadd.f32 %v3339, %v3334
        %v3341 = vadd.f32 %v3340, %v3335
        %v3342 = vadd.f32 %v3341, %v3336
        %v3343 = vadd.f32 %v3342, %v3337
        %v3344 = vadd.f32 %v3343, %v3338
        %v3345 = vrot.slane %v3344, 4
        %v3346 = vadd.f32 %v3344, %v3345
        %v3347 = vrot.slane %v3346, 2
        %v3348 = vadd.f32 %v3346, %v3347
        %v3349 = vrot.slane %v3348, 1
        %v3350 = vadd.f32 %v3348, %v3349
        %v3351 = vmul.f32 %v1664, %v1720
        %v3352 = vmul.f32 %v1665, %v1721
        %v3353 = vmul.f32 %v1666, %v1722
        %v3354 = vmul.f32 %v1667, %v1723
        %v3355 = vmul.f32 %v1668, %v1724
        %v3356 = vmul.f32 %v1669, %v1725
        %v3357 = vmul.f32 %v1670, %v1726
        %v3358 = vmul.f32 %v1671, %v1727
        %v3359 = vmul.f32 %v1672, %v1728
        %v3360 = vmul.f32 %v1673, %v1729
        %v3361 = vmul.f32 %v1674, %v1730
        %v3362 = vmul.f32 %v1675, %v1731
        %v3363 = vmul.f32 %v1676, %v1732
        %v3364 = vmul.f32 %v1677, %v1733
        %v3365 = vmul.f32 %v1678, %v1734
        %v3366 = vmul.f32 %v1679, %v1735
        %v3367 = vmul.f32 %v1680, %v1736
        %v3368 = vmul.f32 %v1681, %v1737
        %v3369 = vmul.f32 %v1682, %v1738
        %v3370 = vmul.f32 %v1683, %v1739
        %v3371 = vmul.f32 %v1684, %v1740
        %v3372 = vmul.f32 %v1685, %v1741
        %v3373 = vmul.f32 %v1686, %v1742
        %v3374 = vmul.f32 %v1687, %v1743
        %v3375 = vmul.f32 %v1688, %v1744
        %v3376 = vmul.f32 %v1689, %v1745
        %v3377 = vmul.f32 %v1690, %v1746
        %v3378 = vmul.f32 %v1691, %v1747
        %v3379 = vmul.f32 %v1692, %v1748
        %v3380 = vmul.f32 %v1693, %v1749
        %v3381 = vmul.f32 %v1694, %v1750
        %v3382 = vmul.f32 %v1695, %v1751
        %v3383 = vmul.f32 %v1696, %v1752
        %v3384 = vmul.f32 %v1697, %v1753
        %v3385 = vmul.f32 %v1698, %v1754
        %v3386 = vmul.f32 %v1699, %v1755
        %v3387 = vmul.f32 %v1700, %v1756
        %v3388 = vmul.f32 %v1701, %v1757
        %v3389 = vmul.f32 %v1702, %v1758
        %v3390 = vmul.f32 %v1703, %v1759
        %v3391 = vmul.f32 %v1704, %v1760
        %v3392 = vmul.f32 %v1705, %v1761
        %v3393 = vmul.f32 %v1706, %v1762
        %v3394 = vmul.f32 %v1707, %v1763
        %v3395 = vmul.f32 %v1708, %v1764
        %v3396 = vmul.f32 %v1709, %v1765
        %v3397 = vmul.f32 %v1710, %v1766
        %v3398 = vmul.f32 %v1711, %v1767
        %v3399 = vmul.f32 %v1712, %v1768
        %v3400 = vmul.f32 %v1713, %v1769
        %v3401 = vmul.f32 %v1714, %v1770
        %v3402 = vmul.f32 %v1715, %v1771
        %v3403 = vmul.f32 %v1716, %v1772
        %v3404 = vmul.f32 %v1717, %v1773
        %v3405 = vmul.f32 %v1718, %v1774
        %v3406 = vmul.f32 %v1719, %v1775
        %v3407 = vadd.f32 %v3351, %v3352
        %v3408 = vadd.f32 %v3359, %v3360
        %v3409 = vadd.f32 %v3367, %v3368
        %v3410 = vadd.f32 %v3375, %v3376
        %v3411 = vadd.f32 %v3383, %v3384
        %v3412 = vadd.f32 %v3391, %v3392
        %v3413 = vadd.f32 %v3399, %v3400
        %v3414 = vadd.f32 %v3353, %v3354
        %v3415 = vadd.f32 %v3361, %v3362
        %v3416 = vadd.f32 %v3369, %v3370
        %v3417 = vadd.f32 %v3377, %v3378
        %v3418 = vadd.f32 %v3385, %v3386
        %v3419 = vadd.f32 %v3393, %v3394
        %v3420 = vadd.f32 %v3401, %v3402
        %v3421 = vadd.f32 %v3355, %v3356
        %v3422 = vadd.f32 %v3363, %v3364
        %v3423 = vadd.f32 %v3371, %v3372
        %v3424 = vadd.f32 %v3379, %v3380
        %v3425 = vadd.f32 %v3387, %v3388
        %v3426 = vadd.f32 %v3395, %v3396
        %v3427 = vadd.f32 %v3403, %v3404
        %v3428 = vadd.f32 %v3357, %v3358
        %v3429 = vadd.f32 %v3365, %v3366
        %v3430 = vadd.f32 %v3373, %v3374
        %v3431 = vadd.f32 %v3381, %v3382
        %v3432 = vadd.f32 %v3389, %v3390
        %v3433 = vadd.f32 %v3397, %v3398
        %v3434 = vadd.f32 %v3405, %v3406
        %v3435 = vadd.f32 %v3407, %v3414
        %v3436 = vadd.f32 %v3408, %v3415
        %v3437 = vadd.f32 %v3409, %v3416
        %v3438 = vadd.f32 %v3410, %v3417
        %v3439 = vadd.f32 %v3411, %v3418
        %v3440 = vadd.f32 %v3412, %v3419
        %v3441 = vadd.f32 %v3413, %v3420
        %v3442 = vadd.f32 %v3421, %v3428
        %v3443 = vadd.f32 %v3422, %v3429
        %v3444 = vadd.f32 %v3423, %v3430
        %v3445 = vadd.f32 %v3424, %v3431
        %v3446 = vadd.f32 %v3425, %v3432
        %v3447 = vadd.f32 %v3426, %v3433
        %v3448 = vadd.f32 %v3427, %v3434
        %v3449 = vadd.f32 %v3435, %v3442
        %v3450 = vadd.f32 %v3436, %v3443
        %v3451 = vadd.f32 %v3437, %v3444
        %v3452 = vadd.f32 %v3438, %v3445
        %v3453 = vadd.f32 %v3439, %v3446
        %v3454 = vadd.f32 %v3440, %v3447
        %v3455 = vadd.f32 %v3441, %v3448
        %v3456 = vadd.f32 %v3449, %v3450
        %v3457 = vadd.f32 %v3456, %v3451
        %v3458 = vadd.f32 %v3457, %v3452
        %v3459 = vadd.f32 %v3458, %v3453
        %v3460 = vadd.f32 %v3459, %v3454
        %v3461 = vadd.f32 %v3460, %v3455
        %v3462 = vrot.slane %v3461, 4
        %v3463 = vadd.f32 %v3461, %v3462
        %v3464 = vrot.slane %v3463, 2
        %v3465 = vadd.f32 %v3463, %v3464
        %v3466 = vrot.slane %v3465, 1
        %v3467 = vadd.f32 %v3465, %v3466
        %v3468 = vmul.f32 %v1664, %v1894
        %v3469 = vmul.f32 %v1665, %v1895
        %v3470 = vmul.f32 %v1666, %v1896
        %v3471 = vmul.f32 %v1667, %v1897
        %v3472 = vmul.f32 %v1668, %v1898
        %v3473 = vmul.f32 %v1669, %v1899
        %v3474 = vmul.f32 %v1670, %v1900
        %v3475 = vmul.f32 %v1671, %v1901
        %v3476 = vmul.f32 %v1672, %v1902
        %v3477 = vmul.f32 %v1673, %v1903
        %v3478 = vmul.f32 %v1674, %v1904
        %v3479 = vmul.f32 %v1675, %v1905
        %v3480 = vmul.f32 %v1676, %v1906
        %v3481 = vmul.f32 %v1677, %v1907
        %v3482 = vmul.f32 %v1678, %v1908
        %v3483 = vmul.f32 %v1679, %v1909
        %v3484 = vmul.f32 %v1680, %v1910
        %v3485 = vmul.f32 %v1681, %v1911
        %v3486 = vmul.f32 %v1682, %v1912
        %v3487 = vmul.f32 %v1683, %v1913
        %v3488 = vmul.f32 %v1684, %v1914
        %v3489 = vmul.f32 %v1685, %v1915
        %v3490 = vmul.f32 %v1686, %v1916
        %v3491 = vmul.f32 %v1687, %v1917
        %v3492 = vmul.f32 %v1688, %v1918
        %v3493 = vmul.f32 %v1689, %v1919
        %v3494 = vmul.f32 %v1690, %v1920
        %v3495 = vmul.f32 %v1691, %v1921
        %v3496 = vmul.f32 %v1692, %v1922
        %v3497 = vmul.f32 %v1693, %v1923
        %v3498 = vmul.f32 %v1694, %v1924
        %v3499 = vmul.f32 %v1695, %v1925
        %v3500 = vmul.f32 %v1696, %v1926
        %v3501 = vmul.f32 %v1697, %v1927
        %v3502 = vmul.f32 %v1698, %v1928
        %v3503 = vmul.f32 %v1699, %v1929
        %v3504 = vmul.f32 %v1700, %v1930
        %v3505 = vmul.f32 %v1701, %v1931
        %v3506 = vmul.f32 %v1702, %v1932
        %v3507 = vmul.f32 %v1703, %v1933
        %v3508 = vmul.f32 %v1704, %v1934
        %v3509 = vmul.f32 %v1705, %v1935
        %v3510 = vmul.f32 %v1706, %v1936
        %v3511 = vmul.f32 %v1707, %v1937
        %v3512 = vmul.f32 %v1708, %v1938
        %v3513 = vmul.f32 %v1709, %v1939
        %v3514 = vmul.f32 %v1710, %v1940
        %v3515 = vmul.f32 %v1711, %v1941
        %v3516 = vmul.f32 %v1712, %v1942
        %v3517 = vmul.f32 %v1713, %v1943
        %v3518 = vmul.f32 %v1714, %v1944
        %v3519 = vmul.f32 %v1715, %v1945
        %v3520 = vmul.f32 %v1716, %v1946
        %v3521 = vmul.f32 %v1717, %v1947
        %v3522 = vmul.f32 %v1718, %v1948
        %v3523 = vmul.f32 %v1719, %v1949
        %v3524 = vadd.f32 %v3468, %v3469
        %v3525 = vadd.f32 %v3476, %v3477
        %v3526 = vadd.f32 %v3484, %v3485
        %v3527 = vadd.f32 %v3492, %v3493
        %v3528 = vadd.f32 %v3500, %v3501
        %v3529 = vadd.f32 %v3508, %v3509
        %v3530 = vadd.f32 %v3516, %v3517
        %v3531 = vadd.f32 %v3470, %v3471
        %v3532 = vadd.f32 %v3478, %v3479
        %v3533 = vadd.f32 %v3486, %v3487
        %v3534 = vadd.f32 %v3494, %v3495
        %v3535 = vadd.f32 %v3502, %v3503
        %v3536 = vadd.f32 %v3510, %v3511
        %v3537 = vadd.f32 %v3518, %v3519
        %v3538 = vadd.f32 %v3472, %v3473
        %v3539 = vadd.f32 %v3480, %v3481
        %v3540 = vadd.f32 %v3488, %v3489
        %v3541 = vadd.f32 %v3496, %v3497
        %v3542 = vadd.f32 %v3504, %v3505
        %v3543 = vadd.f32 %v3512, %v3513
        %v3544 = vadd.f32 %v3520, %v3521
        %v3545 = vadd.f32 %v3474, %v3475
        %v3546 = vadd.f32 %v3482, %v3483
        %v3547 = vadd.f32 %v3490, %v3491
        %v3548 = vadd.f32 %v3498, %v3499
        %v3549 = vadd.f32 %v3506, %v3507
        %v3550 = vadd.f32 %v3514, %v3515
        %v3551 = vadd.f32 %v3522, %v3523
        %v3552 = vadd.f32 %v3524, %v3531
        %v3553 = vadd.f32 %v3525, %v3532
        %v3554 = vadd.f32 %v3526, %v3533
        %v3555 = vadd.f32 %v3527, %v3534
        %v3556 = vadd.f32 %v3528, %v3535
        %v3557 = vadd.f32 %v3529, %v3536
        %v3558 = vadd.f32 %v3530, %v3537
        %v3559 = vadd.f32 %v3538, %v3545
        %v3560 = vadd.f32 %v3539, %v3546
        %v3561 = vadd.f32 %v3540, %v3547
        %v3562 = vadd.f32 %v3541, %v3548
        %v3563 = vadd.f32 %v3542, %v3549
        %v3564 = vadd.f32 %v3543, %v3550
        %v3565 = vadd.f32 %v3544, %v3551
        %v3566 = vadd.f32 %v3552, %v3559
        %v3567 = vadd.f32 %v3553, %v3560
        %v3568 = vadd.f32 %v3554, %v3561
        %v3569 = vadd.f32 %v3555, %v3562
        %v3570 = vadd.f32 %v3556, %v3563
        %v3571 = vadd.f32 %v3557, %v3564
        %v3572 = vadd.f32 %v3558, %v3565
        %v3573 = vadd.f32 %v3566, %v3567
        %v3574 = vadd.f32 %v3573, %v3568
        %v3575 = vadd.f32 %v3574, %v3569
        %v3576 = vadd.f32 %v3575, %v3570
        %v3577 = vadd.f32 %v3576, %v3571
        %v3578 = vadd.f32 %v3577, %v3572
        %v3579 = vrot.slane %v3578, 4
        %v3580 = vadd.f32 %v3578, %v3579
        %v3581 = vrot.slane %v3580, 2
        %v3582 = vadd.f32 %v3580, %v3581
        %v3583 = vrot.slane %v3582, 1
        %v3584 = vadd.f32 %v3582, %v3583
        %v3585 = vmul.f32 %v1664, %v2068
        %v3586 = vmul.f32 %v1665, %v2069
        %v3587 = vmul.f32 %v1666, %v2070
        %v3588 = vmul.f32 %v1667, %v2071
        %v3589 = vmul.f32 %v1668, %v2072
        %v3590 = vmul.f32 %v1669, %v2073
        %v3591 = vmul.f32 %v1670, %v2074
        %v3592 = vmul.f32 %v1671, %v2075
        %v3593 = vmul.f32 %v1672, %v2076
        %v3594 = vmul.f32 %v1673, %v2077
        %v3595 = vmul.f32 %v1674, %v2078
        %v3596 = vmul.f32 %v1675, %v2079
        %v3597 = vmul.f32 %v1676, %v2080
        %v3598 = vmul.f32 %v1677, %v2081
        %v3599 = vmul.f32 %v1678, %v2082
        %v3600 = vmul.f32 %v1679, %v2083
        %v3601 = vmul.f32 %v1680, %v2084
        %v3602 = vmul.f32 %v1681, %v2085
        %v3603 = vmul.f32 %v1682, %v2086
        %v3604 = vmul.f32 %v1683, %v2087
        %v3605 = vmul.f32 %v1684, %v2088
        %v3606 = vmul.f32 %v1685, %v2089
        %v3607 = vmul.f32 %v1686, %v2090
        %v3608 = vmul.f32 %v1687, %v2091
        %v3609 = vmul.f32 %v1688, %v2092
        %v3610 = vmul.f32 %v1689, %v2093
        %v3611 = vmul.f32 %v1690, %v2094
        %v3612 = vmul.f32 %v1691, %v2095
        %v3613 = vmul.f32 %v1692, %v2096
        %v3614 = vmul.f32 %v1693, %v2097
        %v3615 = vmul.f32 %v1694, %v2098
        %v3616 = vmul.f32 %v1695, %v2099
        %v3617 = vmul.f32 %v1696, %v2100
        %v3618 = vmul.f32 %v1697, %v2101
        %v3619 = vmul.f32 %v1698, %v2102
        %v3620 = vmul.f32 %v1699, %v2103
        %v3621 = vmul.f32 %v1700, %v2104
        %v3622 = vmul.f32 %v1701, %v2105
        %v3623 = vmul.f32 %v1702, %v2106
        %v3624 = vmul.f32 %v1703, %v2107
        %v3625 = vmul.f32 %v1704, %v2108
        %v3626 = vmul.f32 %v1705, %v2109
        %v3627 = vmul.f32 %v1706, %v2110
        %v3628 = vmul.f32 %v1707, %v2111
        %v3629 = vmul.f32 %v1708, %v2112
        %v3630 = vmul.f32 %v1709, %v2113
        %v3631 = vmul.f32 %v1710, %v2114
        %v3632 = vmul.f32 %v1711, %v2115
        %v3633 = vmul.f32 %v1712, %v2116
        %v3634 = vmul.f32 %v1713, %v2117
        %v3635 = vmul.f32 %v1714, %v2118
        %v3636 = vmul.f32 %v1715, %v2119
        %v3637 = vmul.f32 %v1716, %v2120
        %v3638 = vmul.f32 %v1717, %v2121
        %v3639 = vmul.f32 %v1718, %v2122
        %v3640 = vmul.f32 %v1719, %v2123
        %v3641 = vadd.f32 %v3585, %v3586
        %v3642 = vadd.f32 %v3593, %v3594
        %v3643 = vadd.f32 %v3601, %v3602
        %v3644 = vadd.f32 %v3609, %v3610
        %v3645 = vadd.f32 %v3617, %v3618
        %v3646 = vadd.f32 %v3625, %v3626
        %v3647 = vadd.f32 %v3633, %v3634
        %v3648 = vadd.f32 %v3587, %v3588
        %v3649 = vadd.f32 %v3595, %v3596
        %v3650 = vadd.f32 %v3603, %v3604
        %v3651 = vadd.f32 %v3611, %v3612
        %v3652 = vadd.f32 %v3619, %v3620
        %v3653 = vadd.f32 %v3627, %v3628
        %v3654 = vadd.f32 %v3635, %v3636
        %v3655 = vadd.f32 %v3589, %v3590
        %v3656 = vadd.f32 %v3597, %v3598
        %v3657 = vadd.f32 %v3605, %v3606
        %v3658 = vadd.f32 %v3613, %v3614
        %v3659 = vadd.f32 %v3621, %v3622
        %v3660 = vadd.f32 %v3629, %v3630
        %v3661 = vadd.f32 %v3637, %v3638
        %v3662 = vadd.f32 %v3591, %v3592
        %v3663 = vadd.f32 %v3599, %v3600
        %v3664 = vadd.f32 %v3607, %v3608
        %v3665 = vadd.f32 %v3615, %v3616
        %v3666 = vadd.f32 %v3623, %v3624
        %v3667 = vadd.f32 %v3631, %v3632
        %v3668 = vadd.f32 %v3639, %v3640
        %v3669 = vadd.f32 %v3641, %v3648
        %v3670 = vadd.f32 %v3642, %v3649
        %v3671 = vadd.f32 %v3643, %v3650
        %v3672 = vadd.f32 %v3644, %v3651
        %v3673 = vadd.f32 %v3645, %v3652
        %v3674 = vadd.f32 %v3646, %v3653
        %v3675 = vadd.f32 %v3647, %v3654
        %v3676 = vadd.f32 %v3655, %v3662
        %v3677 = vadd.f32 %v3656, %v3663
        %v3678 = vadd.f32 %v3657, %v3664
        %v3679 = vadd.f32 %v3658, %v3665
        %v3680 = vadd.f32 %v3659, %v3666
        %v3681 = vadd.f32 %v3660, %v3667
        %v3682 = vadd.f32 %v3661, %v3668
        %v3683 = vadd.f32 %v3669, %v3676
        %v3684 = vadd.f32 %v3670, %v3677
        %v3685 = vadd.f32 %v3671, %v3678
        %v3686 = vadd.f32 %v3672, %v3679
        %v3687 = vadd.f32 %v3673, %v3680
        %v3688 = vadd.f32 %v3674, %v3681
        %v3689 = vadd.f32 %v3675, %v3682
        %v3690 = vadd.f32 %v3683, %v3684
        %v3691 = vadd.f32 %v3690, %v3685
        %v3692 = vadd.f32 %v3691, %v3686
        %v3693 = vadd.f32 %v3692, %v3687
        %v3694 = vadd.f32 %v3693, %v3688
        %v3695 = vadd.f32 %v3694, %v3689
        %v3696 = vrot.slane %v3695, 4
        %v3697 = vadd.f32 %v3695, %v3696
        %v3698 = vrot.slane %v3697, 2
        %v3699 = vadd.f32 %v3697, %v3698
        %v3700 = vrot.slane %v3699, 1
        %v3701 = vadd.f32 %v3699, %v3700
        %v3702 = vmul.f32 %v1664, %v2242
        %v3703 = vmul.f32 %v1665, %v2243
        %v3704 = vmul.f32 %v1666, %v2244
        %v3705 = vmul.f32 %v1667, %v2245
        %v3706 = vmul.f32 %v1668, %v2246
        %v3707 = vmul.f32 %v1669, %v2247
        %v3708 = vmul.f32 %v1670, %v2248
        %v3709 = vmul.f32 %v1671, %v2249
        %v3710 = vmul.f32 %v1672, %v2250
        %v3711 = vmul.f32 %v1673, %v2251
        %v3712 = vmul.f32 %v1674, %v2252
        %v3713 = vmul.f32 %v1675, %v2253
        %v3714 = vmul.f32 %v1676, %v2254
        %v3715 = vmul.f32 %v1677, %v2255
        %v3716 = vmul.f32 %v1678, %v2256
        %v3717 = vmul.f32 %v1679, %v2257
        %v3718 = vmul.f32 %v1680, %v2258
        %v3719 = vmul.f32 %v1681, %v2259
        %v3720 = vmul.f32 %v1682, %v2260
        %v3721 = vmul.f32 %v1683, %v2261
        %v3722 = vmul.f32 %v1684, %v2262
        %v3723 = vmul.f32 %v1685, %v2263
        %v3724 = vmul.f32 %v1686, %v2264
        %v3725 = vmul.f32 %v1687, %v2265
        %v3726 = vmul.f32 %v1688, %v2266
        %v3727 = vmul.f32 %v1689, %v2267
        %v3728 = vmul.f32 %v1690, %v2268
        %v3729 = vmul.f32 %v1691, %v2269
        %v3730 = vmul.f32 %v1692, %v2270
        %v3731 = vmul.f32 %v1693, %v2271
        %v3732 = vmul.f32 %v1694, %v2272
        %v3733 = vmul.f32 %v1695, %v2273
        %v3734 = vmul.f32 %v1696, %v2274
        %v3735 = vmul.f32 %v1697, %v2275
        %v3736 = vmul.f32 %v1698, %v2276
        %v3737 = vmul.f32 %v1699, %v2277
        %v3738 = vmul.f32 %v1700, %v2278
        %v3739 = vmul.f32 %v1701, %v2279
        %v3740 = vmul.f32 %v1702, %v2280
        %v3741 = vmul.f32 %v1703, %v2281
        %v3742 = vmul.f32 %v1704, %v2282
        %v3743 = vmul.f32 %v1705, %v2283
        %v3744 = vmul.f32 %v1706, %v2284
        %v3745 = vmul.f32 %v1707, %v2285
        %v3746 = vmul.f32 %v1708, %v2286
        %v3747 = vmul.f32 %v1709, %v2287
        %v3748 = vmul.f32 %v1710, %v2288
        %v3749 = vmul.f32 %v1711, %v2289
        %v3750 = vmul.f32 %v1712, %v2290
        %v3751 = vmul.f32 %v1713, %v2291
        %v3752 = vmul.f32 %v1714, %v2292
        %v3753 = vmul.f32 %v1715, %v2293
        %v3754 = vmul.f32 %v1716, %v2294
        %v3755 = vmul.f32 %v1717, %v2295
        %v3756 = vmul.f32 %v1718, %v2296
        %v3757 = vmul.f32 %v1719, %v2297
        %v3758 = vadd.f32 %v3702, %v3703
        %v3759 = vadd.f32 %v3710, %v3711
        %v3760 = vadd.f32 %v3718, %v3719
        %v3761 = vadd.f32 %v3726, %v3727
        %v3762 = vadd.f32 %v3734, %v3735
        %v3763 = vadd.f32 %v3742, %v3743
        %v3764 = vadd.f32 %v3750, %v3751
        %v3765 = vadd.f32 %v3704, %v3705
        %v3766 = vadd.f32 %v3712, %v3713
        %v3767 = vadd.f32 %v3720, %v3721
        %v3768 = vadd.f32 %v3728, %v3729
        %v3769 = vadd.f32 %v3736, %v3737
        %v3770 = vadd.f32 %v3744, %v3745
        %v3771 = vadd.f32 %v3752, %v3753
        %v3772 = vadd.f32 %v3706, %v3707
        %v3773 = vadd.f32 %v3714, %v3715
        %v3774 = vadd.f32 %v3722, %v3723
        %v3775 = vadd.f32 %v3730, %v3731
        %v3776 = vadd.f32 %v3738, %v3739
        %v3777 = vadd.f32 %v3746, %v3747
        %v3778 = vadd.f32 %v3754, %v3755
        %v3779 = vadd.f32 %v3708, %v3709
        %v3780 = vadd.f32 %v3716, %v3717
        %v3781 = vadd.f32 %v3724, %v3725
        %v3782 = vadd.f32 %v3732, %v3733
        %v3783 = vadd.f32 %v3740, %v3741
        %v3784 = vadd.f32 %v3748, %v3749
        %v3785 = vadd.f32 %v3756, %v3757
        %v3786 = vadd.f32 %v3758, %v3765
        %v3787 = vadd.f32 %v3759, %v3766
        %v3788 = vadd.f32 %v3760, %v3767
        %v3789 = vadd.f32 %v3761, %v3768
        %v3790 = vadd.f32 %v3762, %v3769
        %v3791 = vadd.f32 %v3763, %v3770
        %v3792 = vadd.f32 %v3764, %v3771
        %v3793 = vadd.f32 %v3772, %v3779
        %v3794 = vadd.f32 %v3773, %v3780
        %v3795 = vadd.f32 %v3774, %v3781
        %v3796 = vadd.f32 %v3775, %v3782
        %v3797 = vadd.f32 %v3776, %v3783
        %v3798 = vadd.f32 %v3777, %v3784
        %v3799 = vadd.f32 %v3778, %v3785
        %v3800 = vadd.f32 %v3786, %v3793
        %v3801 = vadd.f32 %v3787, %v3794
        %v3802 = vadd.f32 %v3788, %v3795
        %v3803 = vadd.f32 %v3789, %v3796
        %v3804 = vadd.f32 %v3790, %v3797
        %v3805 = vadd.f32 %v3791, %v3798
        %v3806 = vadd.f32 %v3792, %v3799
        %v3807 = vadd.f32 %v3800, %v3801
        %v3808 = vadd.f32 %v3807, %v3802
        %v3809 = vadd.f32 %v3808, %v3803
        %v3810 = vadd.f32 %v3809, %v3804
        %v3811 = vadd.f32 %v3810, %v3805
        %v3812 = vadd.f32 %v3811, %v3806
        %v3813 = vrot.slane %v3812, 4
        %v3814 = vadd.f32 %v3812, %v3813
        %v3815 = vrot.slane %v3814, 2
        %v3816 = vadd.f32 %v3814, %v3815
        %v3817 = vrot.slane %v3816, 1
        %v3818 = vadd.f32 %v3816, %v3817
        %v3823 = vrot.slane %v2531, 7
        %v3824 = vrot.slane %v2648, 7
        %v3825 = vrot.slane %v2765, 7
        %v3826 = vrot.slane %v2882, 7
        %v3835 = vrot.slane %v2999, 6
        %v3836 = vrot.slane %v3116, 6
        %v3837 = vrot.slane %v3233, 6
        %v3838 = vrot.slane %v3350, 6
        %v3847 = vrot.slane %v3467, 5
        %v3848 = vrot.slane %v3584, 5
        %v3849 = vrot.slane %v3701, 5
        %v3850 = vrot.slane %v3818, 5
        %vm3855 = vcmask 1040384
        %v3856 = vsel %vm3855, %v1892, %v3823
        %v3857 = vsel %vm3855, %v2066, %v3824
        %v3858 = vsel %vm3855, %v2240, %v3825
        %v3859 = vsel %vm3855, %v2414, %v3826
        %vm3860 = vcmask 1041408
        %v3861 = vsel %vm3860, %v3856, %v3835
        %v3862 = vsel %vm3860, %v3857, %v3836
        %v3863 = vsel %vm3860, %v3858, %v3837
        %v3864 = vsel %vm3860, %v3859, %v3838
        %vm3865 = vcmask 1042432
        %v3866 = vsel %vm3865, %v3861, %v3847
        %v3867 = vsel %vm3865, %v3862, %v3848
        %v3868 = vsel %vm3865, %v3863, %v3849
        %v3869 = vsel %vm3865, %v3864, %v3850
        %v3870 = vld [vmem:[#allocation4] sm:$0xff]
        %v3871 = vld [vmem:[#allocation4 + $0x8] sm:$0xff]
        %v3872 = vld [vmem:[#allocation4 + $0x10] sm:$0xff]
        %v3873 = vld [vmem:[#allocation4 + $0x18] sm:$0xff]
        %v3874 = vld [vmem:[#allocation4 + $0x20] sm:$0xff]
        %v3875 = vld [vmem:[#allocation4 + $0x28] sm:$0xff]
        %v3876 = vld [vmem:[#allocation4 + $0x30] sm:$0xff]
        %v3877 = vld [vmem:[#allocation4 + $0x38] sm:$0xff]
        %v3878 = vld [vmem:[#allocation4 + $0x40] sm:$0xff]
        %v3879 = vld [vmem:[#allocation4 + $0x48] sm:$0xff]
        %v3880 = vld [vmem:[#allocation4 + $0x50] sm:$0xff]
        %v3881 = vld [vmem:[#allocation4 + $0x58] sm:$0xff]
        %v3882 = vld [vmem:[#allocation4 + $0x60] sm:$0xff]
        %v3883 = vld [vmem:[#allocation4 + $0x68] sm:$0xff]
        %v3884 = vld [vmem:[#allocation4 + $0x70] sm:$0xff]
        %v3885 = vld [vmem:[#allocation4 + $0x78] sm:$0xff]
        %v3886 = vld [vmem:[#allocation4 + $0x80] sm:$0xff]
        %v3887 = vld [vmem:[#allocation4 + $0x88] sm:$0xff]
        %v3888 = vld [vmem:[#allocation4 + $0x90] sm:$0xff]
        %v3889 = vld [vmem:[#allocation4 + $0x98] sm:$0xff]
        %v3890 = vld [vmem:[#allocation4 + $0xa0] sm:$0xff]
        %v3891 = vld [vmem:[#allocation4 + $0xa8] sm:$0xff]
        %v3892 = vld [vmem:[#allocation4 + $0xb0] sm:$0xff]
        %v3893 = vld [vmem:[#allocation4 + $0xb8] sm:$0xff]
        %v3894 = vld [vmem:[#allocation4 + $0xc0] sm:$0xff]
        %v3895 = vld [vmem:[#allocation4 + $0xc8] sm:$0xff]
        %v3896 = vld [vmem:[#allocation4 + $0xd0] sm:$0xff]
        %v3897 = vld [vmem:[#allocation4 + $0xd8] sm:$0xff]
        %v3898 = vld [vmem:[#allocation4 + $0xe0] sm:$0xff]
        %v3899 = vld [vmem:[#allocation4 + $0xe8] sm:$0xff]
        %v3900 = vld [vmem:[#allocation4 + $0xf0] sm:$0xff]
        %v3901 = vld [vmem:[#allocation4 + $0xf8] sm:$0xff]
        %v3902 = vld [vmem:[#allocation4 + $0x100] sm:$0xff]
        %v3903 = vld [vmem:[#allocation4 + $0x108] sm:$0xff]
        %v3904 = vld [vmem:[#allocation4 + $0x110] sm:$0xff]
        %v3905 = vld [vmem:[#allocation4 + $0x118] sm:$0xff]
        %v3906 = vld [vmem:[#allocation4 + $0x120] sm:$0xff]
        %v3907 = vld [vmem:[#allocation4 + $0x128] sm:$0xff]
        %v3908 = vld [vmem:[#allocation4 + $0x130] sm:$0xff]
        %v3909 = vld [vmem:[#allocation4 + $0x138] sm:$0xff]
        %v3910 = vld [vmem:[#allocation4 + $0x140] sm:$0xff]
        %v3911 = vld [vmem:[#allocation4 + $0x148] sm:$0xff]
        %v3912 = vld [vmem:[#allocation4 + $0x150] sm:$0xff]
        %v3913 = vld [vmem:[#allocation4 + $0x158] sm:$0xff]
        %v3914 = vld [vmem:[#allocation4 + $0x160] sm:$0xff]
        %v3915 = vld [vmem:[#allocation4 + $0x168] sm:$0xff]
        %v3916 = vld [vmem:[#allocation4 + $0x170] sm:$0xff]
        %v3917 = vld [vmem:[#allocation4 + $0x178] sm:$0xff]
        %v3918 = vld [vmem:[#allocation4 + $0x180] sm:$0xff]
        %v3919 = vld [vmem:[#allocation4 + $0x188] sm:$0xff]
        %v3920 = vld [vmem:[#allocation4 + $0x190] sm:$0xff]
        %v3921 = vld [vmem:[#allocation4 + $0x198] sm:$0xff]
        %v3922 = vld [vmem:[#allocation4 + $0x1a0] sm:$0xff]
        %v3923 = vld [vmem:[#allocation4 + $0x1a8] sm:$0xff]
        %v3924 = vld [vmem:[#allocation4 + $0x1b0] sm:$0xff]
        %v3925 = vld [vmem:[#allocation4 + $0x1b8] sm:$0xff]
        %v3926 = vld [vmem:[#allocation4 + $0x1c0] sm:$0xff]
        %v3927 = vld [vmem:[#allocation4 + $0x1c8] sm:$0xff]
        %v3928 = vld [vmem:[#allocation4 + $0x1d0] sm:$0xff]
        %v3929 = vld [vmem:[#allocation4 + $0x1d8] sm:$0xff]
        %v3930 = vld [vmem:[#allocation4 + $0x1e0] sm:$0xff]
        %v3931 = vld [vmem:[#allocation4 + $0x1e8] sm:$0xff]
        %v3932 = vld [vmem:[#allocation4 + $0x1f0] sm:$0xff]
        %v3933 = vld [vmem:[#allocation4 + $0x1f8] sm:$0xff]
        %v3934 = vld [vmem:[#allocation4 + $0x200] sm:$0xff]
        %v3935 = vld [vmem:[#allocation4 + $0x208] sm:$0xff]
        %v3936 = vld [vmem:[#allocation4 + $0x210] sm:$0xff]
        %v3937 = vld [vmem:[#allocation4 + $0x218] sm:$0xff]
        %v3938 = vld [vmem:[#allocation4 + $0x220] sm:$0xff]
        %v3939 = vld [vmem:[#allocation4 + $0x228] sm:$0xff]
        %v3940 = vld [vmem:[#allocation4 + $0x230] sm:$0xff]
        %v3941 = vld [vmem:[#allocation4 + $0x238] sm:$0xff]
        %v3942 = vld [vmem:[#allocation4 + $0x240] sm:$0xff]
        %v3943 = vld [vmem:[#allocation4 + $0x248] sm:$0xff]
        %v3944 = vld [vmem:[#allocation4 + $0x250] sm:$0xff]
        %v3945 = vld [vmem:[#allocation4 + $0x258] sm:$0xff]
        %v3946 = vld [vmem:[#allocation4 + $0x260] sm:$0xff]
        %v3947 = vld [vmem:[#allocation4 + $0x268] sm:$0xff]
        %v3948 = vld [vmem:[#allocation4 + $0x270] sm:$0xff]
        %v3949 = vld [vmem:[#allocation4 + $0x278] sm:$0xff]
        %v3950 = vld [vmem:[#allocation4 + $0x280] sm:$0xff]
        %v3951 = vld [vmem:[#allocation4 + $0x288] sm:$0xff]
        %v3952 = vld [vmem:[#allocation4 + $0x290] sm:$0xff]
        %v3953 = vld [vmem:[#allocation4 + $0x298] sm:$0xff]
        %v3954 = vld [vmem:[#allocation4 + $0x2a0] sm:$0xff]
        %v3955 = vld [vmem:[#allocation4 + $0x2a8] sm:$0xff]
        %v3956 = vld [vmem:[#allocation4 + $0x2b0] sm:$0xff]
        %v3957 = vld [vmem:[#allocation4 + $0x2b8] sm:$0xff]
        %v3958 = vld [vmem:[#allocation4 + $0x2c0] sm:$0xff]
        %v3959 = vld [vmem:[#allocation4 + $0x2c8] sm:$0xff]
        %v3960 = vld [vmem:[#allocation4 + $0x2d0] sm:$0xff]
        %v3961 = vld [vmem:[#allocation4 + $0x2d8] sm:$0xff]
        %v3962 = vld [vmem:[#allocation4 + $0x2e0] sm:$0xff]
        %v3963 = vld [vmem:[#allocation4 + $0x2e8] sm:$0xff]
        %v3964 = vld [vmem:[#allocation4 + $0x2f0] sm:$0xff]
        %v3965 = vld [vmem:[#allocation4 + $0x2f8] sm:$0xff]
        %v3966 = vld [vmem:[#allocation4 + $0x300] sm:$0xff]
        %v3967 = vld [vmem:[#allocation4 + $0x308] sm:$0xff]
        %v3968 = vld [vmem:[#allocation4 + $0x310] sm:$0xff]
        %v3969 = vld [vmem:[#allocation4 + $0x318] sm:$0xff]
        %v3970 = vld [vmem:[#allocation4 + $0x320] sm:$0xff]
        %v3971 = vld [vmem:[#allocation4 + $0x328] sm:$0xff]
        %v3972 = vld [vmem:[#allocation4 + $0x330] sm:$0xff]
        %v3973 = vld [vmem:[#allocation4 + $0x338] sm:$0xff]
        %v3974 = vld [vmem:[#allocation4 + $0x340] sm:$0xff]
        %v3975 = vld [vmem:[#allocation4 + $0x348] sm:$0xff]
        %v3976 = vld [vmem:[#allocation4 + $0x350] sm:$0xff]
        %v3977 = vld [vmem:[#allocation4 + $0x358] sm:$0xff]
        %v3978 = vld [vmem:[#allocation4 + $0x360] sm:$0xff]
        %v3979 = vld [vmem:[#allocation4 + $0x368] sm:$0xff]
        %v3980 = vld [vmem:[#allocation4 + $0x370] sm:$0xff]
        %v3981 = vld [vmem:[#allocation4 + $0x378] sm:$0xff]
        %v3982 = vld [vmem:[#allocation4 + $0x380] sm:$0xff]
        %v3983 = vld [vmem:[#allocation4 + $0x388] sm:$0xff]
        %v3984 = vld [vmem:[#allocation4 + $0x390] sm:$0xff]
        %v3985 = vld [vmem:[#allocation4 + $0x398] sm:$0xff]
        %v3986 = vld [vmem:[#allocation4 + $0x3a0] sm:$0xff]
        %v3987 = vld [vmem:[#allocation4 + $0x3a8] sm:$0xff]
        %v3988 = vld [vmem:[#allocation4 + $0x3b0] sm:$0xff]
        %v3989 = vld [vmem:[#allocation4 + $0x3b8] sm:$0xff]
        %v3990 = vld [vmem:[#allocation4 + $0x3c0] sm:$0xff]
        %v3991 = vld [vmem:[#allocation4 + $0x3c8] sm:$0xff]
        %v3992 = vld [vmem:[#allocation4 + $0x3d0] sm:$0xff]
        %v3993 = vld [vmem:[#allocation4 + $0x3d8] sm:$0xff]
        %v3994 = vld [vmem:[#allocation4 + $0x3e0] sm:$0xff]
        %v3995 = vld [vmem:[#allocation4 + $0x3e8] sm:$0xff]
        %v3996 = vld [vmem:[#allocation4 + $0x3f0] sm:$0xff]
        %v3997 = vld [vmem:[#allocation4 + $0x3f8] sm:$0xff]
        %v3998 = vld [vmem:[#allocation4 + $0x400] sm:$0xff]
        %v3999 = vld [vmem:[#allocation4 + $0x408] sm:$0xff]
        %v4000 = vld [vmem:[#allocation4 + $0x410] sm:$0xff]
        %v4001 = vld [vmem:[#allocation4 + $0x418] sm:$0xff]
        %v4002 = vld [vmem:[#allocation4 + $0x420] sm:$0xff]
        %v4003 = vld [vmem:[#allocation4 + $0x428] sm:$0xff]
        %v4004 = vld [vmem:[#allocation4 + $0x430] sm:$0xff]
        %v4005 = vld [vmem:[#allocation4 + $0x438] sm:$0xff]
        %v4006 = vld [vmem:[#allocation4 + $0x440] sm:$0xff]
        %v4007 = vld [vmem:[#allocation4 + $0x448] sm:$0xff]
        %v4008 = vld [vmem:[#allocation4 + $0x450] sm:$0xff]
        %v4009 = vld [vmem:[#allocation4 + $0x458] sm:$0xff]
        %v4010 = vld [vmem:[#allocation4 + $0x460] sm:$0xff]
        %v4011 = vld [vmem:[#allocation4 + $0x468] sm:$0xff]
        %v4012 = vld [vmem:[#allocation4 + $0x470] sm:$0xff]
        %v4013 = vld [vmem:[#allocation4 + $0x478] sm:$0xff]
        %v4014 = vld [vmem:[#allocation4 + $0x480] sm:$0xff]
        %v4015 = vld [vmem:[#allocation4 + $0x488] sm:$0xff]
        %v4016 = vld [vmem:[#allocation4 + $0x490] sm:$0xff]
        %v4017 = vld [vmem:[#allocation4 + $0x498] sm:$0xff]
        %v4018 = vld [vmem:[#allocation4 + $0x4a0] sm:$0xff]
        %v4019 = vld [vmem:[#allocation4 + $0x4a8] sm:$0xff]
        %v4020 = vld [vmem:[#allocation4 + $0x4b0] sm:$0xff]
        %v4021 = vld [vmem:[#allocation4 + $0x4b8] sm:$0xff]
        %v4022 = vld [vmem:[#allocation4 + $0x4c0] sm:$0xff]
        %v4023 = vld [vmem:[#allocation4 + $0x4c8] sm:$0xff]
        %v4024 = vld [vmem:[#allocation4 + $0x4d0] sm:$0xff]
        %v4025 = vld [vmem:[#allocation4 + $0x4d8] sm:$0xff]
        %v4026 = vld [vmem:[#allocation4 + $0x4e0] sm:$0xff]
        %v4027 = vld [vmem:[#allocation4 + $0x4e8] sm:$0xff]
        %v4028 = vld [vmem:[#allocation4 + $0x4f0] sm:$0xff]
        %v4029 = vld [vmem:[#allocation4 + $0x4f8] sm:$0xff]
        %v4030 = vld [vmem:[#allocation4 + $0x500] sm:$0xff]
        %v4031 = vld [vmem:[#allocation4 + $0x508] sm:$0xff]
        %v4032 = vld [vmem:[#allocation4 + $0x510] sm:$0xff]
        %v4033 = vld [vmem:[#allocation4 + $0x518] sm:$0xff]
        %v4034 = vld [vmem:[#allocation4 + $0x520] sm:$0xff]
        %v4035 = vld [vmem:[#allocation4 + $0x528] sm:$0xff]
        %v4036 = vld [vmem:[#allocation4 + $0x530] sm:$0xff]
        %v4037 = vld [vmem:[#allocation4 + $0x538] sm:$0xff]
        %v4038 = vld [vmem:[#allocation4 + $0x540] sm:$0xff]
        %v4039 = vld [vmem:[#allocation4 + $0x548] sm:$0xff]
        %v4040 = vld [vmem:[#allocation4 + $0x550] sm:$0xff]
        %v4041 = vld [vmem:[#allocation4 + $0x558] sm:$0xff]
        %v4042 = vld [vmem:[#allocation4 + $0x560] sm:$0xff]
        %v4043 = vld [vmem:[#allocation4 + $0x568] sm:$0xff]
        %v4044 = vld [vmem:[#allocation4 + $0x570] sm:$0xff]
        %v4045 = vld [vmem:[#allocation4 + $0x578] sm:$0xff]
        %v4046 = vld [vmem:[#allocation4 + $0x580] sm:$0xff]
        %v4047 = vld [vmem:[#allocation4 + $0x588] sm:$0xff]
        %v4048 = vld [vmem:[#allocation4 + $0x590] sm:$0xff]
        %v4049 = vld [vmem:[#allocation4 + $0x598] sm:$0xff]
        %v4050 = vld [vmem:[#allocation4 + $0x5a0] sm:$0xff]
        %v4051 = vld [vmem:[#allocation4 + $0x5a8] sm:$0xff]
        %v4052 = vld [vmem:[#allocation4 + $0x5b0] sm:$0xff]
        %v4053 = vld [vmem:[#allocation4 + $0x5b8] sm:$0xff]
        %v4054 = vld [vmem:[#allocation4 + $0x5c0] sm:$0xff]
        %v4055 = vld [vmem:[#allocation4 + $0x5c8] sm:$0xff]
        %v4056 = vld [vmem:[#allocation4 + $0x5d0] sm:$0xff]
        %v4057 = vld [vmem:[#allocation4 + $0x5d8] sm:$0xff]
        %v4058 = vld [vmem:[#allocation4 + $0x5e0] sm:$0xff]
        %v4059 = vld [vmem:[#allocation4 + $0x5e8] sm:$0xff]
        %v4060 = vld [vmem:[#allocation4 + $0x5f0] sm:$0xff]
        %v4061 = vld [vmem:[#allocation4 + $0x5f8] sm:$0xff]
        %v4062 = vld [vmem:[#allocation4 + $0x600] sm:$0xff]
        %v4063 = vld [vmem:[#allocation4 + $0x608] sm:$0xff]
        %v4064 = vld [vmem:[#allocation4 + $0x610] sm:$0xff]
        %v4065 = vld [vmem:[#allocation4 + $0x618] sm:$0xff]
        %v4066 = vld [vmem:[#allocation4 + $0x620] sm:$0xff]
        %v4067 = vld [vmem:[#allocation4 + $0x628] sm:$0xff]
        %v4068 = vld [vmem:[#allocation4 + $0x630] sm:$0xff]
        %v4069 = vld [vmem:[#allocation4 + $0x638] sm:$0xff]
        %v4070 = vld [vmem:[#allocation4 + $0x640] sm:$0xff]
        %v4071 = vld [vmem:[#allocation4 + $0x648] sm:$0xff]
        %v4072 = vld [vmem:[#allocation4 + $0x650] sm:$0xff]
        %v4073 = vld [vmem:[#allocation4 + $0x658] sm:$0xff]
        %v4074 = vld [vmem:[#allocation4 + $0x660] sm:$0xff]
        %v4075 = vld [vmem:[#allocation4 + $0x668] sm:$0xff]
        %v4076 = vld [vmem:[#allocation4 + $0x670] sm:$0xff]
        %v4077 = vld [vmem:[#allocation4 + $0x678] sm:$0xff]
        %v4078 = vld [vmem:[#allocation4 + $0x680] sm:$0xff]
        %v4079 = vld [vmem:[#allocation4 + $0x688] sm:$0xff]
        %v4080 = vld [vmem:[#allocation4 + $0x690] sm:$0xff]
        %v4081 = vld [vmem:[#allocation4 + $0x698] sm:$0xff]
        %v4082 = vld [vmem:[#allocation4 + $0x6a0] sm:$0xff]
        %v4083 = vld [vmem:[#allocation4 + $0x6a8] sm:$0xff]
        %v4084 = vld [vmem:[#allocation4 + $0x6b0] sm:$0xff]
        %v4085 = vld [vmem:[#allocation4 + $0x6b8] sm:$0xff]
        %v4086 = vld [vmem:[#allocation4 + $0x6c0] sm:$0xff]
        %v4087 = vld [vmem:[#allocation4 + $0x6c8] sm:$0xff]
        %v4088 = vld [vmem:[#allocation4 + $0x6d0] sm:$0xff]
        %v4089 = vld [vmem:[#allocation4 + $0x6d8] sm:$0xff]
        %v4090 = vld [vmem:[#allocation4 + $0x6e0] sm:$0xff]
        %v4091 = vld [vmem:[#allocation4 + $0x6e8] sm:$0xff]
        %v4092 = vld [vmem:[#allocation4 + $0x6f0] sm:$0xff]
        %v4093 = vld [vmem:[#allocation4 + $0x6f8] sm:$0xff]
        %v4094 = vld [vmem:[#allocation4 + $0x700] sm:$0xff]
        %v4095 = vld [vmem:[#allocation4 + $0x708] sm:$0xff]
        %v4096 = vld [vmem:[#allocation4 + $0x710] sm:$0xff]
        %v4097 = vld [vmem:[#allocation4 + $0x718] sm:$0xff]
        %v4098 = vld [vmem:[#allocation4 + $0x720] sm:$0xff]
        %v4099 = vld [vmem:[#allocation4 + $0x728] sm:$0xff]
        %v4100 = vld [vmem:[#allocation4 + $0x730] sm:$0xff]
        %v4101 = vld [vmem:[#allocation4 + $0x738] sm:$0xff]
        %v4102 = vld [vmem:[#allocation4 + $0x740] sm:$0xff]
        %v4103 = vld [vmem:[#allocation4 + $0x748] sm:$0xff]
        %v4104 = vld [vmem:[#allocation4 + $0x750] sm:$0xff]
        %v4105 = vld [vmem:[#allocation4 + $0x758] sm:$0xff]
        %v4106 = vld [vmem:[#allocation4 + $0x760] sm:$0xff]
        %v4107 = vld [vmem:[#allocation4 + $0x768] sm:$0xff]
        %v4108 = vld [vmem:[#allocation4 + $0x770] sm:$0xff]
        %v4109 = vld [vmem:[#allocation4 + $0x778] sm:$0xff]
        %v4110 = vld [vmem:[#allocation4 + $0x780] sm:$0xff]
        %v4111 = vld [vmem:[#allocation4 + $0x788] sm:$0xff]
        %v4112 = vld [vmem:[#allocation4 + $0x790] sm:$0xff]
        %v4113 = vld [vmem:[#allocation4 + $0x798] sm:$0xff]
        %v4114 = vld [vmem:[#allocation4 + $0x7a0] sm:$0xff]
        %v4115 = vld [vmem:[#allocation4 + $0x7a8] sm:$0xff]
        %v4116 = vld [vmem:[#allocation4 + $0x7b0] sm:$0xff]
        %v4117 = vld [vmem:[#allocation4 + $0x7b8] sm:$0xff]
        %v4118 = vld [vmem:[#allocation4 + $0x7c0] sm:$0xff]
        %v4119 = vld [vmem:[#allocation4 + $0x7c8] sm:$0xff]
        %v4120 = vld [vmem:[#allocation4 + $0x7d0] sm:$0xff]
        %v4121 = vld [vmem:[#allocation4 + $0x7d8] sm:$0xff]
        %v4122 = vld [vmem:[#allocation4 + $0x7e0] sm:$0xff]
        %v4123 = vld [vmem:[#allocation4 + $0x7e8] sm:$0xff]
        %v4124 = vld [vmem:[#allocation4 + $0x7f0] sm:$0xff]
        %v4125 = vld [vmem:[#allocation4 + $0x7f8] sm:$0xff]
        %v4126 = vld [vmem:[%s5] sm:$0xf]
        %v4128 = vperm.slane %v4126, 0
        %v4129 = vperm.slane %v4126, 1
        %v4130 = vperm.slane %v4126, 2
        %v4131 = vperm.slane %v4126, 3
        %4136 = vmatpush.msra.mxu0 %v3930
        %4137 = vmatpush.msra.mxu0 %v3926
        %4138 = vmatpush.msra.mxu0 %v3922
        %4139 = vmatpush.msra.mxu0 %v3918
        %4140 = vmatpush.msra.mxu0 %v3914
        %4141 = vmatpush.msra.mxu0 %v3910
        %4142 = vmatpush.msra.mxu0 %v3906
        %4143 = vmatpush.msra.mxu0 %v3902
        %4144 = vmatpush.msra.mxu0 %v3898
        %4145 = vmatpush.msra.mxu0 %v3894
        %4146 = vmatpush.msra.mxu0 %v3890
        %4147 = vmatpush.msra.mxu0 %v3886
        %4148 = vmatpush.msra.mxu0 %v3882
        %4149 = vmatpush.msra.mxu0 %v3878
        %4150 = vmatpush.msra.mxu0 %v3874
        %4151 = vmatpush.msra.mxu0 %v3870
        %4152 = vmatmul.f32.gmra.mxu0 %v3866
        %v4153 = vpop.f32.mrf.mxu0
        %v4154 = vadd.f32 %v4128, %v4153
        %4155 = vdwg.mxu0
        %4156 = vmatpush.msra.mxu0 %v3994
        %4157 = vmatpush.msra.mxu0 %v3990
        %4158 = vmatpush.msra.mxu0 %v3986
        %4159 = vmatpush.msra.mxu0 %v3982
        %4160 = vmatpush.msra.mxu0 %v3978
        %4161 = vmatpush.msra.mxu0 %v3974
        %4162 = vmatpush.msra.mxu0 %v3970
        %4163 = vmatpush.msra.mxu0 %v3966
        %4164 = vmatpush.msra.mxu0 %v3962
        %4165 = vmatpush.msra.mxu0 %v3958
        %4166 = vmatpush.msra.mxu0 %v3954
        %4167 = vmatpush.msra.mxu0 %v3950
        %4168 = vmatpush.msra.mxu0 %v3946
        %4169 = vmatpush.msra.mxu0 %v3942
        %4170 = vmatpush.msra.mxu0 %v3938
        %4171 = vmatpush.msra.mxu0 %v3934
        %4172 = vmatmul.f32.gmra.mxu0 %v3867
        %v4173 = vpop.f32.mrf.mxu0
        %v4174 = vadd.f32 %v4154, %v4173
        %4175 = vdwg.mxu0
        %4176 = vmatpush.msra.mxu0 %v4058
        %4177 = vmatpush.msra.mxu0 %v4054
        %4178 = vmatpush.msra.mxu0 %v4050
        %4179 = vmatpush.msra.mxu0 %v4046
        %4180 = vmatpush.msra.mxu0 %v4042
        %4181 = vmatpush.msra.mxu0 %v4038
        %4182 = vmatpush.msra.mxu0 %v4034
        %4183 = vmatpush.msra.mxu0 %v4030
        %4184 = vmatpush.msra.mxu0 %v4026
        %4185 = vmatpush.msra.mxu0 %v4022
        %4186 = vmatpush.msra.mxu0 %v4018
        %4187 = vmatpush.msra.mxu0 %v4014
        %4188 = vmatpush.msra.mxu0 %v4010
        %4189 = vmatpush.msra.mxu0 %v4006
        %4190 = vmatpush.msra.mxu0 %v4002
        %4191 = vmatpush.msra.mxu0 %v3998
        %4192 = vmatmul.f32.gmra.mxu0 %v3868
        %v4193 = vpop.f32.mrf.mxu0
        %v4194 = vadd.f32 %v4174, %v4193
        %4195 = vdwg.mxu0
        %4196 = vmatpush.msra.mxu0 %v4122
        %4197 = vmatpush.msra.mxu0 %v4118
        %4198 = vmatpush.msra.mxu0 %v4114
        %4199 = vmatpush.msra.mxu0 %v4110
        %4200 = vmatpush.msra.mxu0 %v4106
        %4201 = vmatpush.msra.mxu0 %v4102
        %4202 = vmatpush.msra.mxu0 %v4098
        %4203 = vmatpush.msra.mxu0 %v4094
        %4204 = vmatpush.msra.mxu0 %v4090
        %4205 = vmatpush.msra.mxu0 %v4086
        %4206 = vmatpush.msra.mxu0 %v4082
        %4207 = vmatpush.msra.mxu0 %v4078
        %4208 = vmatpush.msra.mxu0 %v4074
        %4209 = vmatpush.msra.mxu0 %v4070
        %4210 = vmatpush.msra.mxu0 %v4066
        %4211 = vmatpush.msra.mxu0 %v4062
        %4212 = vmatmul.f32.gmra.mxu0 %v3869
        %v4213 = vpop.f32.mrf.mxu0
        %v4214 = vadd.f32 %v4194, %v4213
        %4215 = vdwg.mxu0
        %4216 = vmatpush.msra.mxu0 %v3931
        %4217 = vmatpush.msra.mxu0 %v3927
        %4218 = vmatpush.msra.mxu0 %v3923
        %4219 = vmatpush.msra.mxu0 %v3919
        %4220 = vmatpush.msra.mxu0 %v3915
        %4221 = vmatpush.msra.mxu0 %v3911
        %4222 = vmatpush.msra.mxu0 %v3907
        %4223 = vmatpush.msra.mxu0 %v3903
        %4224 = vmatpush.msra.mxu0 %v3899
        %4225 = vmatpush.msra.mxu0 %v3895
        %4226 = vmatpush.msra.mxu0 %v3891
        %4227 = vmatpush.msra.mxu0 %v3887
        %4228 = vmatpush.msra.mxu0 %v3883
        %4229 = vmatpush.msra.mxu0 %v3879
        %4230 = vmatpush.msra.mxu0 %v3875
        %4231 = vmatpush.msra.mxu0 %v3871
        %4232 = vmatmul.f32.gmra.mxu0 %v3866
        %v4233 = vpop.f32.mrf.mxu0
        %v4234 = vadd.f32 %v4129, %v4233
        %4235 = vdwg.mxu0
        %4236 = vmatpush.msra.mxu0 %v3995
        %4237 = vmatpush.msra.mxu0 %v3991
        %4238 = vmatpush.msra.mxu0 %v3987
        %4239 = vmatpush.msra.mxu0 %v3983
        %4240 = vmatpush.msra.mxu0 %v3979
        %4241 = vmatpush.msra.mxu0 %v3975
        %4242 = vmatpush.msra.mxu0 %v3971
        %4243 = vmatpush.msra.mxu0 %v3967
        %4244 = vmatpush.msra.mxu0 %v3963
        %4245 = vmatpush.msra.mxu0 %v3959
        %4246 = vmatpush.msra.mxu0 %v3955
        %4247 = vmatpush.msra.mxu0 %v3951
        %4248 = vmatpush.msra.mxu0 %v3947
        %4249 = vmatpush.msra.mxu0 %v3943
        %4250 = vmatpush.msra.mxu0 %v3939
        %4251 = vmatpush.msra.mxu0 %v3935
        %4252 = vmatmul.f32.gmra.mxu0 %v3867
        %v4253 = vpop.f32.mrf.mxu0
        %v4254 = vadd.f32 %v4234, %v4253
        %4255 = vdwg.mxu0
        %4256 = vmatpush.msra.mxu0 %v4059
        %4257 = vmatpush.msra.mxu0 %v4055
        %4258 = vmatpush.msra.mxu0 %v4051
        %4259 = vmatpush.msra.mxu0 %v4047
        %4260 = vmatpush.msra.mxu0 %v4043
        %4261 = vmatpush.msra.mxu0 %v4039
        %4262 = vmatpush.msra.mxu0 %v4035
        %4263 = vmatpush.msra.mxu0 %v4031
        %4264 = vmatpush.msra.mxu0 %v4027
        %4265 = vmatpush.msra.mxu0 %v4023
        %4266 = vmatpush.msra.mxu0 %v4019
        %4267 = vmatpush.msra.mxu0 %v4015
        %4268 = vmatpush.msra.mxu0 %v4011
        %4269 = vmatpush.msra.mxu0 %v4007
        %4270 = vmatpush.msra.mxu0 %v4003
        %4271 = vmatpush.msra.mxu0 %v3999
        %4272 = vmatmul.f32.gmra.mxu0 %v3868
        %v4273 = vpop.f32.mrf.mxu0
        %v4274 = vadd.f32 %v4254, %v4273
        %4275 = vdwg.mxu0
        %4276 = vmatpush.msra.mxu0 %v4123
        %4277 = vmatpush.msra.mxu0 %v4119
        %4278 = vmatpush.msra.mxu0 %v4115
        %4279 = vmatpush.msra.mxu0 %v4111
        %4280 = vmatpush.msra.mxu0 %v4107
        %4281 = vmatpush.msra.mxu0 %v4103
        %4282 = vmatpush.msra.mxu0 %v4099
        %4283 = vmatpush.msra.mxu0 %v4095
        %4284 = vmatpush.msra.mxu0 %v4091
        %4285 = vmatpush.msra.mxu0 %v4087
        %4286 = vmatpush.msra.mxu0 %v4083
        %4287 = vmatpush.msra.mxu0 %v4079
        %4288 = vmatpush.msra.mxu0 %v4075
        %4289 = vmatpush.msra.mxu0 %v4071
        %4290 = vmatpush.msra.mxu0 %v4067
        %4291 = vmatpush.msra.mxu0 %v4063
        %4292 = vmatmul.f32.gmra.mxu0 %v3869
        %v4293 = vpop.f32.mrf.mxu0
        %v4294 = vadd.f32 %v4274, %v4293
        %4295 = vdwg.mxu0
        %4296 = vmatpush.msra.mxu0 %v3932
        %4297 = vmatpush.msra.mxu0 %v3928
        %4298 = vmatpush.msra.mxu0 %v3924
        %4299 = vmatpush.msra.mxu0 %v3920
        %4300 = vmatpush.msra.mxu0 %v3916
        %4301 = vmatpush.msra.mxu0 %v3912
        %4302 = vmatpush.msra.mxu0 %v3908
        %4303 = vmatpush.msra.mxu0 %v3904
        %4304 = vmatpush.msra.mxu0 %v3900
        %4305 = vmatpush.msra.mxu0 %v3896
        %4306 = vmatpush.msra.mxu0 %v3892
        %4307 = vmatpush.msra.mxu0 %v3888
        %4308 = vmatpush.msra.mxu0 %v3884
        %4309 = vmatpush.msra.mxu0 %v3880
        %4310 = vmatpush.msra.mxu0 %v3876
        %4311 = vmatpush.msra.mxu0 %v3872
        %4312 = vmatmul.f32.gmra.mxu0 %v3866
        %v4313 = vpop.f32.mrf.mxu0
        %v4314 = vadd.f32 %v4130, %v4313
        %4315 = vdwg.mxu0
        %4316 = vmatpush.msra.mxu0 %v3996
        %4317 = vmatpush.msra.mxu0 %v3992
        %4318 = vmatpush.msra.mxu0 %v3988
        %4319 = vmatpush.msra.mxu0 %v3984
        %4320 = vmatpush.msra.mxu0 %v3980
        %4321 = vmatpush.msra.mxu0 %v3976
        %4322 = vmatpush.msra.mxu0 %v3972
        %4323 = vmatpush.msra.mxu0 %v3968
        %4324 = vmatpush.msra.mxu0 %v3964
        %4325 = vmatpush.msra.mxu0 %v3960
        %4326 = vmatpush.msra.mxu0 %v3956
        %4327 = vmatpush.msra.mxu0 %v3952
        %4328 = vmatpush.msra.mxu0 %v3948
        %4329 = vmatpush.msra.mxu0 %v3944
        %4330 = vmatpush.msra.mxu0 %v3940
        %4331 = vmatpush.msra.mxu0 %v3936
        %4332 = vmatmul.f32.gmra.mxu0 %v3867
        %v4333 = vpop.f32.mrf.mxu0
        %v4334 = vadd.f32 %v4314, %v4333
        %4335 = vdwg.mxu0
        %4336 = vmatpush.msra.mxu0 %v4060
        %4337 = vmatpush.msra.mxu0 %v4056
        %4338 = vmatpush.msra.mxu0 %v4052
        %4339 = vmatpush.msra.mxu0 %v4048
        %4340 = vmatpush.msra.mxu0 %v4044
        %4341 = vmatpush.msra.mxu0 %v4040
        %4342 = vmatpush.msra.mxu0 %v4036
        %4343 = vmatpush.msra.mxu0 %v4032
        %4344 = vmatpush.msra.mxu0 %v4028
        %4345 = vmatpush.msra.mxu0 %v4024
        %4346 = vmatpush.msra.mxu0 %v4020
        %4347 = vmatpush.msra.mxu0 %v4016
        %4348 = vmatpush.msra.mxu0 %v4012
        %4349 = vmatpush.msra.mxu0 %v4008
        %4350 = vmatpush.msra.mxu0 %v4004
        %4351 = vmatpush.msra.mxu0 %v4000
        %4352 = vmatmul.f32.gmra.mxu0 %v3868
        %v4353 = vpop.f32.mrf.mxu0
        %v4354 = vadd.f32 %v4334, %v4353
        %4355 = vdwg.mxu0
        %4356 = vmatpush.msra.mxu0 %v4124
        %4357 = vmatpush.msra.mxu0 %v4120
        %4358 = vmatpush.msra.mxu0 %v4116
        %4359 = vmatpush.msra.mxu0 %v4112
        %4360 = vmatpush.msra.mxu0 %v4108
        %4361 = vmatpush.msra.mxu0 %v4104
        %4362 = vmatpush.msra.mxu0 %v4100
        %4363 = vmatpush.msra.mxu0 %v4096
        %4364 = vmatpush.msra.mxu0 %v4092
        %4365 = vmatpush.msra.mxu0 %v4088
        %4366 = vmatpush.msra.mxu0 %v4084
        %4367 = vmatpush.msra.mxu0 %v4080
        %4368 = vmatpush.msra.mxu0 %v4076
        %4369 = vmatpush.msra.mxu0 %v4072
        %4370 = vmatpush.msra.mxu0 %v4068
        %4371 = vmatpush.msra.mxu0 %v4064
        %4372 = vmatmul.f32.gmra.mxu0 %v3869
        %v4373 = vpop.f32.mrf.mxu0
        %v4374 = vadd.f32 %v4354, %v4373
        %4375 = vdwg.mxu0
        %4376 = vmatpush.msra.mxu0 %v3933
        %4377 = vmatpush.msra.mxu0 %v3929
        %4378 = vmatpush.msra.mxu0 %v3925
        %4379 = vmatpush.msra.mxu0 %v3921
        %4380 = vmatpush.msra.mxu0 %v3917
        %4381 = vmatpush.msra.mxu0 %v3913
        %4382 = vmatpush.msra.mxu0 %v3909
        %4383 = vmatpush.msra.mxu0 %v3905
        %4384 = vmatpush.msra.mxu0 %v3901
        %4385 = vmatpush.msra.mxu0 %v3897
        %4386 = vmatpush.msra.mxu0 %v3893
        %4387 = vmatpush.msra.mxu0 %v3889
        %4388 = vmatpush.msra.mxu0 %v3885
        %4389 = vmatpush.msra.mxu0 %v3881
        %4390 = vmatpush.msra.mxu0 %v3877
        %4391 = vmatpush.msra.mxu0 %v3873
        %4392 = vmatmul.f32.gmra.mxu0 %v3866
        %v4393 = vpop.f32.mrf.mxu0
        %v4394 = vadd.f32 %v4131, %v4393
        %4395 = vdwg.mxu0
        %4396 = vmatpush.msra.mxu0 %v3997
        %4397 = vmatpush.msra.mxu0 %v3993
        %4398 = vmatpush.msra.mxu0 %v3989
        %4399 = vmatpush.msra.mxu0 %v3985
        %4400 = vmatpush.msra.mxu0 %v3981
        %4401 = vmatpush.msra.mxu0 %v3977
        %4402 = vmatpush.msra.mxu0 %v3973
        %4403 = vmatpush.msra.mxu0 %v3969
        %4404 = vmatpush.msra.mxu0 %v3965
        %4405 = vmatpush.msra.mxu0 %v3961
        %4406 = vmatpush.msra.mxu0 %v3957
        %4407 = vmatpush.msra.mxu0 %v3953
        %4408 = vmatpush.msra.mxu0 %v3949
        %4409 = vmatpush.msra.mxu0 %v3945
        %4410 = vmatpush.msra.mxu0 %v3941
        %4411 = vmatpush.msra.mxu0 %v3937
        %4412 = vmatmul.f32.gmra.mxu0 %v3867
        %v4413 = vpop.f32.mrf.mxu0
        %v4414 = vadd.f32 %v4394, %v4413
        %4415 = vdwg.mxu0
        %4416 = vmatpush.msra.mxu0 %v4061
        %4417 = vmatpush.msra.mxu0 %v4057
        %4418 = vmatpush.msra.mxu0 %v4053
        %4419 = vmatpush.msra.mxu0 %v4049
        %4420 = vmatpush.msra.mxu0 %v4045
        %4421 = vmatpush.msra.mxu0 %v4041
        %4422 = vmatpush.msra.mxu0 %v4037
        %4423 = vmatpush.msra.mxu0 %v4033
        %4424 = vmatpush.msra.mxu0 %v4029
        %4425 = vmatpush.msra.mxu0 %v4025
        %4426 = vmatpush.msra.mxu0 %v4021
        %4427 = vmatpush.msra.mxu0 %v4017
        %4428 = vmatpush.msra.mxu0 %v4013
        %4429 = vmatpush.msra.mxu0 %v4009
        %4430 = vmatpush.msra.mxu0 %v4005
        %4431 = vmatpush.msra.mxu0 %v4001
        %4432 = vmatmul.f32.gmra.mxu0 %v3868
        %v4433 = vpop.f32.mrf.mxu0
        %v4434 = vadd.f32 %v4414, %v4433
        %4435 = vdwg.mxu0
        %4436 = vmatpush.msra.mxu0 %v4125
        %4437 = vmatpush.msra.mxu0 %v4121
        %4438 = vmatpush.msra.mxu0 %v4117
        %4439 = vmatpush.msra.mxu0 %v4113
        %4440 = vmatpush.msra.mxu0 %v4109
        %4441 = vmatpush.msra.mxu0 %v4105
        %4442 = vmatpush.msra.mxu0 %v4101
        %4443 = vmatpush.msra.mxu0 %v4097
        %4444 = vmatpush.msra.mxu0 %v4093
        %4445 = vmatpush.msra.mxu0 %v4089
        %4446 = vmatpush.msra.mxu0 %v4085
        %4447 = vmatpush.msra.mxu0 %v4081
        %4448 = vmatpush.msra.mxu0 %v4077
        %4449 = vmatpush.msra.mxu0 %v4073
        %4450 = vmatpush.msra.mxu0 %v4069
        %4451 = vmatpush.msra.mxu0 %v4065
        %4452 = vmatmul.f32.gmra.mxu0 %v3869
        %v4453 = vpop.f32.mrf.mxu0
        %v4454 = vadd.f32 %v4434, %v4453
        %4455 = vdwg.mxu0
        %v4460 = vrot.slane %v4294, 4
        %v4461 = vrot.slane %v4454, 4
        %vm4462 = vcmask 1043456
        %v4463 = vsel %vm4462, %v4214, %v4460
        %v4464 = vsel %vm4462, %v4374, %v4461
        %4467 = vst [vmem:[%s287] sm:$0xff] %v4463
        %4468 = vst [vmem:[%s287 + $0x8] sm:$0xff] %v4464
        %p4469 = scmp.lt.s32.totalorder %s19, 1
        %s4470 = scalar_select %p4469, %s19, 1
        %s4471 = smul.addr %s4470, 4
        %s4472 = smul.addr %s4471, 4
        %s4473 = scalar_lea.vmem %s6, %s4472
        // Predicated region
        $region53: #{tail_embedding_forward.1} parent=43 // pred_check
          %p4474 = pneg %p168
        $region54: #{tail_embedding_forward.1} parent=43 // pred_check_branch
          %4476 = sbr.rel (%p4474) target = $region56
        $region55: #{tail_embedding_forward.1} parent=43 // pred_region
          _
        $region56: #{tail_embedding_forward.1} parent=43 // pred_fallthru
          _
      $region44: #{tail_embedding_forward.1} parent=5 // pred_fallthru
        _
      %p4477 = scmp.le.s32.totalorder 2, %s14
      // Predicated region
      $region57: #{tail_embedding_forward.1} parent=5 // pred_check
        %p4478 = pneg %p4477
      $region58: #{tail_embedding_forward.1} parent=5 // pred_check_branch
        %4480 = sbr.rel (%p4478) target = $region60
      $region59: #{tail_embedding_forward.1} parent=5 // pred_region
        %s4481 = ssub.s32 %s14, 2
        // Predicated region
        $region61: #{tail_embedding_forward.1} parent=59 // pred_check
          %p4482 = pneg %p174
        $region62: #{tail_embedding_forward.1} parent=59 // pred_check_branch
          %4484 = sbr.rel (%p4482) target = $region64
        $region63: #{tail_embedding_forward.1} parent=59 // pred_region
          %p4485 = scmp.lt.s32.totalorder %s20, 1
          %s4486 = scalar_select %p4485, %s20, 1
          %s4487 = smul.addr %s4486, 4
          %s4488 = smul.addr %s4487, 4
          %s4489 = scalar_lea.vmem %s6, %s4488
        $region64: #{tail_embedding_forward.1} parent=59 // pred_fallthru
          _
      $region60: #{tail_embedding_forward.1} parent=5 // pred_fallthru
        _
    $region6: #{tail_embedding_forward.1} parent=1 // loop_footer
      %s18 = sadd.s32 1, %s14
    $region7: #{tail_embedding_forward.1} parent=1 // loop_footer_branch
      %13 = sbr.rel target = $region3
    $region8: #{tail_embedding_forward.1} parent=1 // loop_exit
      _
    %4490 = vsyncpa [#allocation3], 1
    %s4491 = scalar_lea.sflag [#allocation3], 1
    %4492 = vsyncpa %s4491, 1
    %4493 = vsyncpa [#allocation5], 1

</llo_original>
